<compile_context>
chip_gen: v5e
topology: v5e:2x2
jax: 0.10.0
libtpu: 0.0.40
codegen_flags: <defaults>
</compile_context>

<pallas_src>
import functools

import jax
import jax.numpy as jnp
from jax.experimental import pallas as pl
from jax.experimental.pallas import tpu as pltpu

_VMEM_LIMIT = 32 * 1024 * 1024  # safe on v5e/v6e and within v7x's 64 MiB VMEM


# ---------------------------------------------------------------------------
# padding / tiling helpers (same rules used at weight-prep and at call time)
# ---------------------------------------------------------------------------
def _round_up(x, m):
    return (x + m - 1) // m * m


def _pad_m(m):
    mp = _round_up(max(m, 1), 16)
    if mp <= 256:
        return mp, mp          # single M tile == full padded dim
    return _round_up(mp, 256), 256


def _pad_k(k):
    kp = _round_up(k, 128)
    return kp if kp <= 1024 else _round_up(kp, 512)


def _k_tile(kp):
    return kp if kp <= 1024 else 512


def _pad_n(n):
    np_ = _round_up(n, 128)
    return np_ if np_ <= 256 else _round_up(np_, 256)


def _n_tile(np_):
    return np_ if np_ <= 256 else 256


# ---------------------------------------------------------------------------
# Kernel 1: tiled  act(x @ w + b)   (bf16 operands, f32 accumulate)
# ---------------------------------------------------------------------------
def _activation(y, act):
    if act == "gelu":          # exact erf-GELU == torch.nn.GELU() default
        return 0.5 * y * (1.0 + jax.lax.erf(y * 0.7071067811865476))
    if act == "leaky_relu":    # torch default negative_slope = 0.01
        return jnp.where(y >= 0.0, y, 0.01 * y)
    return y                   # "none"


def _mm_bias_act_kernel(x_ref, w_ref, b_ref, o_ref, acc_ref, *, act):
    k = pl.program_id(2)

    @pl.when(k == 0)
    def _():
        acc_ref[...] = jnp.zeros_like(acc_ref)

    acc_ref[...] += jnp.dot(x_ref[...], w_ref[...],
                            preferred_element_type=jnp.float32)

    @pl.when(k == pl.num_programs(2) - 1)
    def _():
        y = acc_ref[...] + b_ref[...].astype(jnp.float32)
        o_ref[...] = _activation(y, act).astype(o_ref.dtype)


def matmul_bias_act(x, w_pad, b_pad, n_valid, act="none", out_dtype=jnp.bfloat16):
    """act(x @ w + b). w_pad: pre-padded bf16 (Kp, Np); b_pad: f32 (1, Np)."""
    M, K = x.shape
    Kp, Np = w_pad.shape
    Mp, tm = _pad_m(M)
    tk, tn = _k_tile(Kp), _n_tile(Np)
    x_p = jnp.pad(x.astype(jnp.bfloat16), ((0, Mp - M), (0, Kp - K)))

    out = pl.pallas_call(
        functools.partial(_mm_bias_act_kernel, act=act),
        grid_spec=pltpu.PrefetchScalarGridSpec(
            num_scalar_prefetch=0,
            grid=(Mp // tm, Np // tn, Kp // tk),
            in_specs=[
                pl.BlockSpec((tm, tk), lambda i, j, k: (i, k)),
                pl.BlockSpec((tk, tn), lambda i, j, k: (k, j)),
                pl.BlockSpec((1, tn), lambda i, j, k: (0, j)),
            ],
            out_specs=pl.BlockSpec((tm, tn), lambda i, j, k: (i, j)),
            scratch_shapes=[pltpu.VMEM((tm, tn), jnp.float32)],
        ),
        out_shape=jax.ShapeDtypeStruct((Mp, Np), out_dtype),
        compiler_params=pltpu.CompilerParams(
            dimension_semantics=("parallel", "parallel", "arbitrary"),
            vmem_limit_bytes=_VMEM_LIMIT,
        ),
    )(x_p, w_pad, b_pad)
    return out[:M, :n_valid]


# ---------------------------------------------------------------------------
# Kernel 2: fused FC head   (fc1 -> LeakyReLU -> fc2 -> softmax/identity)
# ---------------------------------------------------------------------------
def _fc_head_kernel(x_ref, w1_ref, b1_ref, w2_ref, b2_ref, o_ref, *, act, n_valid):
    h = jnp.dot(x_ref[...], w1_ref[...], preferred_element_type=jnp.float32)
    h = h + b1_ref[...].astype(jnp.float32)
    h = jnp.where(h >= 0.0, h, 0.01 * h)                       # LeakyReLU
    y = jnp.dot(h.astype(jnp.bfloat16), w2_ref[...],
                preferred_element_type=jnp.float32)
    y = y + b2_ref[...].astype(jnp.float32)
    if act == "softmax":                                       # masked, f32
        col = jax.lax.broadcasted_iota(jnp.int32, y.shape, 1)
        valid = col < n_valid
        y = jnp.where(valid, y, -jnp.inf)
        m = jnp.max(y, axis=-1, keepdims=True)
        e = jnp.where(valid, jnp.exp(y - m), 0.0)
        y = e / jnp.sum(e, axis=-1, keepdims=True)
    o_ref[...] = y.astype(o_ref.dtype)


def fc_head(x, w1_pad, b1_pad, w2_pad, b2_pad, n_valid, act="none"):
    M, K = x.shape
    K1p, Hp = w1_pad.shape
    _, N2p = w2_pad.shape
    Mp, tm = _pad_m(M)
    x_p = jnp.pad(x.astype(jnp.bfloat16), ((0, Mp - M), (0, K1p - K)))

    out = pl.pallas_call(
        functools.partial(_fc_head_kernel, act=act, n_valid=n_valid),
        grid_spec=pltpu.PrefetchScalarGridSpec(
            num_scalar_prefetch=0,
            grid=(Mp // tm,),
            in_specs=[
                pl.BlockSpec((tm, K1p), lambda i: (i, 0)),
                pl.BlockSpec((K1p, Hp), lambda i: (0, 0)),
                pl.BlockSpec((1, Hp), lambda i: (0, 0)),
                pl.BlockSpec((Hp, N2p), lambda i: (0, 0)),
                pl.BlockSpec((1, N2p), lambda i: (0, 0)),
            ],
            out_specs=pl.BlockSpec((tm, N2p), lambda i: (i, 0)),
        ),
        out_shape=jax.ShapeDtypeStruct((Mp, N2p), jnp.float32),
        compiler_params=pltpu.CompilerParams(
            dimension_semantics=("parallel",),
            vmem_limit_bytes=_VMEM_LIMIT,
        ),
    )(x_p, w1_pad, b1_pad, w2_pad, b2_pad)
    return out[:M, :n_valid]


# ---------------------------------------------------------------------------
# Parameter init (PyTorch-like fan-in uniform) + one-time weight preparation
# ---------------------------------------------------------------------------
def _conv_out(d, k, s):
    return (d - k) // s + 1


def _init_conv(key, oc, ic, kh, kw):
    k1, k2 = jax.random.split(key)
    bound = 1.0 / float(ic * kh * kw) ** 0.5
    w = jax.random.uniform(k1, (oc, ic, kh, kw), jnp.float32, -bound, bound)
    b = jax.random.uniform(k2, (oc,), jnp.float32, -bound, bound)
    return w, b


def _init_linear(key, in_f, out_f):
    k1, k2 = jax.random.split(key)
    bound = 1.0 / float(in_f) ** 0.5
    w = jax.random.uniform(k1, (in_f, out_f), jnp.float32, -bound, bound)
    b = jax.random.uniform(k2, (out_f,), jnp.float32, -bound, bound)
    return w, b


def init_params(key, obs_shape, action_n):
    C, H, W = obs_shape
    oh = _conv_out(_conv_out(_conv_out(H, 8, 4), 4, 2), 3, 1)
    ow = _conv_out(_conv_out(_conv_out(W, 8, 4), 4, 2), 3, 1)
    conv_out = 64 * oh * ow
    keys = jax.random.split(key, 10)

    def branch(ks, head_out):
        return dict(
            c1=_init_conv(ks[0], 32, C, 8, 8),
            c2=_init_conv(ks[1], 64, 32, 4, 4),
            c3=_init_conv(ks[2], 64, 64, 3, 3),
            fc1=_init_linear(ks[3], conv_out, 512),
            fc2=_init_linear(ks[4], 512, head_out),
        )

    return dict(actor=branch(keys[:5], action_n), critic=branch(keys[5:], 1))


def _pad_cast_w(w):
    K, N = w.shape
    Kp, Np = _pad_k(K), _pad_n(N)
    return jnp.pad(w.astype(jnp.float32), ((0, Kp - K), (0, Np - N))).astype(jnp.bfloat16)


def _pad_bias(b):
    N = b.shape[0]
    Np = _pad_n(N)
    return jnp.pad(b.astype(jnp.float32), (0, Np - N)).reshape(1, Np)


def _conv_w_mat(w):
    # (OC, IC, KH, KW) -> (IC*KH*KW, OC): matches the (C, kh, kw) feature
    # ordering produced by lax.conv_general_dilated_patches.
    return w.reshape(w.shape[0], -1).T


def prepare_params(raw, obs_shape):
    """One-time prep: matmul layout, NHWC fc1 row permutation, /256 folding,
    tile padding and bf16 cast. Done outside the jitted forward."""
    C, H, W = obs_shape
    oh3 = _conv_out(_conv_out(_conv_out(H, 8, 4), 4, 2), 3, 1)
    ow3 = _conv_out(_conv_out(_conv_out(W, 8, 4), 4, 2), 3, 1)
    a, c = raw["actor"], raw["critic"]

    # Fused conv1 weight: actor -> cols 0:32, critic -> cols 32:64.
    w1 = jnp.concatenate([_conv_w_mat(a["c1"][0]), _conv_w_mat(c["c1"][0])], axis=1)
    b1 = jnp.concatenate([a["c1"][1], c["c1"][1]], axis=0)

    def branch(p):
        w_fc1, b_fc1 = p["fc1"]
        # torch flattens conv3 output as (C=64, OH, OW); we flatten NHWC,
        # so permute fc1 rows once to (OH, OW, C) ordering.
        w_fc1 = (w_fc1.reshape(64, oh3, ow3, 512)
                 .transpose(1, 2, 0, 3)
                 .reshape(64 * oh3 * ow3, 512))
        return dict(
            c2_w=_pad_cast_w(_conv_w_mat(p["c2"][0])), c2_b=_pad_bias(p["c2"][1]),
            c3_w=_pad_cast_w(_conv_w_mat(p["c3"][0])), c3_b=_pad_bias(p["c3"][1]),
            fc1_w=_pad_cast_w(w_fc1), fc1_b=_pad_bias(b_fc1),
            fc2_w=_pad_cast_w(p["fc2"][0]), fc2_b=_pad_bias(p["fc2"][1]),
        )

    return dict(
        c1_w=_pad_cast_w(w1 / 256.0),     # fold obs /256 scaling into conv1
        c1_b=_pad_bias(b1),
        actor=branch(a),
        critic=branch(c),
    )


# ---------------------------------------------------------------------------
# Forward pass (== ActorCriticCNNBase.forward: returns (probs, critic_values))
# ---------------------------------------------------------------------------
def _patches(x, ksize, stride, dims):
    return jax.lax.conv_general_dilated_patches(
        x, (ksize, ksize), (stride, stride), "VALID", dimension_numbers=dims)


def actor_critic_forward(prep, obs, *, action_n):
    B = obs.shape[0]
    # uint8 -> bf16 (0..255 exact in bf16); /256 already folded into conv1 w.
    x = obs.astype(jnp.bfloat16)

    # --- fused actor+critic conv1 (shared input patches) -------------------
    # TODO(synk): patch extraction could move inside the Pallas kernel with
    #             pl.ds strided reads to save one HBM round trip per layer.
    p1 = _patches(x, 8, 4, ("NCHW", "OIHW", "NHWC"))      # (B, OH1, OW1, C*64)
    _, oh1, ow1, k1 = p1.shape
    h1 = matmul_bias_act(p1.reshape(B * oh1 * ow1, k1),
                         prep["c1_w"], prep["c1_b"], n_valid=64, act="gelu")
    h1 = h1.reshape(B, oh1, ow1, 64)

    def branch(h, p, head_n, head_act):
        p2 = _patches(h, 4, 2, ("NHWC", "HWIO", "NHWC"))  # (B, OH2, OW2, 32*16)
        _, oh2, ow2, k2 = p2.shape
        h2 = matmul_bias_act(p2.reshape(B * oh2 * ow2, k2),
                             p["c2_w"], p["c2_b"], n_valid=64, act="gelu")
        h2 = h2.reshape(B, oh2, ow2, 64)

        p3 = _patches(h2, 3, 1, ("NHWC", "HWIO", "NHWC"))  # (B, OH3, OW3, 64*9)
        _, oh3, ow3, k3 = p3.shape
        h3 = matmul_bias_act(p3.reshape(B * oh3 * ow3, k3),
                             p["c3_w"], p["c3_b"], n_valid=64, act="gelu")

        flat = h3.reshape(B, oh3 * ow3 * 64)               # NHWC flatten
        return fc_head(flat, p["fc1_w"], p["fc1_b"], p["fc2_w"], p["fc2_b"],
                       n_valid=head_n, act=head_act)

    probs = branch(h1[..., :32], prep["actor"], action_n, "softmax")
    values = branch(h1[..., 32:], prep["critic"], 1, "none")
    return probs, values


# ---------------------------------------------------------------------------
if __name__ == "__main__":
    obs_shape = (4, 36, 36)    # conv stack -> 1x1 spatial, conv_out_size = 64
    action_n = 6
    batch = 2

    key = jax.random.PRNGKey(0)
    pkey, okey = jax.random.split(key)
    raw_params = init_params(pkey, obs_shape, action_n)
    prep = prepare_params(raw_params, obs_shape)
    obs = jax.random.randint(
        okey, (batch,) + obs_shape, 0, 256, dtype=jnp.int32
    ).astype(jnp.uint8)

    fwd = jax.jit(functools.partial(actor_critic_forward, action_n=action_n))
    probs, values = fwd(prep, obs)
    jax.block_until_ready((probs, values))

    assert probs.shape == (batch, action_n)
    assert values.shape == (batch, 1)
    assert bool(jnp.all(jnp.isfinite(probs)))
    assert bool(jnp.allclose(jnp.sum(probs, axis=-1), 1.0, atol=1e-5))
    assert bool(jnp.all(jnp.isfinite(values)))
    print("KERNEL_OK")
</pallas_src>

<mosaic_0001>
module attributes {stable_mosaic.version = 11 : i64} {
  func.func @_mm_bias_act_kernel(%arg0: i32, %arg1: i32, %arg2: i32, %arg3: memref<128x256xbf16, #tpu.memory_space<vmem>>, %arg4: memref<256x128xbf16, #tpu.memory_space<vmem>>, %arg5: memref<1x128xf32, #tpu.memory_space<vmem>>, %arg6: memref<128x128xbf16, #tpu.memory_space<vmem>>, %arg7: memref<128x128xf32, #tpu.memory_space<vmem>>) attributes {dimension_semantics = [#tpu.dimension_semantics<parallel>, #tpu.dimension_semantics<parallel>, #tpu.dimension_semantics<arbitrary>], iteration_bounds = array<i64: 1, 1, 1>, scalar_prefetch = 0 : i64, scratch_operands = 1 : i64, tpu.core_type = #tpu.core_type<tc>, window_params = [{transform_indices = @transform_0, window_bounds = array<i64: 128, 256>}, {transform_indices = @transform_1, window_bounds = array<i64: 256, 128>}, {transform_indices = @transform_2, window_bounds = array<i64: 1, 128>}, {transform_indices = @transform_3, window_bounds = array<i64: 128, 128>}]} {
    %c0_i32 = arith.constant 0 : i32
    %0 = arith.cmpi eq, %arg2, %c0_i32 : i32
    %1 = arith.extui %0 : i1 to i32
    %c0_i32_0 = arith.constant 0 : i32
    %2 = arith.cmpi ne, %1, %c0_i32_0 : i32
    scf.if %2 {
      %cst_10 = arith.constant 0.000000e+00 : f32
      %12 = vector.broadcast %cst_10 : f32 to vector<128x128xf32>
      %c0_11 = arith.constant 0 : index
      %c0_12 = arith.constant 0 : index
      %13 = vector.load %arg7[%c0_11, %c0_12] : memref<128x128xf32, #tpu.memory_space<vmem>>, vector<128x128xf32>
      tpu.vector_store %arg7[%c0_11, %c0_12], %12 {strides = array<i32>} : memref<128x128xf32, #tpu.memory_space<vmem>>, vector<128x128xf32>,
    } else {
    }
    %c0 = arith.constant 0 : index
    %c0_1 = arith.constant 0 : index
    %3 = vector.load %arg7[%c0, %c0_1] : memref<128x128xf32, #tpu.memory_space<vmem>>, vector<128x128xf32>
    %c0_2 = arith.constant 0 : index
    %c0_3 = arith.constant 0 : index
    %4 = vector.load %arg3[%c0_2, %c0_3] : memref<128x256xbf16, #tpu.memory_space<vmem>>, vector<128x256xbf16>
    %c0_4 = arith.constant 0 : index
    %c0_5 = arith.constant 0 : index
    %5 = vector.load %arg4[%c0_4, %c0_5] : memref<256x128xbf16, #tpu.memory_space<vmem>>, vector<256x128xbf16>
    %cst = arith.constant dense<0.000000e+00> : vector<128x128xf32>
    %6 = tpu.matmul %4, %5, %cst {dimension_numbers = #tpu.dot_dimension_numbers<[1], [0], [0], [1], [0, 0, 1, 1], [], []>} : vector<128x256xbf16>, vector<256x128xbf16>, vector<128x128xf32> -> vector<128x128xf32>
    %7 = arith.addf %3, %6 : vector<128x128xf32>
    %c0_6 = arith.constant 0 : index
    %c0_7 = arith.constant 0 : index
    %8 = vector.load %arg7[%c0_6, %c0_7] : memref<128x128xf32, #tpu.memory_space<vmem>>, vector<128x128xf32>
    tpu.vector_store %arg7[%c0_6, %c0_7], %7 {strides = array<i32>} : memref<128x128xf32, #tpu.memory_space<vmem>>, vector<128x128xf32>,
    %c0_i32_8 = arith.constant 0 : i32
    %9 = arith.cmpi eq, %arg2, %c0_i32_8 : i32
    %10 = arith.extui %9 : i1 to i32
    %c0_i32_9 = arith.constant 0 : i32
    %11 = arith.cmpi ne, %10, %c0_i32_9 : i32
    scf.if %11 {
      %c0_10 = arith.constant 0 : index
      %c0_11 = arith.constant 0 : index
      %12 = vector.load %arg7[%c0_10, %c0_11] : memref<128x128xf32, #tpu.memory_space<vmem>>, vector<128x128xf32>
      %c0_12 = arith.constant 0 : index
      %c0_13 = arith.constant 0 : index
      %13 = vector.load %arg5[%c0_12, %c0_13] : memref<1x128xf32, #tpu.memory_space<vmem>>, vector<1x128xf32>
      %14 = vector.broadcast %13 : vector<1x128xf32> to vector<128x128xf32>
      %15 = arith.addf %12, %14 : vector<128x128xf32>
      %cst_14 = arith.constant 5.000000e-01 : f32
      %16 = vector.broadcast %cst_14 : f32 to vector<128x128xf32>
      %17 = arith.mulf %16, %15 : vector<128x128xf32>
      %cst_15 = arith.constant 0.707106769 : f32
      %18 = vector.broadcast %cst_15 : f32 to vector<128x128xf32>
      %19 = arith.mulf %15, %18 : vector<128x128xf32>
      %20 = math.erf %19 : vector<128x128xf32>
      %cst_16 = arith.constant 1.000000e+00 : f32
      %21 = vector.broadcast %cst_16 : f32 to vector<128x128xf32>
      %22 = arith.addf %21, %20 : vector<128x128xf32>
      %23 = arith.mulf %17, %22 : vector<128x128xf32>
      %24 = arith.truncf %23 : vector<128x128xf32> to vector<128x128xbf16>
      %c0_17 = arith.constant 0 : index
      %c0_18 = arith.constant 0 : index
      %25 = vector.load %arg6[%c0_17, %c0_18] : memref<128x128xbf16, #tpu.memory_space<vmem>>, vector<128x128xbf16>
      tpu.vector_store %arg6[%c0_17, %c0_18], %24 {strides = array<i32>} : memref<128x128xbf16, #tpu.memory_space<vmem>>, vector<128x128xbf16>,
    } else {
    }
    return
  }
  func.func @transform_0(%arg0: i32, %arg1: i32, %arg2: i32) -> (i32, i32) {
    %c0_i32 = arith.constant 0 : i32
    return %arg0, %arg2 : i32, i32
  }
  func.func @transform_1(%arg0: i32, %arg1: i32, %arg2: i32) -> (i32, i32) {
    %c0_i32 = arith.constant 0 : i32
    return %arg2, %arg1 : i32, i32
  }
  func.func @transform_2(%arg0: i32, %arg1: i32, %arg2: i32) -> (i32, i32) {
    %c0_i32 = arith.constant 0 : i32
    %c0_i32_0 = arith.constant 0 : i32
    return %c0_i32, %arg1 : i32, i32
  }
  func.func @transform_3(%arg0: i32, %arg1: i32, %arg2: i32) -> (i32, i32) {
    %c0_i32 = arith.constant 0 : i32
    return %arg0, %arg1 : i32, i32
  }
}

module attributes {stable_mosaic.version = 11 : i64} {
  func.func @_mm_bias_act_kernel(%arg0: i32, %arg1: i32, %arg2: i32, %arg3: memref<32x512xbf16, #tpu.memory_space<vmem>>, %arg4: memref<512x128xbf16, #tpu.memory_space<vmem>>, %arg5: memref<1x128xf32, #tpu.memory_space<vmem>>, %arg6: memref<32x128xbf16, #tpu.memory_space<vmem>>, %arg7: memref<32x128xf32, #tpu.memory_space<vmem>>) attributes {dimension_semantics = [#tpu.dimension_semantics<parallel>, #tpu.dimension_semantics<parallel>, #tpu.dimension_semantics<arbitrary>], iteration_bounds = array<i64: 1, 1, 1>, scalar_prefetch = 0 : i64, scratch_operands = 1 : i64, tpu.core_type = #tpu.core_type<tc>, window_params = [{transform_indices = @transform_0, window_bounds = array<i64: 32, 512>}, {transform_indices = @transform_1, window_bounds = array<i64: 512, 128>}, {transform_indices = @transform_2, window_bounds = array<i64: 1, 128>}, {transform_indices = @transform_3, window_bounds = array<i64: 32, 128>}]} {
    %c0_i32 = arith.constant 0 : i32
    %0 = arith.cmpi eq, %arg2, %c0_i32 : i32
    %1 = arith.extui %0 : i1 to i32
    %c0_i32_0 = arith.constant 0 : i32
    %2 = arith.cmpi ne, %1, %c0_i32_0 : i32
    scf.if %2 {
      %cst_10 = arith.constant 0.000000e+00 : f32
      %12 = vector.broadcast %cst_10 : f32 to vector<32x128xf32>
      %c0_11 = arith.constant 0 : index
      %c0_12 = arith.constant 0 : index
      %13 = vector.load %arg7[%c0_11, %c0_12] : memref<32x128xf32, #tpu.memory_space<vmem>>, vector<32x128xf32>
      tpu.vector_store %arg7[%c0_11, %c0_12], %12 {strides = array<i32>} : memref<32x128xf32, #tpu.memory_space<vmem>>, vector<32x128xf32>,
    } else {
    }
    %c0 = arith.constant 0 : index
    %c0_1 = arith.constant 0 : index
    %3 = vector.load %arg7[%c0, %c0_1] : memref<32x128xf32, #tpu.memory_space<vmem>>, vector<32x128xf32>
    %c0_2 = arith.constant 0 : index
    %c0_3 = arith.constant 0 : index
    %4 = vector.load %arg3[%c0_2, %c0_3] : memref<32x512xbf16, #tpu.memory_space<vmem>>, vector<32x512xbf16>
    %c0_4 = arith.constant 0 : index
    %c0_5 = arith.constant 0 : index
    %5 = vector.load %arg4[%c0_4, %c0_5] : memref<512x128xbf16, #tpu.memory_space<vmem>>, vector<512x128xbf16>
    %cst = arith.constant dense<0.000000e+00> : vector<32x128xf32>
    %6 = tpu.matmul %4, %5, %cst {dimension_numbers = #tpu.dot_dimension_numbers<[1], [0], [0], [1], [0, 0, 1, 1], [], []>} : vector<32x512xbf16>, vector<512x128xbf16>, vector<32x128xf32> -> vector<32x128xf32>
    %7 = arith.addf %3, %6 : vector<32x128xf32>
    %c0_6 = arith.constant 0 : index
    %c0_7 = arith.constant 0 : index
    %8 = vector.load %arg7[%c0_6, %c0_7] : memref<32x128xf32, #tpu.memory_space<vmem>>, vector<32x128xf32>
    tpu.vector_store %arg7[%c0_6, %c0_7], %7 {strides = array<i32>} : memref<32x128xf32, #tpu.memory_space<vmem>>, vector<32x128xf32>,
    %c0_i32_8 = arith.constant 0 : i32
    %9 = arith.cmpi eq, %arg2, %c0_i32_8 : i32
    %10 = arith.extui %9 : i1 to i32
    %c0_i32_9 = arith.constant 0 : i32
    %11 = arith.cmpi ne, %10, %c0_i32_9 : i32
    scf.if %11 {
      %c0_10 = arith.constant 0 : index
      %c0_11 = arith.constant 0 : index
      %12 = vector.load %arg7[%c0_10, %c0_11] : memref<32x128xf32, #tpu.memory_space<vmem>>, vector<32x128xf32>
      %c0_12 = arith.constant 0 : index
      %c0_13 = arith.constant 0 : index
      %13 = vector.load %arg5[%c0_12, %c0_13] : memref<1x128xf32, #tpu.memory_space<vmem>>, vector<1x128xf32>
      %14 = vector.broadcast %13 : vector<1x128xf32> to vector<32x128xf32>
      %15 = arith.addf %12, %14 : vector<32x128xf32>
      %cst_14 = arith.constant 5.000000e-01 : f32
      %16 = vector.broadcast %cst_14 : f32 to vector<32x128xf32>
      %17 = arith.mulf %16, %15 : vector<32x128xf32>
      %cst_15 = arith.constant 0.707106769 : f32
      %18 = vector.broadcast %cst_15 : f32 to vector<32x128xf32>
      %19 = arith.mulf %15, %18 : vector<32x128xf32>
      %20 = math.erf %19 : vector<32x128xf32>
      %cst_16 = arith.constant 1.000000e+00 : f32
      %21 = vector.broadcast %cst_16 : f32 to vector<32x128xf32>
      %22 = arith.addf %21, %20 : vector<32x128xf32>
      %23 = arith.mulf %17, %22 : vector<32x128xf32>
      %24 = arith.truncf %23 : vector<32x128xf32> to vector<32x128xbf16>
      %c0_17 = arith.constant 0 : index
      %c0_18 = arith.constant 0 : index
      %25 = vector.load %arg6[%c0_17, %c0_18] : memref<32x128xbf16, #tpu.memory_space<vmem>>, vector<32x128xbf16>
      tpu.vector_store %arg6[%c0_17, %c0_18], %24 {strides = array<i32>} : memref<32x128xbf16, #tpu.memory_space<vmem>>, vector<32x128xbf16>,
    } else {
    }
    return
  }
  func.func @transform_0(%arg0: i32, %arg1: i32, %arg2: i32) -> (i32, i32) {
    %c0_i32 = arith.constant 0 : i32
    return %arg0, %arg2 : i32, i32
  }
  func.func @transform_1(%arg0: i32, %arg1: i32, %arg2: i32) -> (i32, i32) {
    %c0_i32 = arith.constant 0 : i32
    return %arg2, %arg1 : i32, i32
  }
  func.func @transform_2(%arg0: i32, %arg1: i32, %arg2: i32) -> (i32, i32) {
    %c0_i32 = arith.constant 0 : i32
    %c0_i32_0 = arith.constant 0 : i32
    return %c0_i32, %arg1 : i32, i32
  }
  func.func @transform_3(%arg0: i32, %arg1: i32, %arg2: i32) -> (i32, i32) {
    %c0_i32 = arith.constant 0 : i32
    return %arg0, %arg1 : i32, i32
  }
}

module attributes {stable_mosaic.version = 11 : i64} {
  func.func @_mm_bias_act_kernel(%arg0: i32, %arg1: i32, %arg2: i32, %arg3: memref<16x640xbf16, #tpu.memory_space<vmem>>, %arg4: memref<640x128xbf16, #tpu.memory_space<vmem>>, %arg5: memref<1x128xf32, #tpu.memory_space<vmem>>, %arg6: memref<16x128xbf16, #tpu.memory_space<vmem>>, %arg7: memref<16x128xf32, #tpu.memory_space<vmem>>) attributes {dimension_semantics = [#tpu.dimension_semantics<parallel>, #tpu.dimension_semantics<parallel>, #tpu.dimension_semantics<arbitrary>], iteration_bounds = array<i64: 1, 1, 1>, scalar_prefetch = 0 : i64, scratch_operands = 1 : i64, tpu.core_type = #tpu.core_type<tc>, window_params = [{transform_indices = @transform_0, window_bounds = array<i64: 16, 640>}, {transform_indices = @transform_1, window_bounds = array<i64: 640, 128>}, {transform_indices = @transform_2, window_bounds = array<i64: 1, 128>}, {transform_indices = @transform_3, window_bounds = array<i64: 16, 128>}]} {
    %c0_i32 = arith.constant 0 : i32
    %0 = arith.cmpi eq, %arg2, %c0_i32 : i32
    %1 = arith.extui %0 : i1 to i32
    %c0_i32_0 = arith.constant 0 : i32
    %2 = arith.cmpi ne, %1, %c0_i32_0 : i32
    scf.if %2 {
      %cst_10 = arith.constant 0.000000e+00 : f32
      %12 = vector.broadcast %cst_10 : f32 to vector<16x128xf32>
      %c0_11 = arith.constant 0 : index
      %c0_12 = arith.constant 0 : index
      %13 = vector.load %arg7[%c0_11, %c0_12] : memref<16x128xf32, #tpu.memory_space<vmem>>, vector<16x128xf32>
      tpu.vector_store %arg7[%c0_11, %c0_12], %12 {strides = array<i32>} : memref<16x128xf32, #tpu.memory_space<vmem>>, vector<16x128xf32>,
    } else {
    }
    %c0 = arith.constant 0 : index
    %c0_1 = arith.constant 0 : index
    %3 = vector.load %arg7[%c0, %c0_1] : memref<16x128xf32, #tpu.memory_space<vmem>>, vector<16x128xf32>
    %c0_2 = arith.constant 0 : index
    %c0_3 = arith.constant 0 : index
    %4 = vector.load %arg3[%c0_2, %c0_3] : memref<16x640xbf16, #tpu.memory_space<vmem>>, vector<16x640xbf16>
    %c0_4 = arith.constant 0 : index
    %c0_5 = arith.constant 0 : index
    %5 = vector.load %arg4[%c0_4, %c0_5] : memref<640x128xbf16, #tpu.memory_space<vmem>>, vector<640x128xbf16>
    %cst = arith.constant dense<0.000000e+00> : vector<16x128xf32>
    %6 = tpu.matmul %4, %5, %cst {dimension_numbers = #tpu.dot_dimension_numbers<[1], [0], [0], [1], [0, 0, 1, 1], [], []>} : vector<16x640xbf16>, vector<640x128xbf16>, vector<16x128xf32> -> vector<16x128xf32>
    %7 = arith.addf %3, %6 : vector<16x128xf32>
    %c0_6 = arith.constant 0 : index
    %c0_7 = arith.constant 0 : index
    %8 = vector.load %arg7[%c0_6, %c0_7] : memref<16x128xf32, #tpu.memory_space<vmem>>, vector<16x128xf32>
    tpu.vector_store %arg7[%c0_6, %c0_7], %7 {strides = array<i32>} : memref<16x128xf32, #tpu.memory_space<vmem>>, vector<16x128xf32>,
    %c0_i32_8 = arith.constant 0 : i32
    %9 = arith.cmpi eq, %arg2, %c0_i32_8 : i32
    %10 = arith.extui %9 : i1 to i32
    %c0_i32_9 = arith.constant 0 : i32
    %11 = arith.cmpi ne, %10, %c0_i32_9 : i32
    scf.if %11 {
      %c0_10 = arith.constant 0 : index
      %c0_11 = arith.constant 0 : index
      %12 = vector.load %arg7[%c0_10, %c0_11] : memref<16x128xf32, #tpu.memory_space<vmem>>, vector<16x128xf32>
      %c0_12 = arith.constant 0 : index
      %c0_13 = arith.constant 0 : index
      %13 = vector.load %arg5[%c0_12, %c0_13] : memref<1x128xf32, #tpu.memory_space<vmem>>, vector<1x128xf32>
      %14 = vector.broadcast %13 : vector<1x128xf32> to vector<16x128xf32>
      %15 = arith.addf %12, %14 : vector<16x128xf32>
      %cst_14 = arith.constant 5.000000e-01 : f32
      %16 = vector.broadcast %cst_14 : f32 to vector<16x128xf32>
      %17 = arith.mulf %16, %15 : vector<16x128xf32>
      %cst_15 = arith.constant 0.707106769 : f32
      %18 = vector.broadcast %cst_15 : f32 to vector<16x128xf32>
      %19 = arith.mulf %15, %18 : vector<16x128xf32>
      %20 = math.erf %19 : vector<16x128xf32>
      %cst_16 = arith.constant 1.000000e+00 : f32
      %21 = vector.broadcast %cst_16 : f32 to vector<16x128xf32>
      %22 = arith.addf %21, %20 : vector<16x128xf32>
      %23 = arith.mulf %17, %22 : vector<16x128xf32>
      %24 = arith.truncf %23 : vector<16x128xf32> to vector<16x128xbf16>
      %c0_17 = arith.constant 0 : index
      %c0_18 = arith.constant 0 : index
      %25 = vector.load %arg6[%c0_17, %c0_18] : memref<16x128xbf16, #tpu.memory_space<vmem>>, vector<16x128xbf16>
      tpu.vector_store %arg6[%c0_17, %c0_18], %24 {strides = array<i32>} : memref<16x128xbf16, #tpu.memory_space<vmem>>, vector<16x128xbf16>,
    } else {
    }
    return
  }
  func.func @transform_0(%arg0: i32, %arg1: i32, %arg2: i32) -> (i32, i32) {
    %c0_i32 = arith.constant 0 : i32
    return %arg0, %arg2 : i32, i32
  }
  func.func @transform_1(%arg0: i32, %arg1: i32, %arg2: i32) -> (i32, i32) {
    %c0_i32 = arith.constant 0 : i32
    return %arg2, %arg1 : i32, i32
  }
  func.func @transform_2(%arg0: i32, %arg1: i32, %arg2: i32) -> (i32, i32) {
    %c0_i32 = arith.constant 0 : i32
    %c0_i32_0 = arith.constant 0 : i32
    return %c0_i32, %arg1 : i32, i32
  }
  func.func @transform_3(%arg0: i32, %arg1: i32, %arg2: i32) -> (i32, i32) {
    %c0_i32 = arith.constant 0 : i32
    return %arg0, %arg1 : i32, i32
  }
}

module attributes {stable_mosaic.version = 11 : i64} {
  func.func @_fc_head_kernel(%arg0: i32, %arg1: memref<16x128xbf16, #tpu.memory_space<vmem>>, %arg2: memref<128x512xbf16, #tpu.memory_space<vmem>>, %arg3: memref<1x512xf32, #tpu.memory_space<vmem>>, %arg4: memref<512x128xbf16, #tpu.memory_space<vmem>>, %arg5: memref<1x128xf32, #tpu.memory_space<vmem>>, %arg6: memref<16x128xf32, #tpu.memory_space<vmem>>) attributes {dimension_semantics = [#tpu.dimension_semantics<parallel>], iteration_bounds = array<i64: 1>, scalar_prefetch = 0 : i64, scratch_operands = 0 : i64, tpu.core_type = #tpu.core_type<tc>, window_params = [{transform_indices = @transform_0, window_bounds = array<i64: 16, 128>}, {pipeline_mode = #tpu.pipeline_mode<synchronous>, transform_indices = @transform_1, window_bounds = array<i64: 128, 512>}, {pipeline_mode = #tpu.pipeline_mode<synchronous>, transform_indices = @transform_2, window_bounds = array<i64: 1, 512>}, {pipeline_mode = #tpu.pipeline_mode<synchronous>, transform_indices = @transform_3, window_bounds = array<i64: 512, 128>}, {pipeline_mode = #tpu.pipeline_mode<synchronous>, transform_indices = @transform_4, window_bounds = array<i64: 1, 128>}, {transform_indices = @transform_5, window_bounds = array<i64: 16, 128>}]} {
    %c0 = arith.constant 0 : index
    %c0_0 = arith.constant 0 : index
    %0 = vector.load %arg1[%c0, %c0_0] : memref<16x128xbf16, #tpu.memory_space<vmem>>, vector<16x128xbf16>
    %c0_1 = arith.constant 0 : index
    %c0_2 = arith.constant 0 : index
    %1 = vector.load %arg2[%c0_1, %c0_2] : memref<128x512xbf16, #tpu.memory_space<vmem>>, vector<128x512xbf16>
    %cst = arith.constant dense<0.000000e+00> : vector<16x512xf32>
    %2 = tpu.matmul %0, %1, %cst {dimension_numbers = #tpu.dot_dimension_numbers<[1], [0], [0], [1], [0, 0, 1, 1], [], []>} : vector<16x128xbf16>, vector<128x512xbf16>, vector<16x512xf32> -> vector<16x512xf32>
    %c0_3 = arith.constant 0 : index
    %c0_4 = arith.constant 0 : index
    %3 = vector.load %arg3[%c0_3, %c0_4] : memref<1x512xf32, #tpu.memory_space<vmem>>, vector<1x512xf32>
    %4 = vector.broadcast %3 : vector<1x512xf32> to vector<16x512xf32>
    %5 = arith.addf %2, %4 : vector<16x512xf32>
    %cst_5 = arith.constant 0.000000e+00 : f32
    %6 = vector.broadcast %cst_5 : f32 to vector<16x512xf32>
    %7 = arith.cmpf oge, %5, %6 : vector<16x512xf32>
    %cst_6 = arith.constant 0.00999999977 : f32
    %8 = vector.broadcast %cst_6 : f32 to vector<16x512xf32>
    %9 = arith.mulf %8, %5 : vector<16x512xf32>
    %10 = arith.select %7, %5, %9 : vector<16x512xi1>, vector<16x512xf32>
    %11 = arith.truncf %10 : vector<16x512xf32> to vector<16x512xbf16>
    %c0_7 = arith.constant 0 : index
    %c0_8 = arith.constant 0 : index
    %12 = vector.load %arg4[%c0_7, %c0_8] : memref<512x128xbf16, #tpu.memory_space<vmem>>, vector<512x128xbf16>
    %cst_9 = arith.constant dense<0.000000e+00> : vector<16x128xf32>
    %13 = tpu.matmul %11, %12, %cst_9 {dimension_numbers = #tpu.dot_dimension_numbers<[1], [0], [0], [1], [0, 0, 1, 1], [], []>} : vector<16x512xbf16>, vector<512x128xbf16>, vector<16x128xf32> -> vector<16x128xf32>
    %c0_10 = arith.constant 0 : index
    %c0_11 = arith.constant 0 : index
    %14 = vector.load %arg5[%c0_10, %c0_11] : memref<1x128xf32, #tpu.memory_space<vmem>>, vector<1x128xf32>
    %15 = vector.broadcast %14 : vector<1x128xf32> to vector<16x128xf32>
    %16 = arith.addf %13, %15 : vector<16x128xf32>
    %c0_12 = arith.constant 0 : index
    %c0_13 = arith.constant 0 : index
    %17 = vector.load %arg6[%c0_12, %c0_13] : memref<16x128xf32, #tpu.memory_space<vmem>>, vector<16x128xf32>
    tpu.vector_store %arg6[%c0_12, %c0_13], %16 {strides = array<i32>} : memref<16x128xf32, #tpu.memory_space<vmem>>, vector<16x128xf32>,
    return
  }
  func.func @transform_0(%arg0: i32) -> (i32, i32) {
    %c0_i32 = arith.constant 0 : i32
    %c0_i32_0 = arith.constant 0 : i32
    return %arg0, %c0_i32 : i32, i32
  }
  func.func @transform_1(%arg0: i32) -> (i32, i32) {
    %c0_i32 = arith.constant 0 : i32
    %c0_i32_0 = arith.constant 0 : i32
    %c0_i32_1 = arith.constant 0 : i32
    return %c0_i32, %c0_i32_0 : i32, i32
  }
  func.func @transform_2(%arg0: i32) -> (i32, i32) {
    %c0_i32 = arith.constant 0 : i32
    %c0_i32_0 = arith.constant 0 : i32
    %c0_i32_1 = arith.constant 0 : i32
    return %c0_i32, %c0_i32_0 : i32, i32
  }
  func.func @transform_3(%arg0: i32) -> (i32, i32) {
    %c0_i32 = arith.constant 0 : i32
    %c0_i32_0 = arith.constant 0 : i32
    %c0_i32_1 = arith.constant 0 : i32
    return %c0_i32, %c0_i32_0 : i32, i32
  }
  func.func @transform_4(%arg0: i32) -> (i32, i32) {
    %c0_i32 = arith.constant 0 : i32
    %c0_i32_0 = arith.constant 0 : i32
    %c0_i32_1 = arith.constant 0 : i32
    return %c0_i32, %c0_i32_0 : i32, i32
  }
  func.func @transform_5(%arg0: i32) -> (i32, i32) {
    %c0_i32 = arith.constant 0 : i32
    %c0_i32_0 = arith.constant 0 : i32
    return %arg0, %c0_i32 : i32, i32
  }
}

module attributes {stable_mosaic.version = 11 : i64} {
  func.func @_fc_head_kernel(%arg0: i32, %arg1: memref<16x128xbf16, #tpu.memory_space<vmem>>, %arg2: memref<128x512xbf16, #tpu.memory_space<vmem>>, %arg3: memref<1x512xf32, #tpu.memory_space<vmem>>, %arg4: memref<512x128xbf16, #tpu.memory_space<vmem>>, %arg5: memref<1x128xf32, #tpu.memory_space<vmem>>, %arg6: memref<16x128xf32, #tpu.memory_space<vmem>>) attributes {dimension_semantics = [#tpu.dimension_semantics<parallel>], iteration_bounds = array<i64: 1>, scalar_prefetch = 0 : i64, scratch_operands = 0 : i64, tpu.core_type = #tpu.core_type<tc>, window_params = [{transform_indices = @transform_0, window_bounds = array<i64: 16, 128>}, {pipeline_mode = #tpu.pipeline_mode<synchronous>, transform_indices = @transform_1, window_bounds = array<i64: 128, 512>}, {pipeline_mode = #tpu.pipeline_mode<synchronous>, transform_indices = @transform_2, window_bounds = array<i64: 1, 512>}, {pipeline_mode = #tpu.pipeline_mode<synchronous>, transform_indices = @transform_3, window_bounds = array<i64: 512, 128>}, {pipeline_mode = #tpu.pipeline_mode<synchronous>, transform_indices = @transform_4, window_bounds = array<i64: 1, 128>}, {transform_indices = @transform_5, window_bounds = array<i64: 16, 128>}]} {
    %c0 = arith.constant 0 : index
    %c0_0 = arith.constant 0 : index
    %0 = vector.load %arg1[%c0, %c0_0] : memref<16x128xbf16, #tpu.memory_space<vmem>>, vector<16x128xbf16>
    %c0_1 = arith.constant 0 : index
    %c0_2 = arith.constant 0 : index
    %1 = vector.load %arg2[%c0_1, %c0_2] : memref<128x512xbf16, #tpu.memory_space<vmem>>, vector<128x512xbf16>
    %cst = arith.constant dense<0.000000e+00> : vector<16x512xf32>
    %2 = tpu.matmul %0, %1, %cst {dimension_numbers = #tpu.dot_dimension_numbers<[1], [0], [0], [1], [0, 0, 1, 1], [], []>} : vector<16x128xbf16>, vector<128x512xbf16>, vector<16x512xf32> -> vector<16x512xf32>
    %c0_3 = arith.constant 0 : index
    %c0_4 = arith.constant 0 : index
    %3 = vector.load %arg3[%c0_3, %c0_4] : memref<1x512xf32, #tpu.memory_space<vmem>>, vector<1x512xf32>
    %4 = vector.broadcast %3 : vector<1x512xf32> to vector<16x512xf32>
    %5 = arith.addf %2, %4 : vector<16x512xf32>
    %cst_5 = arith.constant 0.000000e+00 : f32
    %6 = vector.broadcast %cst_5 : f32 to vector<16x512xf32>
    %7 = arith.cmpf oge, %5, %6 : vector<16x512xf32>
    %cst_6 = arith.constant 0.00999999977 : f32
    %8 = vector.broadcast %cst_6 : f32 to vector<16x512xf32>
    %9 = arith.mulf %8, %5 : vector<16x512xf32>
    %10 = arith.select %7, %5, %9 : vector<16x512xi1>, vector<16x512xf32>
    %11 = arith.truncf %10 : vector<16x512xf32> to vector<16x512xbf16>
    %c0_7 = arith.constant 0 : index
    %c0_8 = arith.constant 0 : index
    %12 = vector.load %arg4[%c0_7, %c0_8] : memref<512x128xbf16, #tpu.memory_space<vmem>>, vector<512x128xbf16>
    %cst_9 = arith.constant dense<0.000000e+00> : vector<16x128xf32>
    %13 = tpu.matmul %11, %12, %cst_9 {dimension_numbers = #tpu.dot_dimension_numbers<[1], [0], [0], [1], [0, 0, 1, 1], [], []>} : vector<16x512xbf16>, vector<512x128xbf16>, vector<16x128xf32> -> vector<16x128xf32>
    %c0_10 = arith.constant 0 : index
    %c0_11 = arith.constant 0 : index
    %14 = vector.load %arg5[%c0_10, %c0_11] : memref<1x128xf32, #tpu.memory_space<vmem>>, vector<1x128xf32>
    %15 = vector.broadcast %14 : vector<1x128xf32> to vector<16x128xf32>
    %16 = arith.addf %13, %15 : vector<16x128xf32>
    %17 = tpu.iota {dimensions = array<i32: 1>} : vector<16x128xi32>
    %c6_i32 = arith.constant 6 : i32
    %18 = vector.broadcast %c6_i32 : i32 to vector<16x128xi32>
    %19 = arith.cmpi slt, %17, %18 : vector<16x128xi32>
    %cst_12 = arith.constant 0xFF800000 : f32
    %20 = vector.broadcast %cst_12 : f32 to vector<16x128xf32>
    %21 = arith.select %19, %16, %20 : vector<16x128xi1>, vector<16x128xf32>
    %cst_13 = arith.constant dense<0xFF800000> : vector<16xf32>
    %22 = vector.multi_reduction <maximumf>, %21, %cst_13 [1] : vector<16x128xf32> to vector<16xf32>
    %23 = vector.shape_cast %22 : vector<16xf32> to vector<16x1xf32>
    %24 = vector.broadcast %23 : vector<16x1xf32> to vector<16x128xf32>
    %25 = arith.subf %21, %24 : vector<16x128xf32>
    %26 = math.exp %25 : vector<16x128xf32>
    %cst_14 = arith.constant 0.000000e+00 : f32
    %27 = vector.broadcast %cst_14 : f32 to vector<16x128xf32>
    %28 = arith.select %19, %26, %27 : vector<16x128xi1>, vector<16x128xf32>
    %cst_15 = arith.constant dense<0.000000e+00> : vector<16xf32>
    %29 = vector.multi_reduction <add>, %28, %cst_15 [1] : vector<16x128xf32> to vector<16xf32>
    %30 = vector.shape_cast %29 : vector<16xf32> to vector<16x1xf32>
    %31 = vector.broadcast %30 : vector<16x1xf32> to vector<16x128xf32>
    %32 = arith.divf %28, %31 : vector<16x128xf32>
    %c0_16 = arith.constant 0 : index
    %c0_17 = arith.constant 0 : index
    %33 = vector.load %arg6[%c0_16, %c0_17] : memref<16x128xf32, #tpu.memory_space<vmem>>, vector<16x128xf32>
    tpu.vector_store %arg6[%c0_16, %c0_17], %32 {strides = array<i32>} : memref<16x128xf32, #tpu.memory_space<vmem>>, vector<16x128xf32>,
    return
  }
  func.func @transform_0(%arg0: i32) -> (i32, i32) {
    %c0_i32 = arith.constant 0 : i32
    %c0_i32_0 = arith.constant 0 : i32
    return %arg0, %c0_i32 : i32, i32
  }
  func.func @transform_1(%arg0: i32) -> (i32, i32) {
    %c0_i32 = arith.constant 0 : i32
    %c0_i32_0 = arith.constant 0 : i32
    %c0_i32_1 = arith.constant 0 : i32
    return %c0_i32, %c0_i32_0 : i32, i32
  }
  func.func @transform_2(%arg0: i32) -> (i32, i32) {
    %c0_i32 = arith.constant 0 : i32
    %c0_i32_0 = arith.constant 0 : i32
    %c0_i32_1 = arith.constant 0 : i32
    return %c0_i32, %c0_i32_0 : i32, i32
  }
  func.func @transform_3(%arg0: i32) -> (i32, i32) {
    %c0_i32 = arith.constant 0 : i32
    %c0_i32_0 = arith.constant 0 : i32
    %c0_i32_1 = arith.constant 0 : i32
    return %c0_i32, %c0_i32_0 : i32, i32
  }
  func.func @transform_4(%arg0: i32) -> (i32, i32) {
    %c0_i32 = arith.constant 0 : i32
    %c0_i32_0 = arith.constant 0 : i32
    %c0_i32_1 = arith.constant 0 : i32
    return %c0_i32, %c0_i32_0 : i32, i32
  }
  func.func @transform_5(%arg0: i32) -> (i32, i32) {
    %c0_i32 = arith.constant 0 : i32
    %c0_i32_0 = arith.constant 0 : i32
    return %arg0, %c0_i32 : i32, i32
  }
}

</mosaic_0001>

<llo_original>
// kernel: actor_critic_forward.7
$region0: #{actor_critic_forward.7}
  #allocation0 [shape = 'u32[]', space=smem, size = 0x4, offset = 0x4, fixed_abs, tag = 'smem constant byte address 0x4 - core index']
  #allocation1 [shape = 'u32[72,128]{1,0:T(1,128)}', space=vmem, size = 0x9000, scoped, tag = 'internal scratch']
  #allocation2 [shape = 'f32[128,128]{1,0:T(8,128)}', space=vmem, size = 0x10000, scoped, tag = 'scratch operand']
  %s0 = inlined_call_operand.vmem [shape: bf16[128,256], index: 0, kind: input, shape index: {}]
  %s1 = inlined_call_operand.vmem [shape: bf16[256,128], index: 1, kind: input, shape index: {}]
  %s2 = inlined_call_operand.vmem [shape: f32[1,128], index: 2, kind: input, shape index: {}]
  %s3 = inlined_call_operand.vmem [shape: bf16[128,128], index: 3, kind: output, shape index: {}]
  %s4 = sld [smem:[#allocation0]]
  $region30: #{actor_critic_forward.7} parent=0
    _
  %s6 = ssub.s32 1, %s4
  %s7 = scalar_select 0, %s6, %s4
  // Predicated region
  $region2: #{actor_critic_forward.7} parent=0 // pred_check
    _
  $region3: #{actor_critic_forward.7} parent=0 // pred_check_branch
    %9 = sbr.rel (0) target = $region5
  $region4: #{actor_critic_forward.7} parent=0 // pred_region
    _
  $region5: #{actor_critic_forward.7} parent=0 // pred_fallthru
    _
  // Predicated region
  $region6: #{actor_critic_forward.7} parent=0 // pred_check
    _
  $region7: #{actor_critic_forward.7} parent=0 // pred_check_branch
    %11 = sbr.rel (0) target = $region9
  $region8: #{actor_critic_forward.7} parent=0 // pred_region
    _
  $region9: #{actor_critic_forward.7} parent=0 // pred_fallthru
    _
  // Predicated region
  $region10: #{actor_critic_forward.7} parent=0 // pred_check
    _
  $region11: #{actor_critic_forward.7} parent=0 // pred_check_branch
    %13 = sbr.rel (0) target = $region13
  $region12: #{actor_critic_forward.7} parent=0 // pred_region
    _
  $region13: #{actor_critic_forward.7} parent=0 // pred_fallthru
    _
  %p14 = scmp.eq.s32.totalorder 0, 0
  // Predicated region
  $region14: #{actor_critic_forward.7} parent=0 // pred_check
    %p15 = pneg %p14
  $region15: #{actor_critic_forward.7} parent=0 // pred_check_branch
    %17 = sbr.rel (%p15) target = $region17
  $region16: #{actor_critic_forward.7} parent=0 // pred_region
    %18 = vst [vmem:[#allocation2] sm:$0xff] 0.0
    %19 = vst [vmem:[#allocation2 + $0x8] sm:$0xff] 0.0
    %20 = vst [vmem:[#allocation2 + $0x10] sm:$0xff] 0.0
    %21 = vst [vmem:[#allocation2 + $0x18] sm:$0xff] 0.0
    %22 = vst [vmem:[#allocation2 + $0x20] sm:$0xff] 0.0
    %23 = vst [vmem:[#allocation2 + $0x28] sm:$0xff] 0.0
    %24 = vst [vmem:[#allocation2 + $0x30] sm:$0xff] 0.0
    %25 = vst [vmem:[#allocation2 + $0x38] sm:$0xff] 0.0
    %26 = vst [vmem:[#allocation2 + $0x40] sm:$0xff] 0.0
    %27 = vst [vmem:[#allocation2 + $0x48] sm:$0xff] 0.0
    %28 = vst [vmem:[#allocation2 + $0x50] sm:$0xff] 0.0
    %29 = vst [vmem:[#allocation2 + $0x58] sm:$0xff] 0.0
    %30 = vst [vmem:[#allocation2 + $0x60] sm:$0xff] 0.0
    %31 = vst [vmem:[#allocation2 + $0x68] sm:$0xff] 0.0
    %32 = vst [vmem:[#allocation2 + $0x70] sm:$0xff] 0.0
    %33 = vst [vmem:[#allocation2 + $0x78] sm:$0xff] 0.0
  $region17: #{actor_critic_forward.7} parent=0 // pred_fallthru
    _
  %v34 = vld [vmem:[#allocation2] sm:$0xff]
  %v35 = vld [vmem:[#allocation2 + $0x8] sm:$0xff]
  %v36 = vld [vmem:[#allocation2 + $0x10] sm:$0xff]
  %v37 = vld [vmem:[#allocation2 + $0x18] sm:$0xff]
  %v38 = vld [vmem:[#allocation2 + $0x20] sm:$0xff]
  %v39 = vld [vmem:[#allocation2 + $0x28] sm:$0xff]
  %v40 = vld [vmem:[#allocation2 + $0x30] sm:$0xff]
  %v41 = vld [vmem:[#allocation2 + $0x38] sm:$0xff]
  %v42 = vld [vmem:[#allocation2 + $0x40] sm:$0xff]
  %v43 = vld [vmem:[#allocation2 + $0x48] sm:$0xff]
  %v44 = vld [vmem:[#allocation2 + $0x50] sm:$0xff]
  %v45 = vld [vmem:[#allocation2 + $0x58] sm:$0xff]
  %v46 = vld [vmem:[#allocation2 + $0x60] sm:$0xff]
  %v47 = vld [vmem:[#allocation2 + $0x68] sm:$0xff]
  %v48 = vld [vmem:[#allocation2 + $0x70] sm:$0xff]
  %v49 = vld [vmem:[#allocation2 + $0x78] sm:$0xff]
  %v50 = vld [vmem:[%s0] sm:$0xff]
  %v51 = vld [vmem:[%s0 + $0x8] sm:$0xff]
  %v52 = vld [vmem:[%s0 + $0x10] sm:$0xff]
  %v53 = vld [vmem:[%s0 + $0x18] sm:$0xff]
  %v54 = vld [vmem:[%s0 + $0x20] sm:$0xff]
  %v55 = vld [vmem:[%s0 + $0x28] sm:$0xff]
  %v56 = vld [vmem:[%s0 + $0x30] sm:$0xff]
  %v57 = vld [vmem:[%s0 + $0x38] sm:$0xff]
  %v58 = vld [vmem:[%s0 + $0x40] sm:$0xff]
  %v59 = vld [vmem:[%s0 + $0x48] sm:$0xff]
  %v60 = vld [vmem:[%s0 + $0x50] sm:$0xff]
  %v61 = vld [vmem:[%s0 + $0x58] sm:$0xff]
  %v62 = vld [vmem:[%s0 + $0x60] sm:$0xff]
  %v63 = vld [vmem:[%s0 + $0x68] sm:$0xff]
  %v64 = vld [vmem:[%s0 + $0x70] sm:$0xff]
  %v65 = vld [vmem:[%s0 + $0x78] sm:$0xff]
  %v66 = vld [vmem:[%s1] sm:$0xf]
  %v67 = vld [vmem:[%s1 + $0x4] sm:$0xf]
  %v68 = vld [vmem:[%s1 + $0x8] sm:$0xf]
  %v69 = vld [vmem:[%s1 + $0xc] sm:$0xf]
  %v70 = vld [vmem:[%s1 + $0x10] sm:$0xf]
  %v71 = vld [vmem:[%s1 + $0x14] sm:$0xf]
  %v72 = vld [vmem:[%s1 + $0x18] sm:$0xf]
  %v73 = vld [vmem:[%s1 + $0x1c] sm:$0xf]
  %v74 = vld [vmem:[%s1 + $0x20] sm:$0xf]
  %v75 = vld [vmem:[%s1 + $0x24] sm:$0xf]
  %v76 = vld [vmem:[%s1 + $0x28] sm:$0xf]
  %v77 = vld [vmem:[%s1 + $0x2c] sm:$0xf]
  %v78 = vld [vmem:[%s1 + $0x30] sm:$0xf]
  %v79 = vld [vmem:[%s1 + $0x34] sm:$0xf]
  %v80 = vld [vmem:[%s1 + $0x38] sm:$0xf]
  %v81 = vld [vmem:[%s1 + $0x3c] sm:$0xf]
  %v82 = vld [vmem:[%s1 + $0x40] sm:$0xf]
  %v83 = vld [vmem:[%s1 + $0x44] sm:$0xf]
  %v84 = vld [vmem:[%s1 + $0x48] sm:$0xf]
  %v85 = vld [vmem:[%s1 + $0x4c] sm:$0xf]
  %v86 = vld [vmem:[%s1 + $0x50] sm:$0xf]
  %v87 = vld [vmem:[%s1 + $0x54] sm:$0xf]
  %v88 = vld [vmem:[%s1 + $0x58] sm:$0xf]
  %v89 = vld [vmem:[%s1 + $0x5c] sm:$0xf]
  %v90 = vld [vmem:[%s1 + $0x60] sm:$0xf]
  %v91 = vld [vmem:[%s1 + $0x64] sm:$0xf]
  %v92 = vld [vmem:[%s1 + $0x68] sm:$0xf]
  %v93 = vld [vmem:[%s1 + $0x6c] sm:$0xf]
  %v94 = vld [vmem:[%s1 + $0x70] sm:$0xf]
  %v95 = vld [vmem:[%s1 + $0x74] sm:$0xf]
  %v96 = vld [vmem:[%s1 + $0x78] sm:$0xf]
  %v97 = vld [vmem:[%s1 + $0x7c] sm:$0xf]
  %v114 = vunpack.c.l.b16 %v50
  %v115 = vunpack.c.h.b16 %v50
  %v116 = vunpack.c.l.b16 %v51
  %v117 = vunpack.c.h.b16 %v51
  %v118 = vunpack.c.l.b16 %v52
  %v119 = vunpack.c.h.b16 %v52
  %v120 = vunpack.c.l.b16 %v53
  %v121 = vunpack.c.h.b16 %v53
  %v122 = vunpack.c.l.b16 %v54
  %v123 = vunpack.c.h.b16 %v54
  %v124 = vunpack.c.l.b16 %v55
  %v125 = vunpack.c.h.b16 %v55
  %v126 = vunpack.c.l.b16 %v56
  %v127 = vunpack.c.h.b16 %v56
  %v128 = vunpack.c.l.b16 %v57
  %v129 = vunpack.c.h.b16 %v57
  %v130 = vunpack.c.l.b16 %v58
  %v131 = vunpack.c.h.b16 %v58
  %v132 = vunpack.c.l.b16 %v59
  %v133 = vunpack.c.h.b16 %v59
  %v134 = vunpack.c.l.b16 %v60
  %v135 = vunpack.c.h.b16 %v60
  %v136 = vunpack.c.l.b16 %v61
  %v137 = vunpack.c.h.b16 %v61
  %v138 = vunpack.c.l.b16 %v62
  %v139 = vunpack.c.h.b16 %v62
  %v140 = vunpack.c.l.b16 %v63
  %v141 = vunpack.c.h.b16 %v63
  %v142 = vunpack.c.l.b16 %v64
  %v143 = vunpack.c.h.b16 %v64
  %v144 = vunpack.c.l.b16 %v65
  %v145 = vunpack.c.h.b16 %v65
  %v146 = vpack.c.b16 %v116, %v114
  %v147 = vpack.c.b16 %v117, %v115
  %v148 = vpack.c.b16 %v120, %v118
  %v149 = vpack.c.b16 %v121, %v119
  %v150 = vpack.c.b16 %v124, %v122
  %v151 = vpack.c.b16 %v125, %v123
  %v152 = vpack.c.b16 %v128, %v126
  %v153 = vpack.c.b16 %v129, %v127
  %v154 = vpack.c.b16 %v132, %v130
  %v155 = vpack.c.b16 %v133, %v131
  %v156 = vpack.c.b16 %v136, %v134
  %v157 = vpack.c.b16 %v137, %v135
  %v158 = vpack.c.b16 %v140, %v138
  %v159 = vpack.c.b16 %v141, %v139
  %v160 = vpack.c.b16 %v144, %v142
  %v161 = vpack.c.b16 %v145, %v143
  %v210 = vunpack.c.l.b16 %v66
  %v211 = vunpack.c.l.b16 %v67
  %v212 = vunpack.c.l.b16 %v68
  %v213 = vunpack.c.l.b16 %v69
  %v214 = vunpack.c.l.b16 %v70
  %v215 = vunpack.c.l.b16 %v71
  %v216 = vunpack.c.l.b16 %v72
  %v217 = vunpack.c.l.b16 %v73
  %v218 = vunpack.c.l.b16 %v74
  %v219 = vunpack.c.l.b16 %v75
  %v220 = vunpack.c.l.b16 %v76
  %v221 = vunpack.c.l.b16 %v77
  %v222 = vunpack.c.l.b16 %v78
  %v223 = vunpack.c.l.b16 %v79
  %v224 = vunpack.c.l.b16 %v80
  %v225 = vunpack.c.l.b16 %v81
  %v226 = vunpack.c.l.b16 %v82
  %v227 = vunpack.c.l.b16 %v83
  %v228 = vunpack.c.l.b16 %v84
  %v229 = vunpack.c.l.b16 %v85
  %v230 = vunpack.c.l.b16 %v86
  %v231 = vunpack.c.l.b16 %v87
  %v232 = vunpack.c.l.b16 %v88
  %v233 = vunpack.c.l.b16 %v89
  %v234 = vunpack.c.l.b16 %v90
  %v235 = vunpack.c.l.b16 %v91
  %v236 = vunpack.c.l.b16 %v92
  %v237 = vunpack.c.l.b16 %v93
  %v238 = vunpack.c.l.b16 %v94
  %v239 = vunpack.c.l.b16 %v95
  %v240 = vunpack.c.l.b16 %v96
  %v241 = vunpack.c.l.b16 %v97
  %v242 = vpack.c.b16 %v211, %v210
  %v243 = vpack.c.b16 %v213, %v212
  %v244 = vpack.c.b16 %v215, %v214
  %v245 = vpack.c.b16 %v217, %v216
  %v246 = vpack.c.b16 %v219, %v218
  %v247 = vpack.c.b16 %v221, %v220
  %v248 = vpack.c.b16 %v223, %v222
  %v249 = vpack.c.b16 %v225, %v224
  %v250 = vpack.c.b16 %v227, %v226
  %v251 = vpack.c.b16 %v229, %v228
  %v252 = vpack.c.b16 %v231, %v230
  %v253 = vpack.c.b16 %v233, %v232
  %v254 = vpack.c.b16 %v235, %v234
  %v255 = vpack.c.b16 %v237, %v236
  %v256 = vpack.c.b16 %v239, %v238
  %v257 = vpack.c.b16 %v241, %v240
  %274 = vmatpush.bf16.msra.mxu0 %v249
  %275 = vmatpush.bf16.msra.mxu0 %v248
  %276 = vmatpush.bf16.msra.mxu0 %v247
  %277 = vmatpush.bf16.msra.mxu0 %v246
  %278 = vmatpush.bf16.msra.mxu0 %v245
  %279 = vmatpush.bf16.msra.mxu0 %v244
  %280 = vmatpush.bf16.msra.mxu0 %v243
  %281 = vmatpush.bf16.msra.mxu0 %v242
  %282 = vmatmul.bf16.gmra.mxu0 %v146
  %v283 = vpop.f32.mrf.mxu0
  %v284 = vadd.f32 0.0, %v283
  %v285 = vpop.f32.mrf.mxu0
  %v286 = vadd.f32 0.0, %v285
  %287 = vmatmul.bf16.gmra.mxu0 %v148
  %v288 = vpop.f32.mrf.mxu0
  %v289 = vadd.f32 0.0, %v288
  %v290 = vpop.f32.mrf.mxu0
  %v291 = vadd.f32 0.0, %v290
  %292 = vmatmul.bf16.gmra.mxu0 %v150
  %v293 = vpop.f32.mrf.mxu0
  %v294 = vadd.f32 0.0, %v293
  %v295 = vpop.f32.mrf.mxu0
  %v296 = vadd.f32 0.0, %v295
  %297 = vmatmul.bf16.gmra.mxu0 %v152
  %v298 = vpop.f32.mrf.mxu0
  %v299 = vadd.f32 0.0, %v298
  %v300 = vpop.f32.mrf.mxu0
  %v301 = vadd.f32 0.0, %v300
  %302 = vmatmul.bf16.gmra.mxu0 %v154
  %v303 = vpop.f32.mrf.mxu0
  %v304 = vadd.f32 0.0, %v303
  %v305 = vpop.f32.mrf.mxu0
  %v306 = vadd.f32 0.0, %v305
  %307 = vmatmul.bf16.gmra.mxu0 %v156
  %v308 = vpop.f32.mrf.mxu0
  %v309 = vadd.f32 0.0, %v308
  %v310 = vpop.f32.mrf.mxu0
  %v311 = vadd.f32 0.0, %v310
  %312 = vmatmul.bf16.gmra.mxu0 %v158
  %v313 = vpop.f32.mrf.mxu0
  %v314 = vadd.f32 0.0, %v313
  %v315 = vpop.f32.mrf.mxu0
  %v316 = vadd.f32 0.0, %v315
  %317 = vmatmul.bf16.gmra.mxu0 %v160
  %v318 = vpop.f32.mrf.mxu0
  %v319 = vadd.f32 0.0, %v318
  %v320 = vpop.f32.mrf.mxu0
  %v321 = vadd.f32 0.0, %v320
  %322 = vdwg.mxu0
  %323 = vmatpush.bf16.msra.mxu0 %v257
  %324 = vmatpush.bf16.msra.mxu0 %v256
  %325 = vmatpush.bf16.msra.mxu0 %v255
  %326 = vmatpush.bf16.msra.mxu0 %v254
  %327 = vmatpush.bf16.msra.mxu0 %v253
  %328 = vmatpush.bf16.msra.mxu0 %v252
  %329 = vmatpush.bf16.msra.mxu0 %v251
  %330 = vmatpush.bf16.msra.mxu0 %v250
  %331 = vmatmul.bf16.gmra.mxu0 %v147
  %v332 = vpop.f32.mrf.mxu0
  %v333 = vadd.f32 %v284, %v332
  %v334 = vpop.f32.mrf.mxu0
  %v335 = vadd.f32 %v286, %v334
  %336 = vmatmul.bf16.gmra.mxu0 %v149
  %v337 = vpop.f32.mrf.mxu0
  %v338 = vadd.f32 %v289, %v337
  %v339 = vpop.f32.mrf.mxu0
  %v340 = vadd.f32 %v291, %v339
  %341 = vmatmul.bf16.gmra.mxu0 %v151
  %v342 = vpop.f32.mrf.mxu0
  %v343 = vadd.f32 %v294, %v342
  %v344 = vpop.f32.mrf.mxu0
  %v345 = vadd.f32 %v296, %v344
  %346 = vmatmul.bf16.gmra.mxu0 %v153
  %v347 = vpop.f32.mrf.mxu0
  %v348 = vadd.f32 %v299, %v347
  %v349 = vpop.f32.mrf.mxu0
  %v350 = vadd.f32 %v301, %v349
  %351 = vmatmul.bf16.gmra.mxu0 %v155
  %v352 = vpop.f32.mrf.mxu0
  %v353 = vadd.f32 %v304, %v352
  %v354 = vpop.f32.mrf.mxu0
  %v355 = vadd.f32 %v306, %v354
  %356 = vmatmul.bf16.gmra.mxu0 %v157
  %v357 = vpop.f32.mrf.mxu0
  %v358 = vadd.f32 %v309, %v357
  %v359 = vpop.f32.mrf.mxu0
  %v360 = vadd.f32 %v311, %v359
  %361 = vmatmul.bf16.gmra.mxu0 %v159
  %v362 = vpop.f32.mrf.mxu0
  %v363 = vadd.f32 %v314, %v362
  %v364 = vpop.f32.mrf.mxu0
  %v365 = vadd.f32 %v316, %v364
  %366 = vmatmul.bf16.gmra.mxu0 %v161
  %v367 = vpop.f32.mrf.mxu0
  %v368 = vadd.f32 %v319, %v367
  %v369 = vpop.f32.mrf.mxu0
  %v370 = vadd.f32 %v321, %v369
  %371 = vdwg.mxu0
  %v372 = vadd.f32 %v34, %v333
  %v373 = vadd.f32 %v35, %v335
  %v374 = vadd.f32 %v36, %v338
  %v375 = vadd.f32 %v37, %v340
  %v376 = vadd.f32 %v38, %v343
  %v377 = vadd.f32 %v39, %v345
  %v378 = vadd.f32 %v40, %v348
  %v379 = vadd.f32 %v41, %v350
  %v380 = vadd.f32 %v42, %v353
  %v381 = vadd.f32 %v43, %v355
  %v382 = vadd.f32 %v44, %v358
  %v383 = vadd.f32 %v45, %v360
  %v384 = vadd.f32 %v46, %v363
  %v385 = vadd.f32 %v47, %v365
  %v386 = vadd.f32 %v48, %v368
  %v387 = vadd.f32 %v49, %v370
  %388 = vst [vmem:[#allocation2] sm:$0xff] %v372
  %389 = vst [vmem:[#allocation2 + $0x8] sm:$0xff] %v373
  %390 = vst [vmem:[#allocation2 + $0x10] sm:$0xff] %v374
  %391 = vst [vmem:[#allocation2 + $0x18] sm:$0xff] %v375
  %392 = vst [vmem:[#allocation2 + $0x20] sm:$0xff] %v376
  %393 = vst [vmem:[#allocation2 + $0x28] sm:$0xff] %v377
  %394 = vst [vmem:[#allocation2 + $0x30] sm:$0xff] %v378
  %395 = vst [vmem:[#allocation2 + $0x38] sm:$0xff] %v379
  %396 = vst [vmem:[#allocation2 + $0x40] sm:$0xff] %v380
  %397 = vst [vmem:[#allocation2 + $0x48] sm:$0xff] %v381
  %398 = vst [vmem:[#allocation2 + $0x50] sm:$0xff] %v382
  %399 = vst [vmem:[#allocation2 + $0x58] sm:$0xff] %v383
  %400 = vst [vmem:[#allocation2 + $0x60] sm:$0xff] %v384
  %401 = vst [vmem:[#allocation2 + $0x68] sm:$0xff] %v385
  %402 = vst [vmem:[#allocation2 + $0x70] sm:$0xff] %v386
  %403 = vst [vmem:[#allocation2 + $0x78] sm:$0xff] %v387
  // Predicated region
  $region18: #{actor_critic_forward.7} parent=0 // pred_check
    %p404 = pneg %p14
  $region19: #{actor_critic_forward.7} parent=0 // pred_check_branch
    %406 = sbr.rel (%p404) target = $region21
  $region20: #{actor_critic_forward.7} parent=0 // pred_region
    %v407 = vld [vmem:[#allocation2] sm:$0xff]
    %v408 = vld [vmem:[#allocation2 + $0x8] sm:$0xff]
    %v409 = vld [vmem:[#allocation2 + $0x10] sm:$0xff]
    %v410 = vld [vmem:[#allocation2 + $0x18] sm:$0xff]
    %v411 = vld [vmem:[#allocation2 + $0x20] sm:$0xff]
    %v412 = vld [vmem:[#allocation2 + $0x28] sm:$0xff]
    %v413 = vld [vmem:[#allocation2 + $0x30] sm:$0xff]
    %v414 = vld [vmem:[#allocation2 + $0x38] sm:$0xff]
    %v415 = vld [vmem:[#allocation2 + $0x40] sm:$0xff]
    %v416 = vld [vmem:[#allocation2 + $0x48] sm:$0xff]
    %v417 = vld [vmem:[#allocation2 + $0x50] sm:$0xff]
    %v418 = vld [vmem:[#allocation2 + $0x58] sm:$0xff]
    %v419 = vld [vmem:[#allocation2 + $0x60] sm:$0xff]
    %v420 = vld [vmem:[#allocation2 + $0x68] sm:$0xff]
    %v421 = vld [vmem:[#allocation2 + $0x70] sm:$0xff]
    %v422 = vld [vmem:[#allocation2 + $0x78] sm:$0xff]
    %v423 = vld [vmem:[%s2] sm:$0x1]
    %v425 = vperm.slane %v423, 0
    %v427 = vadd.f32 %v407, %v425
    %v428 = vadd.f32 %v408, %v425
    %v429 = vadd.f32 %v409, %v425
    %v430 = vadd.f32 %v410, %v425
    %v431 = vadd.f32 %v411, %v425
    %v432 = vadd.f32 %v412, %v425
    %v433 = vadd.f32 %v413, %v425
    %v434 = vadd.f32 %v414, %v425
    %v435 = vadd.f32 %v415, %v425
    %v436 = vadd.f32 %v416, %v425
    %v437 = vadd.f32 %v417, %v425
    %v438 = vadd.f32 %v418, %v425
    %v439 = vadd.f32 %v419, %v425
    %v440 = vadd.f32 %v420, %v425
    %v441 = vadd.f32 %v421, %v425
    %v442 = vadd.f32 %v422, %v425
    %v443 = vmul.f32 %v427, 0.5
    %v444 = vmul.f32 %v428, 0.5
    %v445 = vmul.f32 %v429, 0.5
    %v446 = vmul.f32 %v430, 0.5
    %v447 = vmul.f32 %v431, 0.5
    %v448 = vmul.f32 %v432, 0.5
    %v449 = vmul.f32 %v433, 0.5
    %v450 = vmul.f32 %v434, 0.5
    %v451 = vmul.f32 %v435, 0.5
    %v452 = vmul.f32 %v436, 0.5
    %v453 = vmul.f32 %v437, 0.5
    %v454 = vmul.f32 %v438, 0.5
    %v455 = vmul.f32 %v439, 0.5
    %v456 = vmul.f32 %v440, 0.5
    %v457 = vmul.f32 %v441, 0.5
    %v458 = vmul.f32 %v442, 0.5
    %v459 = vmul.f32 %v427, 0.70710677
    %v460 = vmul.f32 %v428, 0.70710677
    %v461 = vmul.f32 %v429, 0.70710677
    %v462 = vmul.f32 %v430, 0.70710677
    %v463 = vmul.f32 %v431, 0.70710677
    %v464 = vmul.f32 %v432, 0.70710677
    %v465 = vmul.f32 %v433, 0.70710677
    %v466 = vmul.f32 %v434, 0.70710677
    %v467 = vmul.f32 %v435, 0.70710677
    %v468 = vmul.f32 %v436, 0.70710677
    %v469 = vmul.f32 %v437, 0.70710677
    %v470 = vmul.f32 %v438, 0.70710677
    %v471 = vmul.f32 %v439, 0.70710677
    %v472 = vmul.f32 %v440, 0.70710677
    %v473 = vmul.f32 %v441, 0.70710677
    %v474 = vmul.f32 %v442, 0.70710677
    %v475 = vmul.f32 %v459, %v459
    %v476 = vmin.f32 16.0, %v475
    %v477 = vmul.f32 %v476, 2.1237322e-06
    %v478 = vadd.f32 %v477, 0.00028619796
    %v479 = vmul.f32 %v476, %v478
    %v480 = vadd.f32 %v479, 0.0036580483
    %v481 = vmul.f32 %v476, %v480
    %v482 = vadd.f32 %v481, 0.05243302
    %v483 = vmul.f32 %v476, %v482
    %v484 = vadd.f32 %v483, 0.18741608
    %v485 = vmul.f32 %v476, %v484
    %v486 = vadd.f32 %v485, 1.1283791
    %v487 = vmul.f32 %v459, %v486
    %v488 = vmul.f32 %v476, 3.8918573e-05
    %v489 = vadd.f32 %v488, 0.001143296
    %v490 = vmul.f32 %v476, %v489
    %v491 = vadd.f32 %v490, 0.014752088
    %v492 = vmul.f32 %v476, %v491
    %v493 = vadd.f32 %v492, 0.112945676
    %v494 = vmul.f32 %v476, %v493
    %v495 = vadd.f32 %v494, 0.4994258
    %v496 = vmul.f32 %v476, %v495
    %v497 = vadd.f32 %v496, 1.0
    %v498 = vrcp.pop %v497
    %v499 = vmul.f32 %v497, %v498
    %v500 = vsub.f32 1.0, %v499
    %v501 = vmul.f32 %v498, %v500
    %v502 = vadd.f32 %v498, %v501
    %vm503 = vweird.f32 %v497
    %vm504 = vweird.f32 %v498
    %vm505 = vmor %vm503, %vm504
    %v506 = vsel %vm505, %v498, %v502
    %v507 = vand.u32 2147483647, %v497
    %vm508 = vcmp.eq.f32.partialorder %v507, 8.507059e+37
    %v509 = vand.u32 %v497, 2147483648
    %v510 = vor.u32 1.1754944e-38, %v509
    %v511 = vsel %vm508, %v510, %v506
    %v512 = vmul.f32 %v487, %v511
    %v513 = vmin.f32 %v512, 1.0
    %v514 = vmax.f32 %v513, -1.0
    %v515 = vmul.f32 %v460, %v460
    %v516 = vmin.f32 16.0, %v515
    %v517 = vmul.f32 %v516, 2.1237322e-06
    %v518 = vadd.f32 %v517, 0.00028619796
    %v519 = vmul.f32 %v516, %v518
    %v520 = vadd.f32 %v519, 0.0036580483
    %v521 = vmul.f32 %v516, %v520
    %v522 = vadd.f32 %v521, 0.05243302
    %v523 = vmul.f32 %v516, %v522
    %v524 = vadd.f32 %v523, 0.18741608
    %v525 = vmul.f32 %v516, %v524
    %v526 = vadd.f32 %v525, 1.1283791
    %v527 = vmul.f32 %v460, %v526
    %v528 = vmul.f32 %v516, 3.8918573e-05
    %v529 = vadd.f32 %v528, 0.001143296
    %v530 = vmul.f32 %v516, %v529
    %v531 = vadd.f32 %v530, 0.014752088
    %v532 = vmul.f32 %v516, %v531
    %v533 = vadd.f32 %v532, 0.112945676
    %v534 = vmul.f32 %v516, %v533
    %v535 = vadd.f32 %v534, 0.4994258
    %v536 = vmul.f32 %v516, %v535
    %v537 = vadd.f32 %v536, 1.0
    %v538 = vrcp.pop %v537
    %v539 = vmul.f32 %v537, %v538
    %v540 = vsub.f32 1.0, %v539
    %v541 = vmul.f32 %v538, %v540
    %v542 = vadd.f32 %v538, %v541
    %vm543 = vweird.f32 %v537
    %vm544 = vweird.f32 %v538
    %vm545 = vmor %vm543, %vm544
    %v546 = vsel %vm545, %v538, %v542
    %v547 = vand.u32 2147483647, %v537
    %vm548 = vcmp.eq.f32.partialorder %v547, 8.507059e+37
    %v549 = vand.u32 %v537, 2147483648
    %v550 = vor.u32 1.1754944e-38, %v549
    %v551 = vsel %vm548, %v550, %v546
    %v552 = vmul.f32 %v527, %v551
    %v553 = vmin.f32 %v552, 1.0
    %v554 = vmax.f32 %v553, -1.0
    %v555 = vmul.f32 %v461, %v461
    %v556 = vmin.f32 16.0, %v555
    %v557 = vmul.f32 %v556, 2.1237322e-06
    %v558 = vadd.f32 %v557, 0.00028619796
    %v559 = vmul.f32 %v556, %v558
    %v560 = vadd.f32 %v559, 0.0036580483
    %v561 = vmul.f32 %v556, %v560
    %v562 = vadd.f32 %v561, 0.05243302
    %v563 = vmul.f32 %v556, %v562
    %v564 = vadd.f32 %v563, 0.18741608
    %v565 = vmul.f32 %v556, %v564
    %v566 = vadd.f32 %v565, 1.1283791
    %v567 = vmul.f32 %v461, %v566
    %v568 = vmul.f32 %v556, 3.8918573e-05
    %v569 = vadd.f32 %v568, 0.001143296
    %v570 = vmul.f32 %v556, %v569
    %v571 = vadd.f32 %v570, 0.014752088
    %v572 = vmul.f32 %v556, %v571
    %v573 = vadd.f32 %v572, 0.112945676
    %v574 = vmul.f32 %v556, %v573
    %v575 = vadd.f32 %v574, 0.4994258
    %v576 = vmul.f32 %v556, %v575
    %v577 = vadd.f32 %v576, 1.0
    %v578 = vrcp.pop %v577
    %v579 = vmul.f32 %v577, %v578
    %v580 = vsub.f32 1.0, %v579
    %v581 = vmul.f32 %v578, %v580
    %v582 = vadd.f32 %v578, %v581
    %vm583 = vweird.f32 %v577
    %vm584 = vweird.f32 %v578
    %vm585 = vmor %vm583, %vm584
    %v586 = vsel %vm585, %v578, %v582
    %v587 = vand.u32 2147483647, %v577
    %vm588 = vcmp.eq.f32.partialorder %v587, 8.507059e+37
    %v589 = vand.u32 %v577, 2147483648
    %v590 = vor.u32 1.1754944e-38, %v589
    %v591 = vsel %vm588, %v590, %v586
    %v592 = vmul.f32 %v567, %v591
    %v593 = vmin.f32 %v592, 1.0
    %v594 = vmax.f32 %v593, -1.0
    %v595 = vmul.f32 %v462, %v462
    %v596 = vmin.f32 16.0, %v595
    %v597 = vmul.f32 %v596, 2.1237322e-06
    %v598 = vadd.f32 %v597, 0.00028619796
    %v599 = vmul.f32 %v596, %v598
    %v600 = vadd.f32 %v599, 0.0036580483
    %v601 = vmul.f32 %v596, %v600
    %v602 = vadd.f32 %v601, 0.05243302
    %v603 = vmul.f32 %v596, %v602
    %v604 = vadd.f32 %v603, 0.18741608
    %v605 = vmul.f32 %v596, %v604
    %v606 = vadd.f32 %v605, 1.1283791
    %v607 = vmul.f32 %v462, %v606
    %v608 = vmul.f32 %v596, 3.8918573e-05
    %v609 = vadd.f32 %v608, 0.001143296
    %v610 = vmul.f32 %v596, %v609
    %v611 = vadd.f32 %v610, 0.014752088
    %v612 = vmul.f32 %v596, %v611
    %v613 = vadd.f32 %v612, 0.112945676
    %v614 = vmul.f32 %v596, %v613
    %v615 = vadd.f32 %v614, 0.4994258
    %v616 = vmul.f32 %v596, %v615
    %v617 = vadd.f32 %v616, 1.0
    %v618 = vrcp.pop %v617
    %v619 = vmul.f32 %v617, %v618
    %v620 = vsub.f32 1.0, %v619
    %v621 = vmul.f32 %v618, %v620
    %v622 = vadd.f32 %v618, %v621
    %vm623 = vweird.f32 %v617
    %vm624 = vweird.f32 %v618
    %vm625 = vmor %vm623, %vm624
    %v626 = vsel %vm625, %v618, %v622
    %v627 = vand.u32 2147483647, %v617
    %vm628 = vcmp.eq.f32.partialorder %v627, 8.507059e+37
    %v629 = vand.u32 %v617, 2147483648
    %v630 = vor.u32 1.1754944e-38, %v629
    %v631 = vsel %vm628, %v630, %v626
    %v632 = vmul.f32 %v607, %v631
    %v633 = vmin.f32 %v632, 1.0
    %v634 = vmax.f32 %v633, -1.0
    %v635 = vmul.f32 %v463, %v463
    %v636 = vmin.f32 16.0, %v635
    %v637 = vmul.f32 %v636, 2.1237322e-06
    %v638 = vadd.f32 %v637, 0.00028619796
    %v639 = vmul.f32 %v636, %v638
    %v640 = vadd.f32 %v639, 0.0036580483
    %v641 = vmul.f32 %v636, %v640
    %v642 = vadd.f32 %v641, 0.05243302
    %v643 = vmul.f32 %v636, %v642
    %v644 = vadd.f32 %v643, 0.18741608
    %v645 = vmul.f32 %v636, %v644
    %v646 = vadd.f32 %v645, 1.1283791
    %v647 = vmul.f32 %v463, %v646
    %v648 = vmul.f32 %v636, 3.8918573e-05
    %v649 = vadd.f32 %v648, 0.001143296
    %v650 = vmul.f32 %v636, %v649
    %v651 = vadd.f32 %v650, 0.014752088
    %v652 = vmul.f32 %v636, %v651
    %v653 = vadd.f32 %v652, 0.112945676
    %v654 = vmul.f32 %v636, %v653
    %v655 = vadd.f32 %v654, 0.4994258
    %v656 = vmul.f32 %v636, %v655
    %v657 = vadd.f32 %v656, 1.0
    %v658 = vrcp.pop %v657
    %v659 = vmul.f32 %v657, %v658
    %v660 = vsub.f32 1.0, %v659
    %v661 = vmul.f32 %v658, %v660
    %v662 = vadd.f32 %v658, %v661
    %vm663 = vweird.f32 %v657
    %vm664 = vweird.f32 %v658
    %vm665 = vmor %vm663, %vm664
    %v666 = vsel %vm665, %v658, %v662
    %v667 = vand.u32 2147483647, %v657
    %vm668 = vcmp.eq.f32.partialorder %v667, 8.507059e+37
    %v669 = vand.u32 %v657, 2147483648
    %v670 = vor.u32 1.1754944e-38, %v669
    %v671 = vsel %vm668, %v670, %v666
    %v672 = vmul.f32 %v647, %v671
    %v673 = vmin.f32 %v672, 1.0
    %v674 = vmax.f32 %v673, -1.0
    %v675 = vmul.f32 %v464, %v464
    %v676 = vmin.f32 16.0, %v675
    %v677 = vmul.f32 %v676, 2.1237322e-06
    %v678 = vadd.f32 %v677, 0.00028619796
    %v679 = vmul.f32 %v676, %v678
    %v680 = vadd.f32 %v679, 0.0036580483
    %v681 = vmul.f32 %v676, %v680
    %v682 = vadd.f32 %v681, 0.05243302
    %v683 = vmul.f32 %v676, %v682
    %v684 = vadd.f32 %v683, 0.18741608
    %v685 = vmul.f32 %v676, %v684
    %v686 = vadd.f32 %v685, 1.1283791
    %v687 = vmul.f32 %v464, %v686
    %v688 = vmul.f32 %v676, 3.8918573e-05
    %v689 = vadd.f32 %v688, 0.001143296
    %v690 = vmul.f32 %v676, %v689
    %v691 = vadd.f32 %v690, 0.014752088
    %v692 = vmul.f32 %v676, %v691
    %v693 = vadd.f32 %v692, 0.112945676
    %v694 = vmul.f32 %v676, %v693
    %v695 = vadd.f32 %v694, 0.4994258
    %v696 = vmul.f32 %v676, %v695
    %v697 = vadd.f32 %v696, 1.0
    %v698 = vrcp.pop %v697
    %v699 = vmul.f32 %v697, %v698
    %v700 = vsub.f32 1.0, %v699
    %v701 = vmul.f32 %v698, %v700
    %v702 = vadd.f32 %v698, %v701
    %vm703 = vweird.f32 %v697
    %vm704 = vweird.f32 %v698
    %vm705 = vmor %vm703, %vm704
    %v706 = vsel %vm705, %v698, %v702
    %v707 = vand.u32 2147483647, %v697
    %vm708 = vcmp.eq.f32.partialorder %v707, 8.507059e+37
    %v709 = vand.u32 %v697, 2147483648
    %v710 = vor.u32 1.1754944e-38, %v709
    %v711 = vsel %vm708, %v710, %v706
    %v712 = vmul.f32 %v687, %v711
    %v713 = vmin.f32 %v712, 1.0
    %v714 = vmax.f32 %v713, -1.0
    %v715 = vmul.f32 %v465, %v465
    %v716 = vmin.f32 16.0, %v715
    %v717 = vmul.f32 %v716, 2.1237322e-06
    %v718 = vadd.f32 %v717, 0.00028619796
    %v719 = vmul.f32 %v716, %v718
    %v720 = vadd.f32 %v719, 0.0036580483
    %v721 = vmul.f32 %v716, %v720
    %v722 = vadd.f32 %v721, 0.05243302
    %v723 = vmul.f32 %v716, %v722
    %v724 = vadd.f32 %v723, 0.18741608
    %v725 = vmul.f32 %v716, %v724
    %v726 = vadd.f32 %v725, 1.1283791
    %v727 = vmul.f32 %v465, %v726
    %v728 = vmul.f32 %v716, 3.8918573e-05
    %v729 = vadd.f32 %v728, 0.001143296
    %v730 = vmul.f32 %v716, %v729
    %v731 = vadd.f32 %v730, 0.014752088
    %v732 = vmul.f32 %v716, %v731
    %v733 = vadd.f32 %v732, 0.112945676
    %v734 = vmul.f32 %v716, %v733
    %v735 = vadd.f32 %v734, 0.4994258
    %v736 = vmul.f32 %v716, %v735
    %v737 = vadd.f32 %v736, 1.0
    %v738 = vrcp.pop %v737
    %v739 = vmul.f32 %v737, %v738
    %v740 = vsub.f32 1.0, %v739
    %v741 = vmul.f32 %v738, %v740
    %v742 = vadd.f32 %v738, %v741
    %vm743 = vweird.f32 %v737
    %vm744 = vweird.f32 %v738
    %vm745 = vmor %vm743, %vm744
    %v746 = vsel %vm745, %v738, %v742
    %v747 = vand.u32 2147483647, %v737
    %vm748 = vcmp.eq.f32.partialorder %v747, 8.507059e+37
    %v749 = vand.u32 %v737, 2147483648
    %v750 = vor.u32 1.1754944e-38, %v749
    %v751 = vsel %vm748, %v750, %v746
    %v752 = vmul.f32 %v727, %v751
    %v753 = vmin.f32 %v752, 1.0
    %v754 = vmax.f32 %v753, -1.0
    %v755 = vmul.f32 %v466, %v466
    %v756 = vmin.f32 16.0, %v755
    %v757 = vmul.f32 %v756, 2.1237322e-06
    %v758 = vadd.f32 %v757, 0.00028619796
    %v759 = vmul.f32 %v756, %v758
    %v760 = vadd.f32 %v759, 0.0036580483
    %v761 = vmul.f32 %v756, %v760
    %v762 = vadd.f32 %v761, 0.05243302
    %v763 = vmul.f32 %v756, %v762
    %v764 = vadd.f32 %v763, 0.18741608
    %v765 = vmul.f32 %v756, %v764
    %v766 = vadd.f32 %v765, 1.1283791
    %v767 = vmul.f32 %v466, %v766
    %v768 = vmul.f32 %v756, 3.8918573e-05
    %v769 = vadd.f32 %v768, 0.001143296
    %v770 = vmul.f32 %v756, %v769
    %v771 = vadd.f32 %v770, 0.014752088
    %v772 = vmul.f32 %v756, %v771
    %v773 = vadd.f32 %v772, 0.112945676
    %v774 = vmul.f32 %v756, %v773
    %v775 = vadd.f32 %v774, 0.4994258
    %v776 = vmul.f32 %v756, %v775
    %v777 = vadd.f32 %v776, 1.0
    %v778 = vrcp.pop %v777
    %v779 = vmul.f32 %v777, %v778
    %v780 = vsub.f32 1.0, %v779
    %v781 = vmul.f32 %v778, %v780
    %v782 = vadd.f32 %v778, %v781
    %vm783 = vweird.f32 %v777
    %vm784 = vweird.f32 %v778
    %vm785 = vmor %vm783, %vm784
    %v786 = vsel %vm785, %v778, %v782
    %v787 = vand.u32 2147483647, %v777
    %vm788 = vcmp.eq.f32.partialorder %v787, 8.507059e+37
    %v789 = vand.u32 %v777, 2147483648
    %v790 = vor.u32 1.1754944e-38, %v789
    %v791 = vsel %vm788, %v790, %v786
    %v792 = vmul.f32 %v767, %v791
    %v793 = vmin.f32 %v792, 1.0
    %v794 = vmax.f32 %v793, -1.0
    %v795 = vmul.f32 %v467, %v467
    %v796 = vmin.f32 16.0, %v795
    %v797 = vmul.f32 %v796, 2.1237322e-06
    %v798 = vadd.f32 %v797, 0.00028619796
    %v799 = vmul.f32 %v796, %v798
    %v800 = vadd.f32 %v799, 0.0036580483
    %v801 = vmul.f32 %v796, %v800
    %v802 = vadd.f32 %v801, 0.05243302
    %v803 = vmul.f32 %v796, %v802
    %v804 = vadd.f32 %v803, 0.18741608
    %v805 = vmul.f32 %v796, %v804
    %v806 = vadd.f32 %v805, 1.1283791
    %v807 = vmul.f32 %v467, %v806
    %v808 = vmul.f32 %v796, 3.8918573e-05
    %v809 = vadd.f32 %v808, 0.001143296
    %v810 = vmul.f32 %v796, %v809
    %v811 = vadd.f32 %v810, 0.014752088
    %v812 = vmul.f32 %v796, %v811
    %v813 = vadd.f32 %v812, 0.112945676
    %v814 = vmul.f32 %v796, %v813
    %v815 = vadd.f32 %v814, 0.4994258
    %v816 = vmul.f32 %v796, %v815
    %v817 = vadd.f32 %v816, 1.0
    %v818 = vrcp.pop %v817
    %v819 = vmul.f32 %v817, %v818
    %v820 = vsub.f32 1.0, %v819
    %v821 = vmul.f32 %v818, %v820
    %v822 = vadd.f32 %v818, %v821
    %vm823 = vweird.f32 %v817
    %vm824 = vweird.f32 %v818
    %vm825 = vmor %vm823, %vm824
    %v826 = vsel %vm825, %v818, %v822
    %v827 = vand.u32 2147483647, %v817
    %vm828 = vcmp.eq.f32.partialorder %v827, 8.507059e+37
    %v829 = vand.u32 %v817, 2147483648
    %v830 = vor.u32 1.1754944e-38, %v829
    %v831 = vsel %vm828, %v830, %v826
    %v832 = vmul.f32 %v807, %v831
    %v833 = vmin.f32 %v832, 1.0
    %v834 = vmax.f32 %v833, -1.0
    %v835 = vmul.f32 %v468, %v468
    %v836 = vmin.f32 16.0, %v835
    %v837 = vmul.f32 %v836, 2.1237322e-06
    %v838 = vadd.f32 %v837, 0.00028619796
    %v839 = vmul.f32 %v836, %v838
    %v840 = vadd.f32 %v839, 0.0036580483
    %v841 = vmul.f32 %v836, %v840
    %v842 = vadd.f32 %v841, 0.05243302
    %v843 = vmul.f32 %v836, %v842
    %v844 = vadd.f32 %v843, 0.18741608
    %v845 = vmul.f32 %v836, %v844
    %v846 = vadd.f32 %v845, 1.1283791
    %v847 = vmul.f32 %v468, %v846
    %v848 = vmul.f32 %v836, 3.8918573e-05
    %v849 = vadd.f32 %v848, 0.001143296
    %v850 = vmul.f32 %v836, %v849
    %v851 = vadd.f32 %v850, 0.014752088
    %v852 = vmul.f32 %v836, %v851
    %v853 = vadd.f32 %v852, 0.112945676
    %v854 = vmul.f32 %v836, %v853
    %v855 = vadd.f32 %v854, 0.4994258
    %v856 = vmul.f32 %v836, %v855
    %v857 = vadd.f32 %v856, 1.0
    %v858 = vrcp.pop %v857
    %v859 = vmul.f32 %v857, %v858
    %v860 = vsub.f32 1.0, %v859
    %v861 = vmul.f32 %v858, %v860
    %v862 = vadd.f32 %v858, %v861
    %vm863 = vweird.f32 %v857
    %vm864 = vweird.f32 %v858
    %vm865 = vmor %vm863, %vm864
    %v866 = vsel %vm865, %v858, %v862
    %v867 = vand.u32 2147483647, %v857
    %vm868 = vcmp.eq.f32.partialorder %v867, 8.507059e+37
    %v869 = vand.u32 %v857, 2147483648
    %v870 = vor.u32 1.1754944e-38, %v869
    %v871 = vsel %vm868, %v870, %v866
    %v872 = vmul.f32 %v847, %v871
    %v873 = vmin.f32 %v872, 1.0
    %v874 = vmax.f32 %v873, -1.0
    %v875 = vmul.f32 %v469, %v469
    %v876 = vmin.f32 16.0, %v875
    %v877 = vmul.f32 %v876, 2.1237322e-06
    %v878 = vadd.f32 %v877, 0.00028619796
    %v879 = vmul.f32 %v876, %v878
    %v880 = vadd.f32 %v879, 0.0036580483
    %v881 = vmul.f32 %v876, %v880
    %v882 = vadd.f32 %v881, 0.05243302
    %v883 = vmul.f32 %v876, %v882
    %v884 = vadd.f32 %v883, 0.18741608
    %v885 = vmul.f32 %v876, %v884
    %v886 = vadd.f32 %v885, 1.1283791
    %v887 = vmul.f32 %v469, %v886
    %v888 = vmul.f32 %v876, 3.8918573e-05
    %v889 = vadd.f32 %v888, 0.001143296
    %v890 = vmul.f32 %v876, %v889
    %v891 = vadd.f32 %v890, 0.014752088
    %v892 = vmul.f32 %v876, %v891
    %v893 = vadd.f32 %v892, 0.112945676
    %v894 = vmul.f32 %v876, %v893
    %v895 = vadd.f32 %v894, 0.4994258
    %v896 = vmul.f32 %v876, %v895
    %v897 = vadd.f32 %v896, 1.0
    %v898 = vrcp.pop %v897
    %v899 = vmul.f32 %v897, %v898
    %v900 = vsub.f32 1.0, %v899
    %v901 = vmul.f32 %v898, %v900
    %v902 = vadd.f32 %v898, %v901
    %vm903 = vweird.f32 %v897
    %vm904 = vweird.f32 %v898
    %vm905 = vmor %vm903, %vm904
    %v906 = vsel %vm905, %v898, %v902
    %v907 = vand.u32 2147483647, %v897
    %vm908 = vcmp.eq.f32.partialorder %v907, 8.507059e+37
    %v909 = vand.u32 %v897, 2147483648
    %v910 = vor.u32 1.1754944e-38, %v909
    %v911 = vsel %vm908, %v910, %v906
    %v912 = vmul.f32 %v887, %v911
    %v913 = vmin.f32 %v912, 1.0
    %v914 = vmax.f32 %v913, -1.0
    %v915 = vmul.f32 %v470, %v470
    %v916 = vmin.f32 16.0, %v915
    %v917 = vmul.f32 %v916, 2.1237322e-06
    %v918 = vadd.f32 %v917, 0.00028619796
    %v919 = vmul.f32 %v916, %v918
    %v920 = vadd.f32 %v919, 0.0036580483
    %v921 = vmul.f32 %v916, %v920
    %v922 = vadd.f32 %v921, 0.05243302
    %v923 = vmul.f32 %v916, %v922
    %v924 = vadd.f32 %v923, 0.18741608
    %v925 = vmul.f32 %v916, %v924
    %v926 = vadd.f32 %v925, 1.1283791
    %v927 = vmul.f32 %v470, %v926
    %v928 = vmul.f32 %v916, 3.8918573e-05
    %v929 = vadd.f32 %v928, 0.001143296
    %v930 = vmul.f32 %v916, %v929
    %v931 = vadd.f32 %v930, 0.014752088
    %v932 = vmul.f32 %v916, %v931
    %v933 = vadd.f32 %v932, 0.112945676
    %v934 = vmul.f32 %v916, %v933
    %v935 = vadd.f32 %v934, 0.4994258
    %v936 = vmul.f32 %v916, %v935
    %v937 = vadd.f32 %v936, 1.0
    %v938 = vrcp.pop %v937
    %v939 = vmul.f32 %v937, %v938
    %v940 = vsub.f32 1.0, %v939
    %v941 = vmul.f32 %v938, %v940
    %v942 = vadd.f32 %v938, %v941
    %vm943 = vweird.f32 %v937
    %vm944 = vweird.f32 %v938
    %vm945 = vmor %vm943, %vm944
    %v946 = vsel %vm945, %v938, %v942
    %v947 = vand.u32 2147483647, %v937
    %vm948 = vcmp.eq.f32.partialorder %v947, 8.507059e+37
    %v949 = vand.u32 %v937, 2147483648
    %v950 = vor.u32 1.1754944e-38, %v949
    %v951 = vsel %vm948, %v950, %v946
    %v952 = vmul.f32 %v927, %v951
    %v953 = vmin.f32 %v952, 1.0
    %v954 = vmax.f32 %v953, -1.0
    %v955 = vmul.f32 %v471, %v471
    %v956 = vmin.f32 16.0, %v955
    %v957 = vmul.f32 %v956, 2.1237322e-06
    %v958 = vadd.f32 %v957, 0.00028619796
    %v959 = vmul.f32 %v956, %v958
    %v960 = vadd.f32 %v959, 0.0036580483
    %v961 = vmul.f32 %v956, %v960
    %v962 = vadd.f32 %v961, 0.05243302
    %v963 = vmul.f32 %v956, %v962
    %v964 = vadd.f32 %v963, 0.18741608
    %v965 = vmul.f32 %v956, %v964
    %v966 = vadd.f32 %v965, 1.1283791
    %v967 = vmul.f32 %v471, %v966
    %v968 = vmul.f32 %v956, 3.8918573e-05
    %v969 = vadd.f32 %v968, 0.001143296
    %v970 = vmul.f32 %v956, %v969
    %v971 = vadd.f32 %v970, 0.014752088
    %v972 = vmul.f32 %v956, %v971
    %v973 = vadd.f32 %v972, 0.112945676
    %v974 = vmul.f32 %v956, %v973
    %v975 = vadd.f32 %v974, 0.4994258
    %v976 = vmul.f32 %v956, %v975
    %v977 = vadd.f32 %v976, 1.0
    %v978 = vrcp.pop %v977
    %v979 = vmul.f32 %v977, %v978
    %v980 = vsub.f32 1.0, %v979
    %v981 = vmul.f32 %v978, %v980
    %v982 = vadd.f32 %v978, %v981
    %vm983 = vweird.f32 %v977
    %vm984 = vweird.f32 %v978
    %vm985 = vmor %vm983, %vm984
    %v986 = vsel %vm985, %v978, %v982
    %v987 = vand.u32 2147483647, %v977
    %vm988 = vcmp.eq.f32.partialorder %v987, 8.507059e+37
    %v989 = vand.u32 %v977, 2147483648
    %v990 = vor.u32 1.1754944e-38, %v989
    %v991 = vsel %vm988, %v990, %v986
    %v992 = vmul.f32 %v967, %v991
    %v993 = vmin.f32 %v992, 1.0
    %v994 = vmax.f32 %v993, -1.0
    %v995 = vmul.f32 %v472, %v472
    %v996 = vmin.f32 16.0, %v995
    %v997 = vmul.f32 %v996, 2.1237322e-06
    %v998 = vadd.f32 %v997, 0.00028619796
    %v999 = vmul.f32 %v996, %v998
    %v1000 = vadd.f32 %v999, 0.0036580483
    %v1001 = vmul.f32 %v996, %v1000
    %v1002 = vadd.f32 %v1001, 0.05243302
    %v1003 = vmul.f32 %v996, %v1002
    %v1004 = vadd.f32 %v1003, 0.18741608
    %v1005 = vmul.f32 %v996, %v1004
    %v1006 = vadd.f32 %v1005, 1.1283791
    %v1007 = vmul.f32 %v472, %v1006
    %v1008 = vmul.f32 %v996, 3.8918573e-05
    %v1009 = vadd.f32 %v1008, 0.001143296
    %v1010 = vmul.f32 %v996, %v1009
    %v1011 = vadd.f32 %v1010, 0.014752088
    %v1012 = vmul.f32 %v996, %v1011
    %v1013 = vadd.f32 %v1012, 0.112945676
    %v1014 = vmul.f32 %v996, %v1013
    %v1015 = vadd.f32 %v1014, 0.4994258
    %v1016 = vmul.f32 %v996, %v1015
    %v1017 = vadd.f32 %v1016, 1.0
    %v1018 = vrcp.pop %v1017
    %v1019 = vmul.f32 %v1017, %v1018
    %v1020 = vsub.f32 1.0, %v1019
    %v1021 = vmul.f32 %v1018, %v1020
    %v1022 = vadd.f32 %v1018, %v1021
    %vm1023 = vweird.f32 %v1017
    %vm1024 = vweird.f32 %v1018
    %vm1025 = vmor %vm1023, %vm1024
    %v1026 = vsel %vm1025, %v1018, %v1022
    %v1027 = vand.u32 2147483647, %v1017
    %vm1028 = vcmp.eq.f32.partialorder %v1027, 8.507059e+37
    %v1029 = vand.u32 %v1017, 2147483648
    %v1030 = vor.u32 1.1754944e-38, %v1029
    %v1031 = vsel %vm1028, %v1030, %v1026
    %v1032 = vmul.f32 %v1007, %v1031
    %v1033 = vmin.f32 %v1032, 1.0
    %v1034 = vmax.f32 %v1033, -1.0
    %v1035 = vmul.f32 %v473, %v473
    %v1036 = vmin.f32 16.0, %v1035
    %v1037 = vmul.f32 %v1036, 2.1237322e-06
    %v1038 = vadd.f32 %v1037, 0.00028619796
    %v1039 = vmul.f32 %v1036, %v1038
    %v1040 = vadd.f32 %v1039, 0.0036580483
    %v1041 = vmul.f32 %v1036, %v1040
    %v1042 = vadd.f32 %v1041, 0.05243302
    %v1043 = vmul.f32 %v1036, %v1042
    %v1044 = vadd.f32 %v1043, 0.18741608
    %v1045 = vmul.f32 %v1036, %v1044
    %v1046 = vadd.f32 %v1045, 1.1283791
    %v1047 = vmul.f32 %v473, %v1046
    %v1048 = vmul.f32 %v1036, 3.8918573e-05
    %v1049 = vadd.f32 %v1048, 0.001143296
    %v1050 = vmul.f32 %v1036, %v1049
    %v1051 = vadd.f32 %v1050, 0.014752088
    %v1052 = vmul.f32 %v1036, %v1051
    %v1053 = vadd.f32 %v1052, 0.112945676
    %v1054 = vmul.f32 %v1036, %v1053
    %v1055 = vadd.f32 %v1054, 0.4994258
    %v1056 = vmul.f32 %v1036, %v1055
    %v1057 = vadd.f32 %v1056, 1.0
    %v1058 = vrcp.pop %v1057
    %v1059 = vmul.f32 %v1057, %v1058
    %v1060 = vsub.f32 1.0, %v1059
    %v1061 = vmul.f32 %v1058, %v1060
    %v1062 = vadd.f32 %v1058, %v1061
    %vm1063 = vweird.f32 %v1057
    %vm1064 = vweird.f32 %v1058
    %vm1065 = vmor %vm1063, %vm1064
    %v1066 = vsel %vm1065, %v1058, %v1062
    %v1067 = vand.u32 2147483647, %v1057
    %vm1068 = vcmp.eq.f32.partialorder %v1067, 8.507059e+37
    %v1069 = vand.u32 %v1057, 2147483648
    %v1070 = vor.u32 1.1754944e-38, %v1069
    %v1071 = vsel %vm1068, %v1070, %v1066
    %v1072 = vmul.f32 %v1047, %v1071
    %v1073 = vmin.f32 %v1072, 1.0
    %v1074 = vmax.f32 %v1073, -1.0
    %v1075 = vmul.f32 %v474, %v474
    %v1076 = vmin.f32 16.0, %v1075
    %v1077 = vmul.f32 %v1076, 2.1237322e-06
    %v1078 = vadd.f32 %v1077, 0.00028619796
    %v1079 = vmul.f32 %v1076, %v1078
    %v1080 = vadd.f32 %v1079, 0.0036580483
    %v1081 = vmul.f32 %v1076, %v1080
    %v1082 = vadd.f32 %v1081, 0.05243302
    %v1083 = vmul.f32 %v1076, %v1082
    %v1084 = vadd.f32 %v1083, 0.18741608
    %v1085 = vmul.f32 %v1076, %v1084
    %v1086 = vadd.f32 %v1085, 1.1283791
    %v1087 = vmul.f32 %v474, %v1086
    %v1088 = vmul.f32 %v1076, 3.8918573e-05
    %v1089 = vadd.f32 %v1088, 0.001143296
    %v1090 = vmul.f32 %v1076, %v1089
    %v1091 = vadd.f32 %v1090, 0.014752088
    %v1092 = vmul.f32 %v1076, %v1091
    %v1093 = vadd.f32 %v1092, 0.112945676
    %v1094 = vmul.f32 %v1076, %v1093
    %v1095 = vadd.f32 %v1094, 0.4994258
    %v1096 = vmul.f32 %v1076, %v1095
    %v1097 = vadd.f32 %v1096, 1.0
    %v1098 = vrcp.pop %v1097
    %v1099 = vmul.f32 %v1097, %v1098
    %v1100 = vsub.f32 1.0, %v1099
    %v1101 = vmul.f32 %v1098, %v1100
    %v1102 = vadd.f32 %v1098, %v1101
    %vm1103 = vweird.f32 %v1097
    %vm1104 = vweird.f32 %v1098
    %vm1105 = vmor %vm1103, %vm1104
    %v1106 = vsel %vm1105, %v1098, %v1102
    %v1107 = vand.u32 2147483647, %v1097
    %vm1108 = vcmp.eq.f32.partialorder %v1107, 8.507059e+37
    %v1109 = vand.u32 %v1097, 2147483648
    %v1110 = vor.u32 1.1754944e-38, %v1109
    %v1111 = vsel %vm1108, %v1110, %v1106
    %v1112 = vmul.f32 %v1087, %v1111
    %v1113 = vmin.f32 %v1112, 1.0
    %v1114 = vmax.f32 %v1113, -1.0
    %v1115 = vadd.f32 %v514, 1.0
    %v1116 = vadd.f32 %v554, 1.0
    %v1117 = vadd.f32 %v594, 1.0
    %v1118 = vadd.f32 %v634, 1.0
    %v1119 = vadd.f32 %v674, 1.0
    %v1120 = vadd.f32 %v714, 1.0
    %v1121 = vadd.f32 %v754, 1.0
    %v1122 = vadd.f32 %v794, 1.0
    %v1123 = vadd.f32 %v834, 1.0
    %v1124 = vadd.f32 %v874, 1.0
    %v1125 = vadd.f32 %v914, 1.0
    %v1126 = vadd.f32 %v954, 1.0
    %v1127 = vadd.f32 %v994, 1.0
    %v1128 = vadd.f32 %v1034, 1.0
    %v1129 = vadd.f32 %v1074, 1.0
    %v1130 = vadd.f32 %v1114, 1.0
    %v1131 = vmul.f32 %v443, %v1115
    %v1132 = vmul.f32 %v444, %v1116
    %v1133 = vmul.f32 %v445, %v1117
    %v1134 = vmul.f32 %v446, %v1118
    %v1135 = vmul.f32 %v447, %v1119
    %v1136 = vmul.f32 %v448, %v1120
    %v1137 = vmul.f32 %v449, %v1121
    %v1138 = vmul.f32 %v450, %v1122
    %v1139 = vmul.f32 %v451, %v1123
    %v1140 = vmul.f32 %v452, %v1124
    %v1141 = vmul.f32 %v453, %v1125
    %v1142 = vmul.f32 %v454, %v1126
    %v1143 = vmul.f32 %v455, %v1127
    %v1144 = vmul.f32 %v456, %v1128
    %v1145 = vmul.f32 %v457, %v1129
    %v1146 = vmul.f32 %v458, %v1130
    %v1147 = vpack.c.bf16 %v1131, %v1131
    %v1148 = vpack.c.bf16 %v1132, %v1132
    %v1149 = vpack.c.bf16 %v1133, %v1133
    %v1150 = vpack.c.bf16 %v1134, %v1134
    %v1151 = vpack.c.bf16 %v1135, %v1135
    %v1152 = vpack.c.bf16 %v1136, %v1136
    %v1153 = vpack.c.bf16 %v1137, %v1137
    %v1154 = vpack.c.bf16 %v1138, %v1138
    %v1155 = vpack.c.bf16 %v1139, %v1139
    %v1156 = vpack.c.bf16 %v1140, %v1140
    %v1157 = vpack.c.bf16 %v1141, %v1141
    %v1158 = vpack.c.bf16 %v1142, %v1142
    %v1159 = vpack.c.bf16 %v1143, %v1143
    %v1160 = vpack.c.bf16 %v1144, %v1144
    %v1161 = vpack.c.bf16 %v1145, %v1145
    %v1162 = vpack.c.bf16 %v1146, %v1146
    %1163 = vst [vmem:[%s3] sm:$0xf] %v1147
    %1164 = vst [vmem:[%s3 + $0x4] sm:$0xf] %v1148
    %1165 = vst [vmem:[%s3 + $0x8] sm:$0xf] %v1149
    %1166 = vst [vmem:[%s3 + $0xc] sm:$0xf] %v1150
    %1167 = vst [vmem:[%s3 + $0x10] sm:$0xf] %v1151
    %1168 = vst [vmem:[%s3 + $0x14] sm:$0xf] %v1152
    %1169 = vst [vmem:[%s3 + $0x18] sm:$0xf] %v1153
    %1170 = vst [vmem:[%s3 + $0x1c] sm:$0xf] %v1154
    %1171 = vst [vmem:[%s3 + $0x20] sm:$0xf] %v1155
    %1172 = vst [vmem:[%s3 + $0x24] sm:$0xf] %v1156
    %1173 = vst [vmem:[%s3 + $0x28] sm:$0xf] %v1157
    %1174 = vst [vmem:[%s3 + $0x2c] sm:$0xf] %v1158
    %1175 = vst [vmem:[%s3 + $0x30] sm:$0xf] %v1159
    %1176 = vst [vmem:[%s3 + $0x34] sm:$0xf] %v1160
    %1177 = vst [vmem:[%s3 + $0x38] sm:$0xf] %v1161
    %1178 = vst [vmem:[%s3 + $0x3c] sm:$0xf] %v1162
  $region21: #{actor_critic_forward.7} parent=0 // pred_fallthru
    _
  // Predicated region
  $region22: #{actor_critic_forward.7} parent=0 // pred_check
    _
  $region23: #{actor_critic_forward.7} parent=0 // pred_check_branch
    %1180 = sbr.rel (0) target = $region25
  $region24: #{actor_critic_forward.7} parent=0 // pred_region
    _
  $region25: #{actor_critic_forward.7} parent=0 // pred_fallthru
    _
  // Predicated region
  $region26: #{actor_critic_forward.7} parent=0 // pred_check
    _
  $region27: #{actor_critic_forward.7} parent=0 // pred_check_branch
    %1182 = sbr.rel (0) target = $region29
  $region28: #{actor_critic_forward.7} parent=0 // pred_region
    _
  $region29: #{actor_critic_forward.7} parent=0 // pred_fallthru
    _

// kernel: actor_critic_forward.11
$region0: #{actor_critic_forward.11}
  #allocation0 [shape = 'u32[]', space=smem, size = 0x4, offset = 0x4, fixed_abs, tag = 'smem constant byte address 0x4 - core index']
  #allocation1 [shape = 'u32[72,128]{1,0:T(1,128)}', space=vmem, size = 0x9000, scoped, tag = 'internal scratch']
  #allocation2 [shape = 'f32[32,128]{1,0:T(8,128)}', space=vmem, size = 0x4000, scoped, tag = 'scratch operand']
  %s0 = inlined_call_operand.vmem [shape: bf16[32,512], index: 0, kind: input, shape index: {}]
  %s1 = inlined_call_operand.vmem [shape: bf16[512,128], index: 1, kind: input, shape index: {}]
  %s2 = inlined_call_operand.vmem [shape: f32[1,128], index: 2, kind: input, shape index: {}]
  %s3 = inlined_call_operand.vmem [shape: bf16[32,128], index: 3, kind: output, shape index: {}]
  %s4 = sld [smem:[#allocation0]]
  $region30: #{actor_critic_forward.11} parent=0
    _
  %s6 = ssub.s32 1, %s4
  %s7 = scalar_select 0, %s6, %s4
  // Predicated region
  $region2: #{actor_critic_forward.11} parent=0 // pred_check
    _
  $region3: #{actor_critic_forward.11} parent=0 // pred_check_branch
    %9 = sbr.rel (0) target = $region5
  $region4: #{actor_critic_forward.11} parent=0 // pred_region
    _
  $region5: #{actor_critic_forward.11} parent=0 // pred_fallthru
    _
  // Predicated region
  $region6: #{actor_critic_forward.11} parent=0 // pred_check
    _
  $region7: #{actor_critic_forward.11} parent=0 // pred_check_branch
    %11 = sbr.rel (0) target = $region9
  $region8: #{actor_critic_forward.11} parent=0 // pred_region
    _
  $region9: #{actor_critic_forward.11} parent=0 // pred_fallthru
    _
  // Predicated region
  $region10: #{actor_critic_forward.11} parent=0 // pred_check
    _
  $region11: #{actor_critic_forward.11} parent=0 // pred_check_branch
    %13 = sbr.rel (0) target = $region13
  $region12: #{actor_critic_forward.11} parent=0 // pred_region
    _
  $region13: #{actor_critic_forward.11} parent=0 // pred_fallthru
    _
  %p14 = scmp.eq.s32.totalorder 0, 0
  // Predicated region
  $region14: #{actor_critic_forward.11} parent=0 // pred_check
    %p15 = pneg %p14
  $region15: #{actor_critic_forward.11} parent=0 // pred_check_branch
    %17 = sbr.rel (%p15) target = $region17
  $region16: #{actor_critic_forward.11} parent=0 // pred_region
    %18 = vst [vmem:[#allocation2] sm:$0xff] 0.0
    %19 = vst [vmem:[#allocation2 + $0x8] sm:$0xff] 0.0
    %20 = vst [vmem:[#allocation2 + $0x10] sm:$0xff] 0.0
    %21 = vst [vmem:[#allocation2 + $0x18] sm:$0xff] 0.0
  $region17: #{actor_critic_forward.11} parent=0 // pred_fallthru
    _
  %v22 = vld [vmem:[#allocation2] sm:$0xff]
  %v23 = vld [vmem:[#allocation2 + $0x8] sm:$0xff]
  %v24 = vld [vmem:[#allocation2 + $0x10] sm:$0xff]
  %v25 = vld [vmem:[#allocation2 + $0x18] sm:$0xff]
  %v26 = vld [vmem:[%s0] sm:$0xff]
  %v27 = vld [vmem:[%s0 + $0x8] sm:$0xff]
  %v28 = vld [vmem:[%s0 + $0x10] sm:$0xff]
  %v29 = vld [vmem:[%s0 + $0x18] sm:$0xff]
  %v30 = vld [vmem:[%s0 + $0x20] sm:$0xff]
  %v31 = vld [vmem:[%s0 + $0x28] sm:$0xff]
  %v32 = vld [vmem:[%s0 + $0x30] sm:$0xff]
  %v33 = vld [vmem:[%s0 + $0x38] sm:$0xff]
  %v34 = vld [vmem:[%s1] sm:$0xf]
  %v35 = vld [vmem:[%s1 + $0x4] sm:$0xf]
  %v36 = vld [vmem:[%s1 + $0x8] sm:$0xf]
  %v37 = vld [vmem:[%s1 + $0xc] sm:$0xf]
  %v38 = vld [vmem:[%s1 + $0x10] sm:$0xf]
  %v39 = vld [vmem:[%s1 + $0x14] sm:$0xf]
  %v40 = vld [vmem:[%s1 + $0x18] sm:$0xf]
  %v41 = vld [vmem:[%s1 + $0x1c] sm:$0xf]
  %v42 = vld [vmem:[%s1 + $0x20] sm:$0xf]
  %v43 = vld [vmem:[%s1 + $0x24] sm:$0xf]
  %v44 = vld [vmem:[%s1 + $0x28] sm:$0xf]
  %v45 = vld [vmem:[%s1 + $0x2c] sm:$0xf]
  %v46 = vld [vmem:[%s1 + $0x30] sm:$0xf]
  %v47 = vld [vmem:[%s1 + $0x34] sm:$0xf]
  %v48 = vld [vmem:[%s1 + $0x38] sm:$0xf]
  %v49 = vld [vmem:[%s1 + $0x3c] sm:$0xf]
  %v50 = vld [vmem:[%s1 + $0x40] sm:$0xf]
  %v51 = vld [vmem:[%s1 + $0x44] sm:$0xf]
  %v52 = vld [vmem:[%s1 + $0x48] sm:$0xf]
  %v53 = vld [vmem:[%s1 + $0x4c] sm:$0xf]
  %v54 = vld [vmem:[%s1 + $0x50] sm:$0xf]
  %v55 = vld [vmem:[%s1 + $0x54] sm:$0xf]
  %v56 = vld [vmem:[%s1 + $0x58] sm:$0xf]
  %v57 = vld [vmem:[%s1 + $0x5c] sm:$0xf]
  %v58 = vld [vmem:[%s1 + $0x60] sm:$0xf]
  %v59 = vld [vmem:[%s1 + $0x64] sm:$0xf]
  %v60 = vld [vmem:[%s1 + $0x68] sm:$0xf]
  %v61 = vld [vmem:[%s1 + $0x6c] sm:$0xf]
  %v62 = vld [vmem:[%s1 + $0x70] sm:$0xf]
  %v63 = vld [vmem:[%s1 + $0x74] sm:$0xf]
  %v64 = vld [vmem:[%s1 + $0x78] sm:$0xf]
  %v65 = vld [vmem:[%s1 + $0x7c] sm:$0xf]
  %v66 = vld [vmem:[%s1 + $0x80] sm:$0xf]
  %v67 = vld [vmem:[%s1 + $0x84] sm:$0xf]
  %v68 = vld [vmem:[%s1 + $0x88] sm:$0xf]
  %v69 = vld [vmem:[%s1 + $0x8c] sm:$0xf]
  %v70 = vld [vmem:[%s1 + $0x90] sm:$0xf]
  %v71 = vld [vmem:[%s1 + $0x94] sm:$0xf]
  %v72 = vld [vmem:[%s1 + $0x98] sm:$0xf]
  %v73 = vld [vmem:[%s1 + $0x9c] sm:$0xf]
  %v74 = vld [vmem:[%s1 + $0xa0] sm:$0xf]
  %v75 = vld [vmem:[%s1 + $0xa4] sm:$0xf]
  %v76 = vld [vmem:[%s1 + $0xa8] sm:$0xf]
  %v77 = vld [vmem:[%s1 + $0xac] sm:$0xf]
  %v78 = vld [vmem:[%s1 + $0xb0] sm:$0xf]
  %v79 = vld [vmem:[%s1 + $0xb4] sm:$0xf]
  %v80 = vld [vmem:[%s1 + $0xb8] sm:$0xf]
  %v81 = vld [vmem:[%s1 + $0xbc] sm:$0xf]
  %v82 = vld [vmem:[%s1 + $0xc0] sm:$0xf]
  %v83 = vld [vmem:[%s1 + $0xc4] sm:$0xf]
  %v84 = vld [vmem:[%s1 + $0xc8] sm:$0xf]
  %v85 = vld [vmem:[%s1 + $0xcc] sm:$0xf]
  %v86 = vld [vmem:[%s1 + $0xd0] sm:$0xf]
  %v87 = vld [vmem:[%s1 + $0xd4] sm:$0xf]
  %v88 = vld [vmem:[%s1 + $0xd8] sm:$0xf]
  %v89 = vld [vmem:[%s1 + $0xdc] sm:$0xf]
  %v90 = vld [vmem:[%s1 + $0xe0] sm:$0xf]
  %v91 = vld [vmem:[%s1 + $0xe4] sm:$0xf]
  %v92 = vld [vmem:[%s1 + $0xe8] sm:$0xf]
  %v93 = vld [vmem:[%s1 + $0xec] sm:$0xf]
  %v94 = vld [vmem:[%s1 + $0xf0] sm:$0xf]
  %v95 = vld [vmem:[%s1 + $0xf4] sm:$0xf]
  %v96 = vld [vmem:[%s1 + $0xf8] sm:$0xf]
  %v97 = vld [vmem:[%s1 + $0xfc] sm:$0xf]
  %v106 = vunpack.c.l.b16 %v26
  %v107 = vunpack.c.h.b16 %v26
  %v108 = vunpack.c.l.b16 %v27
  %v109 = vunpack.c.h.b16 %v27
  %v110 = vunpack.c.l.b16 %v28
  %v111 = vunpack.c.h.b16 %v28
  %v112 = vunpack.c.l.b16 %v29
  %v113 = vunpack.c.h.b16 %v29
  %v114 = vunpack.c.l.b16 %v30
  %v115 = vunpack.c.h.b16 %v30
  %v116 = vunpack.c.l.b16 %v31
  %v117 = vunpack.c.h.b16 %v31
  %v118 = vunpack.c.l.b16 %v32
  %v119 = vunpack.c.h.b16 %v32
  %v120 = vunpack.c.l.b16 %v33
  %v121 = vunpack.c.h.b16 %v33
  %v122 = vpack.c.b16 %v110, %v106
  %v123 = vpack.c.b16 %v111, %v107
  %v124 = vpack.c.b16 %v112, %v108
  %v125 = vpack.c.b16 %v113, %v109
  %v126 = vpack.c.b16 %v118, %v114
  %v127 = vpack.c.b16 %v119, %v115
  %v128 = vpack.c.b16 %v120, %v116
  %v129 = vpack.c.b16 %v121, %v117
  %v202 = vunpack.c.l.b16 %v34
  %v203 = vunpack.c.l.b16 %v35
  %v204 = vunpack.c.l.b16 %v36
  %v205 = vunpack.c.l.b16 %v37
  %v206 = vunpack.c.l.b16 %v38
  %v207 = vunpack.c.l.b16 %v39
  %v208 = vunpack.c.l.b16 %v40
  %v209 = vunpack.c.l.b16 %v41
  %v210 = vunpack.c.l.b16 %v42
  %v211 = vunpack.c.l.b16 %v43
  %v212 = vunpack.c.l.b16 %v44
  %v213 = vunpack.c.l.b16 %v45
  %v214 = vunpack.c.l.b16 %v46
  %v215 = vunpack.c.l.b16 %v47
  %v216 = vunpack.c.l.b16 %v48
  %v217 = vunpack.c.l.b16 %v49
  %v218 = vunpack.c.l.b16 %v50
  %v219 = vunpack.c.l.b16 %v51
  %v220 = vunpack.c.l.b16 %v52
  %v221 = vunpack.c.l.b16 %v53
  %v222 = vunpack.c.l.b16 %v54
  %v223 = vunpack.c.l.b16 %v55
  %v224 = vunpack.c.l.b16 %v56
  %v225 = vunpack.c.l.b16 %v57
  %v226 = vunpack.c.l.b16 %v58
  %v227 = vunpack.c.l.b16 %v59
  %v228 = vunpack.c.l.b16 %v60
  %v229 = vunpack.c.l.b16 %v61
  %v230 = vunpack.c.l.b16 %v62
  %v231 = vunpack.c.l.b16 %v63
  %v232 = vunpack.c.l.b16 %v64
  %v233 = vunpack.c.l.b16 %v65
  %v234 = vunpack.c.l.b16 %v66
  %v235 = vunpack.c.l.b16 %v67
  %v236 = vunpack.c.l.b16 %v68
  %v237 = vunpack.c.l.b16 %v69
  %v238 = vunpack.c.l.b16 %v70
  %v239 = vunpack.c.l.b16 %v71
  %v240 = vunpack.c.l.b16 %v72
  %v241 = vunpack.c.l.b16 %v73
  %v242 = vunpack.c.l.b16 %v74
  %v243 = vunpack.c.l.b16 %v75
  %v244 = vunpack.c.l.b16 %v76
  %v245 = vunpack.c.l.b16 %v77
  %v246 = vunpack.c.l.b16 %v78
  %v247 = vunpack.c.l.b16 %v79
  %v248 = vunpack.c.l.b16 %v80
  %v249 = vunpack.c.l.b16 %v81
  %v250 = vunpack.c.l.b16 %v82
  %v251 = vunpack.c.l.b16 %v83
  %v252 = vunpack.c.l.b16 %v84
  %v253 = vunpack.c.l.b16 %v85
  %v254 = vunpack.c.l.b16 %v86
  %v255 = vunpack.c.l.b16 %v87
  %v256 = vunpack.c.l.b16 %v88
  %v257 = vunpack.c.l.b16 %v89
  %v258 = vunpack.c.l.b16 %v90
  %v259 = vunpack.c.l.b16 %v91
  %v260 = vunpack.c.l.b16 %v92
  %v261 = vunpack.c.l.b16 %v93
  %v262 = vunpack.c.l.b16 %v94
  %v263 = vunpack.c.l.b16 %v95
  %v264 = vunpack.c.l.b16 %v96
  %v265 = vunpack.c.l.b16 %v97
  %v266 = vpack.c.b16 %v203, %v202
  %v267 = vpack.c.b16 %v205, %v204
  %v268 = vpack.c.b16 %v207, %v206
  %v269 = vpack.c.b16 %v209, %v208
  %v270 = vpack.c.b16 %v211, %v210
  %v271 = vpack.c.b16 %v213, %v212
  %v272 = vpack.c.b16 %v215, %v214
  %v273 = vpack.c.b16 %v217, %v216
  %v274 = vpack.c.b16 %v219, %v218
  %v275 = vpack.c.b16 %v221, %v220
  %v276 = vpack.c.b16 %v223, %v222
  %v277 = vpack.c.b16 %v225, %v224
  %v278 = vpack.c.b16 %v227, %v226
  %v279 = vpack.c.b16 %v229, %v228
  %v280 = vpack.c.b16 %v231, %v230
  %v281 = vpack.c.b16 %v233, %v232
  %v282 = vpack.c.b16 %v235, %v234
  %v283 = vpack.c.b16 %v237, %v236
  %v284 = vpack.c.b16 %v239, %v238
  %v285 = vpack.c.b16 %v241, %v240
  %v286 = vpack.c.b16 %v243, %v242
  %v287 = vpack.c.b16 %v245, %v244
  %v288 = vpack.c.b16 %v247, %v246
  %v289 = vpack.c.b16 %v249, %v248
  %v290 = vpack.c.b16 %v251, %v250
  %v291 = vpack.c.b16 %v253, %v252
  %v292 = vpack.c.b16 %v255, %v254
  %v293 = vpack.c.b16 %v257, %v256
  %v294 = vpack.c.b16 %v259, %v258
  %v295 = vpack.c.b16 %v261, %v260
  %v296 = vpack.c.b16 %v263, %v262
  %v297 = vpack.c.b16 %v265, %v264
  %330 = vmatpush.bf16.msra.mxu0 %v273
  %331 = vmatpush.bf16.msra.mxu0 %v272
  %332 = vmatpush.bf16.msra.mxu0 %v271
  %333 = vmatpush.bf16.msra.mxu0 %v270
  %334 = vmatpush.bf16.msra.mxu0 %v269
  %335 = vmatpush.bf16.msra.mxu0 %v268
  %336 = vmatpush.bf16.msra.mxu0 %v267
  %337 = vmatpush.bf16.msra.mxu0 %v266
  %338 = vmatmul.bf16.gmra.mxu0 %v122
  %v339 = vpop.f32.mrf.mxu0
  %v340 = vadd.f32 0.0, %v339
  %v341 = vpop.f32.mrf.mxu0
  %v342 = vadd.f32 0.0, %v341
  %343 = vmatmul.bf16.gmra.mxu0 %v126
  %v344 = vpop.f32.mrf.mxu0
  %v345 = vadd.f32 0.0, %v344
  %v346 = vpop.f32.mrf.mxu0
  %v347 = vadd.f32 0.0, %v346
  %348 = vdwg.mxu0
  %349 = vmatpush.bf16.msra.mxu0 %v281
  %350 = vmatpush.bf16.msra.mxu0 %v280
  %351 = vmatpush.bf16.msra.mxu0 %v279
  %352 = vmatpush.bf16.msra.mxu0 %v278
  %353 = vmatpush.bf16.msra.mxu0 %v277
  %354 = vmatpush.bf16.msra.mxu0 %v276
  %355 = vmatpush.bf16.msra.mxu0 %v275
  %356 = vmatpush.bf16.msra.mxu0 %v274
  %357 = vmatmul.bf16.gmra.mxu0 %v123
  %v358 = vpop.f32.mrf.mxu0
  %v359 = vadd.f32 %v340, %v358
  %v360 = vpop.f32.mrf.mxu0
  %v361 = vadd.f32 %v342, %v360
  %362 = vmatmul.bf16.gmra.mxu0 %v127
  %v363 = vpop.f32.mrf.mxu0
  %v364 = vadd.f32 %v345, %v363
  %v365 = vpop.f32.mrf.mxu0
  %v366 = vadd.f32 %v347, %v365
  %367 = vdwg.mxu0
  %368 = vmatpush.bf16.msra.mxu0 %v289
  %369 = vmatpush.bf16.msra.mxu0 %v288
  %370 = vmatpush.bf16.msra.mxu0 %v287
  %371 = vmatpush.bf16.msra.mxu0 %v286
  %372 = vmatpush.bf16.msra.mxu0 %v285
  %373 = vmatpush.bf16.msra.mxu0 %v284
  %374 = vmatpush.bf16.msra.mxu0 %v283
  %375 = vmatpush.bf16.msra.mxu0 %v282
  %376 = vmatmul.bf16.gmra.mxu0 %v124
  %v377 = vpop.f32.mrf.mxu0
  %v378 = vadd.f32 %v359, %v377
  %v379 = vpop.f32.mrf.mxu0
  %v380 = vadd.f32 %v361, %v379
  %381 = vmatmul.bf16.gmra.mxu0 %v128
  %v382 = vpop.f32.mrf.mxu0
  %v383 = vadd.f32 %v364, %v382
  %v384 = vpop.f32.mrf.mxu0
  %v385 = vadd.f32 %v366, %v384
  %386 = vdwg.mxu0
  %387 = vmatpush.bf16.msra.mxu0 %v297
  %388 = vmatpush.bf16.msra.mxu0 %v296
  %389 = vmatpush.bf16.msra.mxu0 %v295
  %390 = vmatpush.bf16.msra.mxu0 %v294
  %391 = vmatpush.bf16.msra.mxu0 %v293
  %392 = vmatpush.bf16.msra.mxu0 %v292
  %393 = vmatpush.bf16.msra.mxu0 %v291
  %394 = vmatpush.bf16.msra.mxu0 %v290
  %395 = vmatmul.bf16.gmra.mxu0 %v125
  %v396 = vpop.f32.mrf.mxu0
  %v397 = vadd.f32 %v378, %v396
  %v398 = vpop.f32.mrf.mxu0
  %v399 = vadd.f32 %v380, %v398
  %400 = vmatmul.bf16.gmra.mxu0 %v129
  %v401 = vpop.f32.mrf.mxu0
  %v402 = vadd.f32 %v383, %v401
  %v403 = vpop.f32.mrf.mxu0
  %v404 = vadd.f32 %v385, %v403
  %405 = vdwg.mxu0
  %v406 = vadd.f32 %v22, %v397
  %v407 = vadd.f32 %v23, %v399
  %v408 = vadd.f32 %v24, %v402
  %v409 = vadd.f32 %v25, %v404
  %410 = vst [vmem:[#allocation2] sm:$0xff] %v406
  %411 = vst [vmem:[#allocation2 + $0x8] sm:$0xff] %v407
  %412 = vst [vmem:[#allocation2 + $0x10] sm:$0xff] %v408
  %413 = vst [vmem:[#allocation2 + $0x18] sm:$0xff] %v409
  // Predicated region
  $region18: #{actor_critic_forward.11} parent=0 // pred_check
    %p414 = pneg %p14
  $region19: #{actor_critic_forward.11} parent=0 // pred_check_branch
    %416 = sbr.rel (%p414) target = $region21
  $region20: #{actor_critic_forward.11} parent=0 // pred_region
    %v417 = vld [vmem:[#allocation2] sm:$0xff]
    %v418 = vld [vmem:[#allocation2 + $0x8] sm:$0xff]
    %v419 = vld [vmem:[#allocation2 + $0x10] sm:$0xff]
    %v420 = vld [vmem:[#allocation2 + $0x18] sm:$0xff]
    %v421 = vld [vmem:[%s2] sm:$0x1]
    %v423 = vperm.slane %v421, 0
    %v425 = vadd.f32 %v417, %v423
    %v426 = vadd.f32 %v418, %v423
    %v427 = vadd.f32 %v419, %v423
    %v428 = vadd.f32 %v420, %v423
    %v429 = vmul.f32 %v425, 0.5
    %v430 = vmul.f32 %v426, 0.5
    %v431 = vmul.f32 %v427, 0.5
    %v432 = vmul.f32 %v428, 0.5
    %v433 = vmul.f32 %v425, 0.70710677
    %v434 = vmul.f32 %v426, 0.70710677
    %v435 = vmul.f32 %v427, 0.70710677
    %v436 = vmul.f32 %v428, 0.70710677
    %v437 = vmul.f32 %v433, %v433
    %v438 = vmin.f32 16.0, %v437
    %v439 = vmul.f32 %v438, 2.1237322e-06
    %v440 = vadd.f32 %v439, 0.00028619796
    %v441 = vmul.f32 %v438, %v440
    %v442 = vadd.f32 %v441, 0.0036580483
    %v443 = vmul.f32 %v438, %v442
    %v444 = vadd.f32 %v443, 0.05243302
    %v445 = vmul.f32 %v438, %v444
    %v446 = vadd.f32 %v445, 0.18741608
    %v447 = vmul.f32 %v438, %v446
    %v448 = vadd.f32 %v447, 1.1283791
    %v449 = vmul.f32 %v433, %v448
    %v450 = vmul.f32 %v438, 3.8918573e-05
    %v451 = vadd.f32 %v450, 0.001143296
    %v452 = vmul.f32 %v438, %v451
    %v453 = vadd.f32 %v452, 0.014752088
    %v454 = vmul.f32 %v438, %v453
    %v455 = vadd.f32 %v454, 0.112945676
    %v456 = vmul.f32 %v438, %v455
    %v457 = vadd.f32 %v456, 0.4994258
    %v458 = vmul.f32 %v438, %v457
    %v459 = vadd.f32 %v458, 1.0
    %v460 = vrcp.pop %v459
    %v461 = vmul.f32 %v459, %v460
    %v462 = vsub.f32 1.0, %v461
    %v463 = vmul.f32 %v460, %v462
    %v464 = vadd.f32 %v460, %v463
    %vm465 = vweird.f32 %v459
    %vm466 = vweird.f32 %v460
    %vm467 = vmor %vm465, %vm466
    %v468 = vsel %vm467, %v460, %v464
    %v469 = vand.u32 2147483647, %v459
    %vm470 = vcmp.eq.f32.partialorder %v469, 8.507059e+37
    %v471 = vand.u32 %v459, 2147483648
    %v472 = vor.u32 1.1754944e-38, %v471
    %v473 = vsel %vm470, %v472, %v468
    %v474 = vmul.f32 %v449, %v473
    %v475 = vmin.f32 %v474, 1.0
    %v476 = vmax.f32 %v475, -1.0
    %v477 = vmul.f32 %v434, %v434
    %v478 = vmin.f32 16.0, %v477
    %v479 = vmul.f32 %v478, 2.1237322e-06
    %v480 = vadd.f32 %v479, 0.00028619796
    %v481 = vmul.f32 %v478, %v480
    %v482 = vadd.f32 %v481, 0.0036580483
    %v483 = vmul.f32 %v478, %v482
    %v484 = vadd.f32 %v483, 0.05243302
    %v485 = vmul.f32 %v478, %v484
    %v486 = vadd.f32 %v485, 0.18741608
    %v487 = vmul.f32 %v478, %v486
    %v488 = vadd.f32 %v487, 1.1283791
    %v489 = vmul.f32 %v434, %v488
    %v490 = vmul.f32 %v478, 3.8918573e-05
    %v491 = vadd.f32 %v490, 0.001143296
    %v492 = vmul.f32 %v478, %v491
    %v493 = vadd.f32 %v492, 0.014752088
    %v494 = vmul.f32 %v478, %v493
    %v495 = vadd.f32 %v494, 0.112945676
    %v496 = vmul.f32 %v478, %v495
    %v497 = vadd.f32 %v496, 0.4994258
    %v498 = vmul.f32 %v478, %v497
    %v499 = vadd.f32 %v498, 1.0
    %v500 = vrcp.pop %v499
    %v501 = vmul.f32 %v499, %v500
    %v502 = vsub.f32 1.0, %v501
    %v503 = vmul.f32 %v500, %v502
    %v504 = vadd.f32 %v500, %v503
    %vm505 = vweird.f32 %v499
    %vm506 = vweird.f32 %v500
    %vm507 = vmor %vm505, %vm506
    %v508 = vsel %vm507, %v500, %v504
    %v509 = vand.u32 2147483647, %v499
    %vm510 = vcmp.eq.f32.partialorder %v509, 8.507059e+37
    %v511 = vand.u32 %v499, 2147483648
    %v512 = vor.u32 1.1754944e-38, %v511
    %v513 = vsel %vm510, %v512, %v508
    %v514 = vmul.f32 %v489, %v513
    %v515 = vmin.f32 %v514, 1.0
    %v516 = vmax.f32 %v515, -1.0
    %v517 = vmul.f32 %v435, %v435
    %v518 = vmin.f32 16.0, %v517
    %v519 = vmul.f32 %v518, 2.1237322e-06
    %v520 = vadd.f32 %v519, 0.00028619796
    %v521 = vmul.f32 %v518, %v520
    %v522 = vadd.f32 %v521, 0.0036580483
    %v523 = vmul.f32 %v518, %v522
    %v524 = vadd.f32 %v523, 0.05243302
    %v525 = vmul.f32 %v518, %v524
    %v526 = vadd.f32 %v525, 0.18741608
    %v527 = vmul.f32 %v518, %v526
    %v528 = vadd.f32 %v527, 1.1283791
    %v529 = vmul.f32 %v435, %v528
    %v530 = vmul.f32 %v518, 3.8918573e-05
    %v531 = vadd.f32 %v530, 0.001143296
    %v532 = vmul.f32 %v518, %v531
    %v533 = vadd.f32 %v532, 0.014752088
    %v534 = vmul.f32 %v518, %v533
    %v535 = vadd.f32 %v534, 0.112945676
    %v536 = vmul.f32 %v518, %v535
    %v537 = vadd.f32 %v536, 0.4994258
    %v538 = vmul.f32 %v518, %v537
    %v539 = vadd.f32 %v538, 1.0
    %v540 = vrcp.pop %v539
    %v541 = vmul.f32 %v539, %v540
    %v542 = vsub.f32 1.0, %v541
    %v543 = vmul.f32 %v540, %v542
    %v544 = vadd.f32 %v540, %v543
    %vm545 = vweird.f32 %v539
    %vm546 = vweird.f32 %v540
    %vm547 = vmor %vm545, %vm546
    %v548 = vsel %vm547, %v540, %v544
    %v549 = vand.u32 2147483647, %v539
    %vm550 = vcmp.eq.f32.partialorder %v549, 8.507059e+37
    %v551 = vand.u32 %v539, 2147483648
    %v552 = vor.u32 1.1754944e-38, %v551
    %v553 = vsel %vm550, %v552, %v548
    %v554 = vmul.f32 %v529, %v553
    %v555 = vmin.f32 %v554, 1.0
    %v556 = vmax.f32 %v555, -1.0
    %v557 = vmul.f32 %v436, %v436
    %v558 = vmin.f32 16.0, %v557
    %v559 = vmul.f32 %v558, 2.1237322e-06
    %v560 = vadd.f32 %v559, 0.00028619796
    %v561 = vmul.f32 %v558, %v560
    %v562 = vadd.f32 %v561, 0.0036580483
    %v563 = vmul.f32 %v558, %v562
    %v564 = vadd.f32 %v563, 0.05243302
    %v565 = vmul.f32 %v558, %v564
    %v566 = vadd.f32 %v565, 0.18741608
    %v567 = vmul.f32 %v558, %v566
    %v568 = vadd.f32 %v567, 1.1283791
    %v569 = vmul.f32 %v436, %v568
    %v570 = vmul.f32 %v558, 3.8918573e-05
    %v571 = vadd.f32 %v570, 0.001143296
    %v572 = vmul.f32 %v558, %v571
    %v573 = vadd.f32 %v572, 0.014752088
    %v574 = vmul.f32 %v558, %v573
    %v575 = vadd.f32 %v574, 0.112945676
    %v576 = vmul.f32 %v558, %v575
    %v577 = vadd.f32 %v576, 0.4994258
    %v578 = vmul.f32 %v558, %v577
    %v579 = vadd.f32 %v578, 1.0
    %v580 = vrcp.pop %v579
    %v581 = vmul.f32 %v579, %v580
    %v582 = vsub.f32 1.0, %v581
    %v583 = vmul.f32 %v580, %v582
    %v584 = vadd.f32 %v580, %v583
    %vm585 = vweird.f32 %v579
    %vm586 = vweird.f32 %v580
    %vm587 = vmor %vm585, %vm586
    %v588 = vsel %vm587, %v580, %v584
    %v589 = vand.u32 2147483647, %v579
    %vm590 = vcmp.eq.f32.partialorder %v589, 8.507059e+37
    %v591 = vand.u32 %v579, 2147483648
    %v592 = vor.u32 1.1754944e-38, %v591
    %v593 = vsel %vm590, %v592, %v588
    %v594 = vmul.f32 %v569, %v593
    %v595 = vmin.f32 %v594, 1.0
    %v596 = vmax.f32 %v595, -1.0
    %v597 = vadd.f32 %v476, 1.0
    %v598 = vadd.f32 %v516, 1.0
    %v599 = vadd.f32 %v556, 1.0
    %v600 = vadd.f32 %v596, 1.0
    %v601 = vmul.f32 %v429, %v597
    %v602 = vmul.f32 %v430, %v598
    %v603 = vmul.f32 %v431, %v599
    %v604 = vmul.f32 %v432, %v600
    %v605 = vpack.c.bf16 %v601, %v601
    %v606 = vpack.c.bf16 %v602, %v602
    %v607 = vpack.c.bf16 %v603, %v603
    %v608 = vpack.c.bf16 %v604, %v604
    %609 = vst [vmem:[%s3] sm:$0xf] %v605
    %610 = vst [vmem:[%s3 + $0x4] sm:$0xf] %v606
    %611 = vst [vmem:[%s3 + $0x8] sm:$0xf] %v607
    %612 = vst [vmem:[%s3 + $0xc] sm:$0xf] %v608
  $region21: #{actor_critic_forward.11} parent=0 // pred_fallthru
    _
  // Predicated region
  $region22: #{actor_critic_forward.11} parent=0 // pred_check
    _
  $region23: #{actor_critic_forward.11} parent=0 // pred_check_branch
    %614 = sbr.rel (0) target = $region25
  $region24: #{actor_critic_forward.11} parent=0 // pred_region
    _
  $region25: #{actor_critic_forward.11} parent=0 // pred_fallthru
    _
  // Predicated region
  $region26: #{actor_critic_forward.11} parent=0 // pred_check
    _
  $region27: #{actor_critic_forward.11} parent=0 // pred_check_branch
    %616 = sbr.rel (0) target = $region29
  $region28: #{actor_critic_forward.11} parent=0 // pred_region
    _
  $region29: #{actor_critic_forward.11} parent=0 // pred_fallthru
    _

// kernel: actor_critic_forward.12
$region0: #{actor_critic_forward.12}
  #allocation0 [shape = 'u32[]', space=smem, size = 0x4, offset = 0x4, fixed_abs, tag = 'smem constant byte address 0x4 - core index']
  #allocation1 [shape = 'u32[72,128]{1,0:T(1,128)}', space=vmem, size = 0x9000, scoped, tag = 'internal scratch']
  #allocation2 [shape = 'f32[16,128]{1,0:T(8,128)}', space=vmem, size = 0x2000, scoped, tag = 'scratch operand']
  %s0 = inlined_call_operand.vmem [shape: bf16[16,640], index: 0, kind: input, shape index: {}]
  %s1 = inlined_call_operand.vmem [shape: bf16[640,128], index: 1, kind: input, shape index: {}]
  %s2 = inlined_call_operand.vmem [shape: f32[1,128], index: 2, kind: input, shape index: {}]
  %s3 = inlined_call_operand.vmem [shape: bf16[16,128], index: 3, kind: output, shape index: {}]
  %s4 = sld [smem:[#allocation0]]
  $region30: #{actor_critic_forward.12} parent=0
    _
  %s6 = ssub.s32 1, %s4
  %s7 = scalar_select 0, %s6, %s4
  // Predicated region
  $region2: #{actor_critic_forward.12} parent=0 // pred_check
    _
  $region3: #{actor_critic_forward.12} parent=0 // pred_check_branch
    %9 = sbr.rel (0) target = $region5
  $region4: #{actor_critic_forward.12} parent=0 // pred_region
    _
  $region5: #{actor_critic_forward.12} parent=0 // pred_fallthru
    _
  // Predicated region
  $region6: #{actor_critic_forward.12} parent=0 // pred_check
    _
  $region7: #{actor_critic_forward.12} parent=0 // pred_check_branch
    %11 = sbr.rel (0) target = $region9
  $region8: #{actor_critic_forward.12} parent=0 // pred_region
    _
  $region9: #{actor_critic_forward.12} parent=0 // pred_fallthru
    _
  // Predicated region
  $region10: #{actor_critic_forward.12} parent=0 // pred_check
    _
  $region11: #{actor_critic_forward.12} parent=0 // pred_check_branch
    %13 = sbr.rel (0) target = $region13
  $region12: #{actor_critic_forward.12} parent=0 // pred_region
    _
  $region13: #{actor_critic_forward.12} parent=0 // pred_fallthru
    _
  %p14 = scmp.eq.s32.totalorder 0, 0
  // Predicated region
  $region14: #{actor_critic_forward.12} parent=0 // pred_check
    %p15 = pneg %p14
  $region15: #{actor_critic_forward.12} parent=0 // pred_check_branch
    %17 = sbr.rel (%p15) target = $region17
  $region16: #{actor_critic_forward.12} parent=0 // pred_region
    %18 = vst [vmem:[#allocation2] sm:$0xff] 0.0
    %19 = vst [vmem:[#allocation2 + $0x8] sm:$0xff] 0.0
  $region17: #{actor_critic_forward.12} parent=0 // pred_fallthru
    _
  %v20 = vld [vmem:[#allocation2] sm:$0xff]
  %v21 = vld [vmem:[#allocation2 + $0x8] sm:$0xff]
  %v22 = vld [vmem:[%s0] sm:$0xff]
  %v23 = vld [vmem:[%s0 + $0x8] sm:$0xff]
  %v24 = vld [vmem:[%s0 + $0x10] sm:$0xf]
  %v25 = vld [vmem:[%s0 + $0x14] sm:$0xff]
  %v26 = vld [vmem:[%s0 + $0x1c] sm:$0xff]
  %v27 = vld [vmem:[%s0 + $0x24] sm:$0xf]
  %v28 = vld [vmem:[%s1] sm:$0xf]
  %v29 = vld [vmem:[%s1 + $0x4] sm:$0xf]
  %v30 = vld [vmem:[%s1 + $0x8] sm:$0xf]
  %v31 = vld [vmem:[%s1 + $0xc] sm:$0xf]
  %v32 = vld [vmem:[%s1 + $0x10] sm:$0xf]
  %v33 = vld [vmem:[%s1 + $0x14] sm:$0xf]
  %v34 = vld [vmem:[%s1 + $0x18] sm:$0xf]
  %v35 = vld [vmem:[%s1 + $0x1c] sm:$0xf]
  %v36 = vld [vmem:[%s1 + $0x20] sm:$0xf]
  %v37 = vld [vmem:[%s1 + $0x24] sm:$0xf]
  %v38 = vld [vmem:[%s1 + $0x28] sm:$0xf]
  %v39 = vld [vmem:[%s1 + $0x2c] sm:$0xf]
  %v40 = vld [vmem:[%s1 + $0x30] sm:$0xf]
  %v41 = vld [vmem:[%s1 + $0x34] sm:$0xf]
  %v42 = vld [vmem:[%s1 + $0x38] sm:$0xf]
  %v43 = vld [vmem:[%s1 + $0x3c] sm:$0xf]
  %v44 = vld [vmem:[%s1 + $0x40] sm:$0xf]
  %v45 = vld [vmem:[%s1 + $0x44] sm:$0xf]
  %v46 = vld [vmem:[%s1 + $0x48] sm:$0xf]
  %v47 = vld [vmem:[%s1 + $0x4c] sm:$0xf]
  %v48 = vld [vmem:[%s1 + $0x50] sm:$0xf]
  %v49 = vld [vmem:[%s1 + $0x54] sm:$0xf]
  %v50 = vld [vmem:[%s1 + $0x58] sm:$0xf]
  %v51 = vld [vmem:[%s1 + $0x5c] sm:$0xf]
  %v52 = vld [vmem:[%s1 + $0x60] sm:$0xf]
  %v53 = vld [vmem:[%s1 + $0x64] sm:$0xf]
  %v54 = vld [vmem:[%s1 + $0x68] sm:$0xf]
  %v55 = vld [vmem:[%s1 + $0x6c] sm:$0xf]
  %v56 = vld [vmem:[%s1 + $0x70] sm:$0xf]
  %v57 = vld [vmem:[%s1 + $0x74] sm:$0xf]
  %v58 = vld [vmem:[%s1 + $0x78] sm:$0xf]
  %v59 = vld [vmem:[%s1 + $0x7c] sm:$0xf]
  %v60 = vld [vmem:[%s1 + $0x80] sm:$0xf]
  %v61 = vld [vmem:[%s1 + $0x84] sm:$0xf]
  %v62 = vld [vmem:[%s1 + $0x88] sm:$0xf]
  %v63 = vld [vmem:[%s1 + $0x8c] sm:$0xf]
  %v64 = vld [vmem:[%s1 + $0x90] sm:$0xf]
  %v65 = vld [vmem:[%s1 + $0x94] sm:$0xf]
  %v66 = vld [vmem:[%s1 + $0x98] sm:$0xf]
  %v67 = vld [vmem:[%s1 + $0x9c] sm:$0xf]
  %v68 = vld [vmem:[%s1 + $0xa0] sm:$0xf]
  %v69 = vld [vmem:[%s1 + $0xa4] sm:$0xf]
  %v70 = vld [vmem:[%s1 + $0xa8] sm:$0xf]
  %v71 = vld [vmem:[%s1 + $0xac] sm:$0xf]
  %v72 = vld [vmem:[%s1 + $0xb0] sm:$0xf]
  %v73 = vld [vmem:[%s1 + $0xb4] sm:$0xf]
  %v74 = vld [vmem:[%s1 + $0xb8] sm:$0xf]
  %v75 = vld [vmem:[%s1 + $0xbc] sm:$0xf]
  %v76 = vld [vmem:[%s1 + $0xc0] sm:$0xf]
  %v77 = vld [vmem:[%s1 + $0xc4] sm:$0xf]
  %v78 = vld [vmem:[%s1 + $0xc8] sm:$0xf]
  %v79 = vld [vmem:[%s1 + $0xcc] sm:$0xf]
  %v80 = vld [vmem:[%s1 + $0xd0] sm:$0xf]
  %v81 = vld [vmem:[%s1 + $0xd4] sm:$0xf]
  %v82 = vld [vmem:[%s1 + $0xd8] sm:$0xf]
  %v83 = vld [vmem:[%s1 + $0xdc] sm:$0xf]
  %v84 = vld [vmem:[%s1 + $0xe0] sm:$0xf]
  %v85 = vld [vmem:[%s1 + $0xe4] sm:$0xf]
  %v86 = vld [vmem:[%s1 + $0xe8] sm:$0xf]
  %v87 = vld [vmem:[%s1 + $0xec] sm:$0xf]
  %v88 = vld [vmem:[%s1 + $0xf0] sm:$0xf]
  %v89 = vld [vmem:[%s1 + $0xf4] sm:$0xf]
  %v90 = vld [vmem:[%s1 + $0xf8] sm:$0xf]
  %v91 = vld [vmem:[%s1 + $0xfc] sm:$0xf]
  %v92 = vld [vmem:[%s1 + $0x100] sm:$0xf]
  %v93 = vld [vmem:[%s1 + $0x104] sm:$0xf]
  %v94 = vld [vmem:[%s1 + $0x108] sm:$0xf]
  %v95 = vld [vmem:[%s1 + $0x10c] sm:$0xf]
  %v96 = vld [vmem:[%s1 + $0x110] sm:$0xf]
  %v97 = vld [vmem:[%s1 + $0x114] sm:$0xf]
  %v98 = vld [vmem:[%s1 + $0x118] sm:$0xf]
  %v99 = vld [vmem:[%s1 + $0x11c] sm:$0xf]
  %v100 = vld [vmem:[%s1 + $0x120] sm:$0xf]
  %v101 = vld [vmem:[%s1 + $0x124] sm:$0xf]
  %v102 = vld [vmem:[%s1 + $0x128] sm:$0xf]
  %v103 = vld [vmem:[%s1 + $0x12c] sm:$0xf]
  %v104 = vld [vmem:[%s1 + $0x130] sm:$0xf]
  %v105 = vld [vmem:[%s1 + $0x134] sm:$0xf]
  %v106 = vld [vmem:[%s1 + $0x138] sm:$0xf]
  %v107 = vld [vmem:[%s1 + $0x13c] sm:$0xf]
  %v114 = vunpack.c.l.b16 %v22
  %v115 = vunpack.c.h.b16 %v22
  %v116 = vunpack.c.l.b16 %v23
  %v117 = vunpack.c.h.b16 %v23
  %v118 = vunpack.c.l.b16 %v24
  %v119 = vunpack.c.l.b16 %v25
  %v120 = vunpack.c.h.b16 %v25
  %v121 = vunpack.c.l.b16 %v26
  %v122 = vunpack.c.h.b16 %v26
  %v123 = vunpack.c.l.b16 %v27
  %v124 = vpack.c.b16 %v119, %v114
  %v125 = vpack.c.b16 %v120, %v115
  %v126 = vpack.c.b16 %v121, %v116
  %v127 = vpack.c.b16 %v122, %v117
  %v128 = vpack.c.b16 %v123, %v118
  %v214 = vunpack.c.l.b16 %v28
  %v215 = vunpack.c.l.b16 %v29
  %v216 = vunpack.c.l.b16 %v30
  %v217 = vunpack.c.l.b16 %v31
  %v218 = vunpack.c.l.b16 %v32
  %v219 = vunpack.c.l.b16 %v33
  %v220 = vunpack.c.l.b16 %v34
  %v221 = vunpack.c.l.b16 %v35
  %v222 = vunpack.c.l.b16 %v36
  %v223 = vunpack.c.l.b16 %v37
  %v224 = vunpack.c.l.b16 %v38
  %v225 = vunpack.c.l.b16 %v39
  %v226 = vunpack.c.l.b16 %v40
  %v227 = vunpack.c.l.b16 %v41
  %v228 = vunpack.c.l.b16 %v42
  %v229 = vunpack.c.l.b16 %v43
  %v230 = vunpack.c.l.b16 %v44
  %v231 = vunpack.c.l.b16 %v45
  %v232 = vunpack.c.l.b16 %v46
  %v233 = vunpack.c.l.b16 %v47
  %v234 = vunpack.c.l.b16 %v48
  %v235 = vunpack.c.l.b16 %v49
  %v236 = vunpack.c.l.b16 %v50
  %v237 = vunpack.c.l.b16 %v51
  %v238 = vunpack.c.l.b16 %v52
  %v239 = vunpack.c.l.b16 %v53
  %v240 = vunpack.c.l.b16 %v54
  %v241 = vunpack.c.l.b16 %v55
  %v242 = vunpack.c.l.b16 %v56
  %v243 = vunpack.c.l.b16 %v57
  %v244 = vunpack.c.l.b16 %v58
  %v245 = vunpack.c.l.b16 %v59
  %v246 = vunpack.c.l.b16 %v60
  %v247 = vunpack.c.l.b16 %v61
  %v248 = vunpack.c.l.b16 %v62
  %v249 = vunpack.c.l.b16 %v63
  %v250 = vunpack.c.l.b16 %v64
  %v251 = vunpack.c.l.b16 %v65
  %v252 = vunpack.c.l.b16 %v66
  %v253 = vunpack.c.l.b16 %v67
  %v254 = vunpack.c.l.b16 %v68
  %v255 = vunpack.c.l.b16 %v69
  %v256 = vunpack.c.l.b16 %v70
  %v257 = vunpack.c.l.b16 %v71
  %v258 = vunpack.c.l.b16 %v72
  %v259 = vunpack.c.l.b16 %v73
  %v260 = vunpack.c.l.b16 %v74
  %v261 = vunpack.c.l.b16 %v75
  %v262 = vunpack.c.l.b16 %v76
  %v263 = vunpack.c.l.b16 %v77
  %v264 = vunpack.c.l.b16 %v78
  %v265 = vunpack.c.l.b16 %v79
  %v266 = vunpack.c.l.b16 %v80
  %v267 = vunpack.c.l.b16 %v81
  %v268 = vunpack.c.l.b16 %v82
  %v269 = vunpack.c.l.b16 %v83
  %v270 = vunpack.c.l.b16 %v84
  %v271 = vunpack.c.l.b16 %v85
  %v272 = vunpack.c.l.b16 %v86
  %v273 = vunpack.c.l.b16 %v87
  %v274 = vunpack.c.l.b16 %v88
  %v275 = vunpack.c.l.b16 %v89
  %v276 = vunpack.c.l.b16 %v90
  %v277 = vunpack.c.l.b16 %v91
  %v278 = vunpack.c.l.b16 %v92
  %v279 = vunpack.c.l.b16 %v93
  %v280 = vunpack.c.l.b16 %v94
  %v281 = vunpack.c.l.b16 %v95
  %v282 = vunpack.c.l.b16 %v96
  %v283 = vunpack.c.l.b16 %v97
  %v284 = vunpack.c.l.b16 %v98
  %v285 = vunpack.c.l.b16 %v99
  %v286 = vunpack.c.l.b16 %v100
  %v287 = vunpack.c.l.b16 %v101
  %v288 = vunpack.c.l.b16 %v102
  %v289 = vunpack.c.l.b16 %v103
  %v290 = vunpack.c.l.b16 %v104
  %v291 = vunpack.c.l.b16 %v105
  %v292 = vunpack.c.l.b16 %v106
  %v293 = vunpack.c.l.b16 %v107
  %v294 = vpack.c.b16 %v215, %v214
  %v295 = vpack.c.b16 %v217, %v216
  %v296 = vpack.c.b16 %v219, %v218
  %v297 = vpack.c.b16 %v221, %v220
  %v298 = vpack.c.b16 %v223, %v222
  %v299 = vpack.c.b16 %v225, %v224
  %v300 = vpack.c.b16 %v227, %v226
  %v301 = vpack.c.b16 %v229, %v228
  %v302 = vpack.c.b16 %v231, %v230
  %v303 = vpack.c.b16 %v233, %v232
  %v304 = vpack.c.b16 %v235, %v234
  %v305 = vpack.c.b16 %v237, %v236
  %v306 = vpack.c.b16 %v239, %v238
  %v307 = vpack.c.b16 %v241, %v240
  %v308 = vpack.c.b16 %v243, %v242
  %v309 = vpack.c.b16 %v245, %v244
  %v310 = vpack.c.b16 %v247, %v246
  %v311 = vpack.c.b16 %v249, %v248
  %v312 = vpack.c.b16 %v251, %v250
  %v313 = vpack.c.b16 %v253, %v252
  %v314 = vpack.c.b16 %v255, %v254
  %v315 = vpack.c.b16 %v257, %v256
  %v316 = vpack.c.b16 %v259, %v258
  %v317 = vpack.c.b16 %v261, %v260
  %v318 = vpack.c.b16 %v263, %v262
  %v319 = vpack.c.b16 %v265, %v264
  %v320 = vpack.c.b16 %v267, %v266
  %v321 = vpack.c.b16 %v269, %v268
  %v322 = vpack.c.b16 %v271, %v270
  %v323 = vpack.c.b16 %v273, %v272
  %v324 = vpack.c.b16 %v275, %v274
  %v325 = vpack.c.b16 %v277, %v276
  %v326 = vpack.c.b16 %v279, %v278
  %v327 = vpack.c.b16 %v281, %v280
  %v328 = vpack.c.b16 %v283, %v282
  %v329 = vpack.c.b16 %v285, %v284
  %v330 = vpack.c.b16 %v287, %v286
  %v331 = vpack.c.b16 %v289, %v288
  %v332 = vpack.c.b16 %v291, %v290
  %v333 = vpack.c.b16 %v293, %v292
  %374 = vmatpush.bf16.msra.mxu0 %v301
  %375 = vmatpush.bf16.msra.mxu0 %v300
  %376 = vmatpush.bf16.msra.mxu0 %v299
  %377 = vmatpush.bf16.msra.mxu0 %v298
  %378 = vmatpush.bf16.msra.mxu0 %v297
  %379 = vmatpush.bf16.msra.mxu0 %v296
  %380 = vmatpush.bf16.msra.mxu0 %v295
  %381 = vmatpush.bf16.msra.mxu0 %v294
  %382 = vmatmul.bf16.gmra.mxu0 %v124
  %v383 = vpop.f32.mrf.mxu0
  %v384 = vadd.f32 0.0, %v383
  %v385 = vpop.f32.mrf.mxu0
  %v386 = vadd.f32 0.0, %v385
  %387 = vdwg.mxu0
  %388 = vmatpush.bf16.msra.mxu0 %v309
  %389 = vmatpush.bf16.msra.mxu0 %v308
  %390 = vmatpush.bf16.msra.mxu0 %v307
  %391 = vmatpush.bf16.msra.mxu0 %v306
  %392 = vmatpush.bf16.msra.mxu0 %v305
  %393 = vmatpush.bf16.msra.mxu0 %v304
  %394 = vmatpush.bf16.msra.mxu0 %v303
  %395 = vmatpush.bf16.msra.mxu0 %v302
  %396 = vmatmul.bf16.gmra.mxu0 %v125
  %v397 = vpop.f32.mrf.mxu0
  %v398 = vadd.f32 %v384, %v397
  %v399 = vpop.f32.mrf.mxu0
  %v400 = vadd.f32 %v386, %v399
  %401 = vdwg.mxu0
  %402 = vmatpush.bf16.msra.mxu0 %v317
  %403 = vmatpush.bf16.msra.mxu0 %v316
  %404 = vmatpush.bf16.msra.mxu0 %v315
  %405 = vmatpush.bf16.msra.mxu0 %v314
  %406 = vmatpush.bf16.msra.mxu0 %v313
  %407 = vmatpush.bf16.msra.mxu0 %v312
  %408 = vmatpush.bf16.msra.mxu0 %v311
  %409 = vmatpush.bf16.msra.mxu0 %v310
  %410 = vmatmul.bf16.gmra.mxu0 %v126
  %v411 = vpop.f32.mrf.mxu0
  %v412 = vadd.f32 %v398, %v411
  %v413 = vpop.f32.mrf.mxu0
  %v414 = vadd.f32 %v400, %v413
  %415 = vdwg.mxu0
  %416 = vmatpush.bf16.msra.mxu0 %v325
  %417 = vmatpush.bf16.msra.mxu0 %v324
  %418 = vmatpush.bf16.msra.mxu0 %v323
  %419 = vmatpush.bf16.msra.mxu0 %v322
  %420 = vmatpush.bf16.msra.mxu0 %v321
  %421 = vmatpush.bf16.msra.mxu0 %v320
  %422 = vmatpush.bf16.msra.mxu0 %v319
  %423 = vmatpush.bf16.msra.mxu0 %v318
  %424 = vmatmul.bf16.gmra.mxu0 %v127
  %v425 = vpop.f32.mrf.mxu0
  %v426 = vadd.f32 %v412, %v425
  %v427 = vpop.f32.mrf.mxu0
  %v428 = vadd.f32 %v414, %v427
  %429 = vdwg.mxu0
  %430 = vmatpush.bf16.msra.mxu0 %v333
  %431 = vmatpush.bf16.msra.mxu0 %v332
  %432 = vmatpush.bf16.msra.mxu0 %v331
  %433 = vmatpush.bf16.msra.mxu0 %v330
  %434 = vmatpush.bf16.msra.mxu0 %v329
  %435 = vmatpush.bf16.msra.mxu0 %v328
  %436 = vmatpush.bf16.msra.mxu0 %v327
  %437 = vmatpush.bf16.msra.mxu0 %v326
  %438 = vmatmul.bf16.gmra.mxu0 %v128
  %v439 = vpop.f32.mrf.mxu0
  %v440 = vadd.f32 %v426, %v439
  %v441 = vpop.f32.mrf.mxu0
  %v442 = vadd.f32 %v428, %v441
  %443 = vdwg.mxu0
  %v444 = vadd.f32 %v20, %v440
  %v445 = vadd.f32 %v21, %v442
  %446 = vst [vmem:[#allocation2] sm:$0xff] %v444
  %447 = vst [vmem:[#allocation2 + $0x8] sm:$0xff] %v445
  // Predicated region
  $region18: #{actor_critic_forward.12} parent=0 // pred_check
    %p448 = pneg %p14
  $region19: #{actor_critic_forward.12} parent=0 // pred_check_branch
    %450 = sbr.rel (%p448) target = $region21
  $region20: #{actor_critic_forward.12} parent=0 // pred_region
    %v451 = vld [vmem:[#allocation2] sm:$0xff]
    %v452 = vld [vmem:[#allocation2 + $0x8] sm:$0xff]
    %v453 = vld [vmem:[%s2] sm:$0x1]
    %v455 = vperm.slane %v453, 0
    %v457 = vadd.f32 %v451, %v455
    %v458 = vadd.f32 %v452, %v455
    %v459 = vmul.f32 %v457, 0.5
    %v460 = vmul.f32 %v458, 0.5
    %v461 = vmul.f32 %v457, 0.70710677
    %v462 = vmul.f32 %v458, 0.70710677
    %v463 = vmul.f32 %v461, %v461
    %v464 = vmin.f32 16.0, %v463
    %v465 = vmul.f32 %v464, 2.1237322e-06
    %v466 = vadd.f32 %v465, 0.00028619796
    %v467 = vmul.f32 %v464, %v466
    %v468 = vadd.f32 %v467, 0.0036580483
    %v469 = vmul.f32 %v464, %v468
    %v470 = vadd.f32 %v469, 0.05243302
    %v471 = vmul.f32 %v464, %v470
    %v472 = vadd.f32 %v471, 0.18741608
    %v473 = vmul.f32 %v464, %v472
    %v474 = vadd.f32 %v473, 1.1283791
    %v475 = vmul.f32 %v461, %v474
    %v476 = vmul.f32 %v464, 3.8918573e-05
    %v477 = vadd.f32 %v476, 0.001143296
    %v478 = vmul.f32 %v464, %v477
    %v479 = vadd.f32 %v478, 0.014752088
    %v480 = vmul.f32 %v464, %v479
    %v481 = vadd.f32 %v480, 0.112945676
    %v482 = vmul.f32 %v464, %v481
    %v483 = vadd.f32 %v482, 0.4994258
    %v484 = vmul.f32 %v464, %v483
    %v485 = vadd.f32 %v484, 1.0
    %v486 = vrcp.pop %v485
    %v487 = vmul.f32 %v485, %v486
    %v488 = vsub.f32 1.0, %v487
    %v489 = vmul.f32 %v486, %v488
    %v490 = vadd.f32 %v486, %v489
    %vm491 = vweird.f32 %v485
    %vm492 = vweird.f32 %v486
    %vm493 = vmor %vm491, %vm492
    %v494 = vsel %vm493, %v486, %v490
    %v495 = vand.u32 2147483647, %v485
    %vm496 = vcmp.eq.f32.partialorder %v495, 8.507059e+37
    %v497 = vand.u32 %v485, 2147483648
    %v498 = vor.u32 1.1754944e-38, %v497
    %v499 = vsel %vm496, %v498, %v494
    %v500 = vmul.f32 %v475, %v499
    %v501 = vmin.f32 %v500, 1.0
    %v502 = vmax.f32 %v501, -1.0
    %v503 = vmul.f32 %v462, %v462
    %v504 = vmin.f32 16.0, %v503
    %v505 = vmul.f32 %v504, 2.1237322e-06
    %v506 = vadd.f32 %v505, 0.00028619796
    %v507 = vmul.f32 %v504, %v506
    %v508 = vadd.f32 %v507, 0.0036580483
    %v509 = vmul.f32 %v504, %v508
    %v510 = vadd.f32 %v509, 0.05243302
    %v511 = vmul.f32 %v504, %v510
    %v512 = vadd.f32 %v511, 0.18741608
    %v513 = vmul.f32 %v504, %v512
    %v514 = vadd.f32 %v513, 1.1283791
    %v515 = vmul.f32 %v462, %v514
    %v516 = vmul.f32 %v504, 3.8918573e-05
    %v517 = vadd.f32 %v516, 0.001143296
    %v518 = vmul.f32 %v504, %v517
    %v519 = vadd.f32 %v518, 0.014752088
    %v520 = vmul.f32 %v504, %v519
    %v521 = vadd.f32 %v520, 0.112945676
    %v522 = vmul.f32 %v504, %v521
    %v523 = vadd.f32 %v522, 0.4994258
    %v524 = vmul.f32 %v504, %v523
    %v525 = vadd.f32 %v524, 1.0
    %v526 = vrcp.pop %v525
    %v527 = vmul.f32 %v525, %v526
    %v528 = vsub.f32 1.0, %v527
    %v529 = vmul.f32 %v526, %v528
    %v530 = vadd.f32 %v526, %v529
    %vm531 = vweird.f32 %v525
    %vm532 = vweird.f32 %v526
    %vm533 = vmor %vm531, %vm532
    %v534 = vsel %vm533, %v526, %v530
    %v535 = vand.u32 2147483647, %v525
    %vm536 = vcmp.eq.f32.partialorder %v535, 8.507059e+37
    %v537 = vand.u32 %v525, 2147483648
    %v538 = vor.u32 1.1754944e-38, %v537
    %v539 = vsel %vm536, %v538, %v534
    %v540 = vmul.f32 %v515, %v539
    %v541 = vmin.f32 %v540, 1.0
    %v542 = vmax.f32 %v541, -1.0
    %v543 = vadd.f32 %v502, 1.0
    %v544 = vadd.f32 %v542, 1.0
    %v545 = vmul.f32 %v459, %v543
    %v546 = vmul.f32 %v460, %v544
    %v547 = vpack.c.bf16 %v545, %v545
    %v548 = vpack.c.bf16 %v546, %v546
    %549 = vst [vmem:[%s3] sm:$0xf] %v547
    %550 = vst [vmem:[%s3 + $0x4] sm:$0xf] %v548
  $region21: #{actor_critic_forward.12} parent=0 // pred_fallthru
    _
  // Predicated region
  $region22: #{actor_critic_forward.12} parent=0 // pred_check
    _
  $region23: #{actor_critic_forward.12} parent=0 // pred_check_branch
    %552 = sbr.rel (0) target = $region25
  $region24: #{actor_critic_forward.12} parent=0 // pred_region
    _
  $region25: #{actor_critic_forward.12} parent=0 // pred_fallthru
    _
  // Predicated region
  $region26: #{actor_critic_forward.12} parent=0 // pred_check
    _
  $region27: #{actor_critic_forward.12} parent=0 // pred_check_branch
    %554 = sbr.rel (0) target = $region29
  $region28: #{actor_critic_forward.12} parent=0 // pred_region
    _
  $region29: #{actor_critic_forward.12} parent=0 // pred_fallthru
    _

// kernel: actor_critic_forward.13
$region0: #{actor_critic_forward.13}
  #allocation0 [shape = 'u32[]', space=smem, size = 0x4, offset = 0x4, fixed_abs, tag = 'smem constant byte address 0x4 - core index']
  #allocation1 [shape = 'u32[72,128]{1,0:T(1,128)}', space=vmem, size = 0x9000, scoped, tag = 'internal scratch']
  %s0 = inlined_call_operand.vmem [shape: bf16[16,128], index: 0, kind: input, shape index: {}]
  %s1 = inlined_call_operand.vmem [shape: bf16[128,512], index: 1, kind: input, shape index: {}]
  %s2 = inlined_call_operand.vmem [shape: f32[1,512], index: 2, kind: input, shape index: {}]
  %s3 = inlined_call_operand.vmem [shape: bf16[512,128], index: 3, kind: input, shape index: {}]
  %s4 = inlined_call_operand.vmem [shape: f32[1,128], index: 4, kind: input, shape index: {}]
  %s5 = inlined_call_operand.vmem [shape: f32[16,128], index: 5, kind: output, shape index: {}]
  %s6 = sld [smem:[#allocation0]]
  $region30: #{actor_critic_forward.13} parent=0
    _
  %s8 = ssub.s32 1, %s6
  %s9 = scalar_select 0, %s8, %s6
  // Predicated region
  $region2: #{actor_critic_forward.13} parent=0 // pred_check
    _
  $region3: #{actor_critic_forward.13} parent=0 // pred_check_branch
    %11 = sbr.rel (0) target = $region5
  $region4: #{actor_critic_forward.13} parent=0 // pred_region
    _
  $region5: #{actor_critic_forward.13} parent=0 // pred_fallthru
    _
  // Predicated region
  $region6: #{actor_critic_forward.13} parent=0 // pred_check
    _
  $region7: #{actor_critic_forward.13} parent=0 // pred_check_branch
    %13 = sbr.rel (0) target = $region9
  $region8: #{actor_critic_forward.13} parent=0 // pred_region
    _
  $region9: #{actor_critic_forward.13} parent=0 // pred_fallthru
    _
  // Predicated region
  $region10: #{actor_critic_forward.13} parent=0 // pred_check
    _
  $region11: #{actor_critic_forward.13} parent=0 // pred_check_branch
    %15 = sbr.rel (0) target = $region13
  $region12: #{actor_critic_forward.13} parent=0 // pred_region
    _
  $region13: #{actor_critic_forward.13} parent=0 // pred_fallthru
    _
  // Predicated region
  $region14: #{actor_critic_forward.13} parent=0 // pred_check
    _
  $region15: #{actor_critic_forward.13} parent=0 // pred_check_branch
    %17 = sbr.rel (0) target = $region17
  $region16: #{actor_critic_forward.13} parent=0 // pred_region
    _
  $region17: #{actor_critic_forward.13} parent=0 // pred_fallthru
    _
  // Predicated region
  $region18: #{actor_critic_forward.13} parent=0 // pred_check
    _
  $region19: #{actor_critic_forward.13} parent=0 // pred_check_branch
    %19 = sbr.rel (0) target = $region21
  $region20: #{actor_critic_forward.13} parent=0 // pred_region
    _
  $region21: #{actor_critic_forward.13} parent=0 // pred_fallthru
    _
  %v20 = vld [vmem:[%s0] sm:$0xf]
  %v21 = vld [vmem:[%s0 + $0x4] sm:$0xf]
  %v22 = vld [vmem:[%s1] sm:$0xff]
  %v23 = vld [vmem:[%s1 + $0x8] sm:$0xff]
  %v24 = vld [vmem:[%s1 + $0x10] sm:$0xff]
  %v25 = vld [vmem:[%s1 + $0x18] sm:$0xff]
  %v26 = vld [vmem:[%s1 + $0x20] sm:$0xff]
  %v27 = vld [vmem:[%s1 + $0x28] sm:$0xff]
  %v28 = vld [vmem:[%s1 + $0x30] sm:$0xff]
  %v29 = vld [vmem:[%s1 + $0x38] sm:$0xff]
  %v30 = vld [vmem:[%s1 + $0x40] sm:$0xff]
  %v31 = vld [vmem:[%s1 + $0x48] sm:$0xff]
  %v32 = vld [vmem:[%s1 + $0x50] sm:$0xff]
  %v33 = vld [vmem:[%s1 + $0x58] sm:$0xff]
  %v34 = vld [vmem:[%s1 + $0x60] sm:$0xff]
  %v35 = vld [vmem:[%s1 + $0x68] sm:$0xff]
  %v36 = vld [vmem:[%s1 + $0x70] sm:$0xff]
  %v37 = vld [vmem:[%s1 + $0x78] sm:$0xff]
  %v38 = vld [vmem:[%s1 + $0x80] sm:$0xff]
  %v39 = vld [vmem:[%s1 + $0x88] sm:$0xff]
  %v40 = vld [vmem:[%s1 + $0x90] sm:$0xff]
  %v41 = vld [vmem:[%s1 + $0x98] sm:$0xff]
  %v42 = vld [vmem:[%s1 + $0xa0] sm:$0xff]
  %v43 = vld [vmem:[%s1 + $0xa8] sm:$0xff]
  %v44 = vld [vmem:[%s1 + $0xb0] sm:$0xff]
  %v45 = vld [vmem:[%s1 + $0xb8] sm:$0xff]
  %v46 = vld [vmem:[%s1 + $0xc0] sm:$0xff]
  %v47 = vld [vmem:[%s1 + $0xc8] sm:$0xff]
  %v48 = vld [vmem:[%s1 + $0xd0] sm:$0xff]
  %v49 = vld [vmem:[%s1 + $0xd8] sm:$0xff]
  %v50 = vld [vmem:[%s1 + $0xe0] sm:$0xff]
  %v51 = vld [vmem:[%s1 + $0xe8] sm:$0xff]
  %v52 = vld [vmem:[%s1 + $0xf0] sm:$0xff]
  %v53 = vld [vmem:[%s1 + $0xf8] sm:$0xff]
  %v54 = vld [vmem:[%s2] sm:$0xf]
  %v56 = vperm.slane %v54, 0
  %v57 = vperm.slane %v54, 1
  %v58 = vperm.slane %v54, 2
  %v59 = vperm.slane %v54, 3
  %v66 = vunpack.c.l.b16 %v20
  %v67 = vunpack.c.l.b16 %v21
  %v68 = vpack.c.b16 %v67, %v66
  %v102 = vunpack.c.l.b16 %v22
  %v103 = vunpack.c.h.b16 %v22
  %v104 = vunpack.c.l.b16 %v23
  %v105 = vunpack.c.h.b16 %v23
  %v106 = vunpack.c.l.b16 %v24
  %v107 = vunpack.c.h.b16 %v24
  %v108 = vunpack.c.l.b16 %v25
  %v109 = vunpack.c.h.b16 %v25
  %v110 = vunpack.c.l.b16 %v26
  %v111 = vunpack.c.h.b16 %v26
  %v112 = vunpack.c.l.b16 %v27
  %v113 = vunpack.c.h.b16 %v27
  %v114 = vunpack.c.l.b16 %v28
  %v115 = vunpack.c.h.b16 %v28
  %v116 = vunpack.c.l.b16 %v29
  %v117 = vunpack.c.h.b16 %v29
  %v118 = vunpack.c.l.b16 %v30
  %v119 = vunpack.c.h.b16 %v30
  %v120 = vunpack.c.l.b16 %v31
  %v121 = vunpack.c.h.b16 %v31
  %v122 = vunpack.c.l.b16 %v32
  %v123 = vunpack.c.h.b16 %v32
  %v124 = vunpack.c.l.b16 %v33
  %v125 = vunpack.c.h.b16 %v33
  %v126 = vunpack.c.l.b16 %v34
  %v127 = vunpack.c.h.b16 %v34
  %v128 = vunpack.c.l.b16 %v35
  %v129 = vunpack.c.h.b16 %v35
  %v130 = vunpack.c.l.b16 %v36
  %v131 = vunpack.c.h.b16 %v36
  %v132 = vunpack.c.l.b16 %v37
  %v133 = vunpack.c.h.b16 %v37
  %v134 = vunpack.c.l.b16 %v38
  %v135 = vunpack.c.h.b16 %v38
  %v136 = vunpack.c.l.b16 %v39
  %v137 = vunpack.c.h.b16 %v39
  %v138 = vunpack.c.l.b16 %v40
  %v139 = vunpack.c.h.b16 %v40
  %v140 = vunpack.c.l.b16 %v41
  %v141 = vunpack.c.h.b16 %v41
  %v142 = vunpack.c.l.b16 %v42
  %v143 = vunpack.c.h.b16 %v42
  %v144 = vunpack.c.l.b16 %v43
  %v145 = vunpack.c.h.b16 %v43
  %v146 = vunpack.c.l.b16 %v44
  %v147 = vunpack.c.h.b16 %v44
  %v148 = vunpack.c.l.b16 %v45
  %v149 = vunpack.c.h.b16 %v45
  %v150 = vunpack.c.l.b16 %v46
  %v151 = vunpack.c.h.b16 %v46
  %v152 = vunpack.c.l.b16 %v47
  %v153 = vunpack.c.h.b16 %v47
  %v154 = vunpack.c.l.b16 %v48
  %v155 = vunpack.c.h.b16 %v48
  %v156 = vunpack.c.l.b16 %v49
  %v157 = vunpack.c.h.b16 %v49
  %v158 = vunpack.c.l.b16 %v50
  %v159 = vunpack.c.h.b16 %v50
  %v160 = vunpack.c.l.b16 %v51
  %v161 = vunpack.c.h.b16 %v51
  %v162 = vunpack.c.l.b16 %v52
  %v163 = vunpack.c.h.b16 %v52
  %v164 = vunpack.c.l.b16 %v53
  %v165 = vunpack.c.h.b16 %v53
  %v166 = vpack.c.b16 %v106, %v102
  %v167 = vpack.c.b16 %v107, %v103
  %v168 = vpack.c.b16 %v108, %v104
  %v169 = vpack.c.b16 %v109, %v105
  %v170 = vpack.c.b16 %v114, %v110
  %v171 = vpack.c.b16 %v115, %v111
  %v172 = vpack.c.b16 %v116, %v112
  %v173 = vpack.c.b16 %v117, %v113
  %v174 = vpack.c.b16 %v122, %v118
  %v175 = vpack.c.b16 %v123, %v119
  %v176 = vpack.c.b16 %v124, %v120
  %v177 = vpack.c.b16 %v125, %v121
  %v178 = vpack.c.b16 %v130, %v126
  %v179 = vpack.c.b16 %v131, %v127
  %v180 = vpack.c.b16 %v132, %v128
  %v181 = vpack.c.b16 %v133, %v129
  %v182 = vpack.c.b16 %v138, %v134
  %v183 = vpack.c.b16 %v139, %v135
  %v184 = vpack.c.b16 %v140, %v136
  %v185 = vpack.c.b16 %v141, %v137
  %v186 = vpack.c.b16 %v146, %v142
  %v187 = vpack.c.b16 %v147, %v143
  %v188 = vpack.c.b16 %v148, %v144
  %v189 = vpack.c.b16 %v149, %v145
  %v190 = vpack.c.b16 %v154, %v150
  %v191 = vpack.c.b16 %v155, %v151
  %v192 = vpack.c.b16 %v156, %v152
  %v193 = vpack.c.b16 %v157, %v153
  %v194 = vpack.c.b16 %v162, %v158
  %v195 = vpack.c.b16 %v163, %v159
  %v196 = vpack.c.b16 %v164, %v160
  %v197 = vpack.c.b16 %v165, %v161
  %230 = vmatpush.bf16.msra.mxu0 %v194
  %231 = vmatpush.bf16.msra.mxu0 %v190
  %232 = vmatpush.bf16.msra.mxu0 %v186
  %233 = vmatpush.bf16.msra.mxu0 %v182
  %234 = vmatpush.bf16.msra.mxu0 %v178
  %235 = vmatpush.bf16.msra.mxu0 %v174
  %236 = vmatpush.bf16.msra.mxu0 %v170
  %237 = vmatpush.bf16.msra.mxu0 %v166
  %238 = vmatmul.bf16.gmra.mxu0 %v68
  %v239 = vpop.f32.mrf.mxu0
  %v240 = vadd.f32 %v56, %v239
  %v241 = vpop.f32.mrf.mxu0
  %v242 = vadd.f32 %v56, %v241
  %243 = vdwg.mxu0
  %244 = vmatpush.bf16.msra.mxu0 %v195
  %245 = vmatpush.bf16.msra.mxu0 %v191
  %246 = vmatpush.bf16.msra.mxu0 %v187
  %247 = vmatpush.bf16.msra.mxu0 %v183
  %248 = vmatpush.bf16.msra.mxu0 %v179
  %249 = vmatpush.bf16.msra.mxu0 %v175
  %250 = vmatpush.bf16.msra.mxu0 %v171
  %251 = vmatpush.bf16.msra.mxu0 %v167
  %252 = vmatmul.bf16.gmra.mxu0 %v68
  %v253 = vpop.f32.mrf.mxu0
  %v254 = vadd.f32 %v57, %v253
  %v255 = vpop.f32.mrf.mxu0
  %v256 = vadd.f32 %v57, %v255
  %257 = vdwg.mxu0
  %258 = vmatpush.bf16.msra.mxu0 %v196
  %259 = vmatpush.bf16.msra.mxu0 %v192
  %260 = vmatpush.bf16.msra.mxu0 %v188
  %261 = vmatpush.bf16.msra.mxu0 %v184
  %262 = vmatpush.bf16.msra.mxu0 %v180
  %263 = vmatpush.bf16.msra.mxu0 %v176
  %264 = vmatpush.bf16.msra.mxu0 %v172
  %265 = vmatpush.bf16.msra.mxu0 %v168
  %266 = vmatmul.bf16.gmra.mxu0 %v68
  %v267 = vpop.f32.mrf.mxu0
  %v268 = vadd.f32 %v58, %v267
  %v269 = vpop.f32.mrf.mxu0
  %v270 = vadd.f32 %v58, %v269
  %271 = vdwg.mxu0
  %272 = vmatpush.bf16.msra.mxu0 %v197
  %273 = vmatpush.bf16.msra.mxu0 %v193
  %274 = vmatpush.bf16.msra.mxu0 %v189
  %275 = vmatpush.bf16.msra.mxu0 %v185
  %276 = vmatpush.bf16.msra.mxu0 %v181
  %277 = vmatpush.bf16.msra.mxu0 %v177
  %278 = vmatpush.bf16.msra.mxu0 %v173
  %279 = vmatpush.bf16.msra.mxu0 %v169
  %280 = vmatmul.bf16.gmra.mxu0 %v68
  %v281 = vpop.f32.mrf.mxu0
  %v282 = vadd.f32 %v59, %v281
  %v283 = vpop.f32.mrf.mxu0
  %v284 = vadd.f32 %v59, %v283
  %285 = vdwg.mxu0
  %vm286 = vcmp.ge.f32.partialorder %v240, 0.0
  %vm287 = vcmp.ge.f32.partialorder %v254, 0.0
  %vm288 = vcmp.ge.f32.partialorder %v268, 0.0
  %vm289 = vcmp.ge.f32.partialorder %v282, 0.0
  %vm290 = vcmp.ge.f32.partialorder %v242, 0.0
  %vm291 = vcmp.ge.f32.partialorder %v256, 0.0
  %vm292 = vcmp.ge.f32.partialorder %v270, 0.0
  %vm293 = vcmp.ge.f32.partialorder %v284, 0.0
  %v294 = vmul.f32 %v240, 0.01
  %v295 = vmul.f32 %v254, 0.01
  %v296 = vmul.f32 %v268, 0.01
  %v297 = vmul.f32 %v282, 0.01
  %v298 = vmul.f32 %v242, 0.01
  %v299 = vmul.f32 %v256, 0.01
  %v300 = vmul.f32 %v270, 0.01
  %v301 = vmul.f32 %v284, 0.01
  %v302 = vsel %vm286, %v240, %v294
  %v303 = vsel %vm287, %v254, %v295
  %v304 = vsel %vm288, %v268, %v296
  %v305 = vsel %vm289, %v282, %v297
  %v306 = vsel %vm290, %v242, %v298
  %v307 = vsel %vm291, %v256, %v299
  %v308 = vsel %vm292, %v270, %v300
  %v309 = vsel %vm293, %v284, %v301
  %v310 = vpack.c.bf16 %v306, %v302
  %v311 = vpack.c.bf16 %v307, %v303
  %v312 = vpack.c.bf16 %v308, %v304
  %v313 = vpack.c.bf16 %v309, %v305
  %v314 = vld [vmem:[%s3] sm:$0xf]
  %v315 = vld [vmem:[%s3 + $0x4] sm:$0xf]
  %v316 = vld [vmem:[%s3 + $0x8] sm:$0xf]
  %v317 = vld [vmem:[%s3 + $0xc] sm:$0xf]
  %v318 = vld [vmem:[%s3 + $0x10] sm:$0xf]
  %v319 = vld [vmem:[%s3 + $0x14] sm:$0xf]
  %v320 = vld [vmem:[%s3 + $0x18] sm:$0xf]
  %v321 = vld [vmem:[%s3 + $0x1c] sm:$0xf]
  %v322 = vld [vmem:[%s3 + $0x20] sm:$0xf]
  %v323 = vld [vmem:[%s3 + $0x24] sm:$0xf]
  %v324 = vld [vmem:[%s3 + $0x28] sm:$0xf]
  %v325 = vld [vmem:[%s3 + $0x2c] sm:$0xf]
  %v326 = vld [vmem:[%s3 + $0x30] sm:$0xf]
  %v327 = vld [vmem:[%s3 + $0x34] sm:$0xf]
  %v328 = vld [vmem:[%s3 + $0x38] sm:$0xf]
  %v329 = vld [vmem:[%s3 + $0x3c] sm:$0xf]
  %v330 = vld [vmem:[%s3 + $0x40] sm:$0xf]
  %v331 = vld [vmem:[%s3 + $0x44] sm:$0xf]
  %v332 = vld [vmem:[%s3 + $0x48] sm:$0xf]
  %v333 = vld [vmem:[%s3 + $0x4c] sm:$0xf]
  %v334 = vld [vmem:[%s3 + $0x50] sm:$0xf]
  %v335 = vld [vmem:[%s3 + $0x54] sm:$0xf]
  %v336 = vld [vmem:[%s3 + $0x58] sm:$0xf]
  %v337 = vld [vmem:[%s3 + $0x5c] sm:$0xf]
  %v338 = vld [vmem:[%s3 + $0x60] sm:$0xf]
  %v339 = vld [vmem:[%s3 + $0x64] sm:$0xf]
  %v340 = vld [vmem:[%s3 + $0x68] sm:$0xf]
  %v341 = vld [vmem:[%s3 + $0x6c] sm:$0xf]
  %v342 = vld [vmem:[%s3 + $0x70] sm:$0xf]
  %v343 = vld [vmem:[%s3 + $0x74] sm:$0xf]
  %v344 = vld [vmem:[%s3 + $0x78] sm:$0xf]
  %v345 = vld [vmem:[%s3 + $0x7c] sm:$0xf]
  %v346 = vld [vmem:[%s3 + $0x80] sm:$0xf]
  %v347 = vld [vmem:[%s3 + $0x84] sm:$0xf]
  %v348 = vld [vmem:[%s3 + $0x88] sm:$0xf]
  %v349 = vld [vmem:[%s3 + $0x8c] sm:$0xf]
  %v350 = vld [vmem:[%s3 + $0x90] sm:$0xf]
  %v351 = vld [vmem:[%s3 + $0x94] sm:$0xf]
  %v352 = vld [vmem:[%s3 + $0x98] sm:$0xf]
  %v353 = vld [vmem:[%s3 + $0x9c] sm:$0xf]
  %v354 = vld [vmem:[%s3 + $0xa0] sm:$0xf]
  %v355 = vld [vmem:[%s3 + $0xa4] sm:$0xf]
  %v356 = vld [vmem:[%s3 + $0xa8] sm:$0xf]
  %v357 = vld [vmem:[%s3 + $0xac] sm:$0xf]
  %v358 = vld [vmem:[%s3 + $0xb0] sm:$0xf]
  %v359 = vld [vmem:[%s3 + $0xb4] sm:$0xf]
  %v360 = vld [vmem:[%s3 + $0xb8] sm:$0xf]
  %v361 = vld [vmem:[%s3 + $0xbc] sm:$0xf]
  %v362 = vld [vmem:[%s3 + $0xc0] sm:$0xf]
  %v363 = vld [vmem:[%s3 + $0xc4] sm:$0xf]
  %v364 = vld [vmem:[%s3 + $0xc8] sm:$0xf]
  %v365 = vld [vmem:[%s3 + $0xcc] sm:$0xf]
  %v366 = vld [vmem:[%s3 + $0xd0] sm:$0xf]
  %v367 = vld [vmem:[%s3 + $0xd4] sm:$0xf]
  %v368 = vld [vmem:[%s3 + $0xd8] sm:$0xf]
  %v369 = vld [vmem:[%s3 + $0xdc] sm:$0xf]
  %v370 = vld [vmem:[%s3 + $0xe0] sm:$0xf]
  %v371 = vld [vmem:[%s3 + $0xe4] sm:$0xf]
  %v372 = vld [vmem:[%s3 + $0xe8] sm:$0xf]
  %v373 = vld [vmem:[%s3 + $0xec] sm:$0xf]
  %v374 = vld [vmem:[%s3 + $0xf0] sm:$0xf]
  %v375 = vld [vmem:[%s3 + $0xf4] sm:$0xf]
  %v376 = vld [vmem:[%s3 + $0xf8] sm:$0xf]
  %v377 = vld [vmem:[%s3 + $0xfc] sm:$0xf]
  %v378 = vld [vmem:[%s4] sm:$0x1]
  %v380 = vperm.slane %v378, 0
  %v446 = vunpack.c.l.b16 %v314
  %v447 = vunpack.c.l.b16 %v315
  %v448 = vunpack.c.l.b16 %v316
  %v449 = vunpack.c.l.b16 %v317
  %v450 = vunpack.c.l.b16 %v318
  %v451 = vunpack.c.l.b16 %v319
  %v452 = vunpack.c.l.b16 %v320
  %v453 = vunpack.c.l.b16 %v321
  %v454 = vunpack.c.l.b16 %v322
  %v455 = vunpack.c.l.b16 %v323
  %v456 = vunpack.c.l.b16 %v324
  %v457 = vunpack.c.l.b16 %v325
  %v458 = vunpack.c.l.b16 %v326
  %v459 = vunpack.c.l.b16 %v327
  %v460 = vunpack.c.l.b16 %v328
  %v461 = vunpack.c.l.b16 %v329
  %v462 = vunpack.c.l.b16 %v330
  %v463 = vunpack.c.l.b16 %v331
  %v464 = vunpack.c.l.b16 %v332
  %v465 = vunpack.c.l.b16 %v333
  %v466 = vunpack.c.l.b16 %v334
  %v467 = vunpack.c.l.b16 %v335
  %v468 = vunpack.c.l.b16 %v336
  %v469 = vunpack.c.l.b16 %v337
  %v470 = vunpack.c.l.b16 %v338
  %v471 = vunpack.c.l.b16 %v339
  %v472 = vunpack.c.l.b16 %v340
  %v473 = vunpack.c.l.b16 %v341
  %v474 = vunpack.c.l.b16 %v342
  %v475 = vunpack.c.l.b16 %v343
  %v476 = vunpack.c.l.b16 %v344
  %v477 = vunpack.c.l.b16 %v345
  %v478 = vunpack.c.l.b16 %v346
  %v479 = vunpack.c.l.b16 %v347
  %v480 = vunpack.c.l.b16 %v348
  %v481 = vunpack.c.l.b16 %v349
  %v482 = vunpack.c.l.b16 %v350
  %v483 = vunpack.c.l.b16 %v351
  %v484 = vunpack.c.l.b16 %v352
  %v485 = vunpack.c.l.b16 %v353
  %v486 = vunpack.c.l.b16 %v354
  %v487 = vunpack.c.l.b16 %v355
  %v488 = vunpack.c.l.b16 %v356
  %v489 = vunpack.c.l.b16 %v357
  %v490 = vunpack.c.l.b16 %v358
  %v491 = vunpack.c.l.b16 %v359
  %v492 = vunpack.c.l.b16 %v360
  %v493 = vunpack.c.l.b16 %v361
  %v494 = vunpack.c.l.b16 %v362
  %v495 = vunpack.c.l.b16 %v363
  %v496 = vunpack.c.l.b16 %v364
  %v497 = vunpack.c.l.b16 %v365
  %v498 = vunpack.c.l.b16 %v366
  %v499 = vunpack.c.l.b16 %v367
  %v500 = vunpack.c.l.b16 %v368
  %v501 = vunpack.c.l.b16 %v369
  %v502 = vunpack.c.l.b16 %v370
  %v503 = vunpack.c.l.b16 %v371
  %v504 = vunpack.c.l.b16 %v372
  %v505 = vunpack.c.l.b16 %v373
  %v506 = vunpack.c.l.b16 %v374
  %v507 = vunpack.c.l.b16 %v375
  %v508 = vunpack.c.l.b16 %v376
  %v509 = vunpack.c.l.b16 %v377
  %v510 = vpack.c.b16 %v447, %v446
  %v511 = vpack.c.b16 %v449, %v448
  %v512 = vpack.c.b16 %v451, %v450
  %v513 = vpack.c.b16 %v453, %v452
  %v514 = vpack.c.b16 %v455, %v454
  %v515 = vpack.c.b16 %v457, %v456
  %v516 = vpack.c.b16 %v459, %v458
  %v517 = vpack.c.b16 %v461, %v460
  %v518 = vpack.c.b16 %v463, %v462
  %v519 = vpack.c.b16 %v465, %v464
  %v520 = vpack.c.b16 %v467, %v466
  %v521 = vpack.c.b16 %v469, %v468
  %v522 = vpack.c.b16 %v471, %v470
  %v523 = vpack.c.b16 %v473, %v472
  %v524 = vpack.c.b16 %v475, %v474
  %v525 = vpack.c.b16 %v477, %v476
  %v526 = vpack.c.b16 %v479, %v478
  %v527 = vpack.c.b16 %v481, %v480
  %v528 = vpack.c.b16 %v483, %v482
  %v529 = vpack.c.b16 %v485, %v484
  %v530 = vpack.c.b16 %v487, %v486
  %v531 = vpack.c.b16 %v489, %v488
  %v532 = vpack.c.b16 %v491, %v490
  %v533 = vpack.c.b16 %v493, %v492
  %v534 = vpack.c.b16 %v495, %v494
  %v535 = vpack.c.b16 %v497, %v496
  %v536 = vpack.c.b16 %v499, %v498
  %v537 = vpack.c.b16 %v501, %v500
  %v538 = vpack.c.b16 %v503, %v502
  %v539 = vpack.c.b16 %v505, %v504
  %v540 = vpack.c.b16 %v507, %v506
  %v541 = vpack.c.b16 %v509, %v508
  %574 = vmatpush.bf16.msra.mxu0 %v517
  %575 = vmatpush.bf16.msra.mxu0 %v516
  %576 = vmatpush.bf16.msra.mxu0 %v515
  %577 = vmatpush.bf16.msra.mxu0 %v514
  %578 = vmatpush.bf16.msra.mxu0 %v513
  %579 = vmatpush.bf16.msra.mxu0 %v512
  %580 = vmatpush.bf16.msra.mxu0 %v511
  %581 = vmatpush.bf16.msra.mxu0 %v510
  %582 = vmatmul.bf16.gmra.mxu0 %v310
  %v583 = vpop.f32.mrf.mxu0
  %v584 = vadd.f32 %v380, %v583
  %v585 = vpop.f32.mrf.mxu0
  %v586 = vadd.f32 %v380, %v585
  %587 = vdwg.mxu0
  %588 = vmatpush.bf16.msra.mxu0 %v525
  %589 = vmatpush.bf16.msra.mxu0 %v524
  %590 = vmatpush.bf16.msra.mxu0 %v523
  %591 = vmatpush.bf16.msra.mxu0 %v522
  %592 = vmatpush.bf16.msra.mxu0 %v521
  %593 = vmatpush.bf16.msra.mxu0 %v520
  %594 = vmatpush.bf16.msra.mxu0 %v519
  %595 = vmatpush.bf16.msra.mxu0 %v518
  %596 = vmatmul.bf16.gmra.mxu0 %v311
  %v597 = vpop.f32.mrf.mxu0
  %v598 = vadd.f32 %v584, %v597
  %v599 = vpop.f32.mrf.mxu0
  %v600 = vadd.f32 %v586, %v599
  %601 = vdwg.mxu0
  %602 = vmatpush.bf16.msra.mxu0 %v533
  %603 = vmatpush.bf16.msra.mxu0 %v532
  %604 = vmatpush.bf16.msra.mxu0 %v531
  %605 = vmatpush.bf16.msra.mxu0 %v530
  %606 = vmatpush.bf16.msra.mxu0 %v529
  %607 = vmatpush.bf16.msra.mxu0 %v528
  %608 = vmatpush.bf16.msra.mxu0 %v527
  %609 = vmatpush.bf16.msra.mxu0 %v526
  %610 = vmatmul.bf16.gmra.mxu0 %v312
  %v611 = vpop.f32.mrf.mxu0
  %v612 = vadd.f32 %v598, %v611
  %v613 = vpop.f32.mrf.mxu0
  %v614 = vadd.f32 %v600, %v613
  %615 = vdwg.mxu0
  %616 = vmatpush.bf16.msra.mxu0 %v541
  %617 = vmatpush.bf16.msra.mxu0 %v540
  %618 = vmatpush.bf16.msra.mxu0 %v539
  %619 = vmatpush.bf16.msra.mxu0 %v538
  %620 = vmatpush.bf16.msra.mxu0 %v537
  %621 = vmatpush.bf16.msra.mxu0 %v536
  %622 = vmatpush.bf16.msra.mxu0 %v535
  %623 = vmatpush.bf16.msra.mxu0 %v534
  %624 = vmatmul.bf16.gmra.mxu0 %v313
  %v625 = vpop.f32.mrf.mxu0
  %v626 = vadd.f32 %v612, %v625
  %v627 = vpop.f32.mrf.mxu0
  %v628 = vadd.f32 %v614, %v627
  %629 = vdwg.mxu0
  %630 = vst [vmem:[%s5] sm:$0xff] %v626
  %631 = vst [vmem:[%s5 + $0x8] sm:$0xff] %v628
  // Predicated region
  $region22: #{actor_critic_forward.13} parent=0 // pred_check
    _
  $region23: #{actor_critic_forward.13} parent=0 // pred_check_branch
    %633 = sbr.rel (0) target = $region25
  $region24: #{actor_critic_forward.13} parent=0 // pred_region
    _
  $region25: #{actor_critic_forward.13} parent=0 // pred_fallthru
    _
  // Predicated region
  $region26: #{actor_critic_forward.13} parent=0 // pred_check
    _
  $region27: #{actor_critic_forward.13} parent=0 // pred_check_branch
    %635 = sbr.rel (0) target = $region29
  $region28: #{actor_critic_forward.13} parent=0 // pred_region
    _
  $region29: #{actor_critic_forward.13} parent=0 // pred_fallthru
    _

// kernel: actor_critic_forward.10
$region0: #{actor_critic_forward.10}
  #allocation0 [shape = 'u32[]', space=smem, size = 0x4, offset = 0x4, fixed_abs, tag = 'smem constant byte address 0x4 - core index']
  #allocation1 [shape = 'u32[72,128]{1,0:T(1,128)}', space=vmem, size = 0x9000, scoped, tag = 'internal scratch']
  %s0 = inlined_call_operand.vmem [shape: bf16[16,128], index: 0, kind: input, shape index: {}]
  %s1 = inlined_call_operand.vmem [shape: bf16[128,512], index: 1, kind: input, shape index: {}]
  %s2 = inlined_call_operand.vmem [shape: f32[1,512], index: 2, kind: input, shape index: {}]
  %s3 = inlined_call_operand.vmem [shape: bf16[512,128], index: 3, kind: input, shape index: {}]
  %s4 = inlined_call_operand.vmem [shape: f32[1,128], index: 4, kind: input, shape index: {}]
  %s5 = inlined_call_operand.vmem [shape: f32[16,128], index: 5, kind: output, shape index: {}]
  %s6 = sld [smem:[#allocation0]]
  $region30: #{actor_critic_forward.10} parent=0
    _
  %s8 = ssub.s32 1, %s6
  %s9 = scalar_select 0, %s8, %s6
  // Predicated region
  $region2: #{actor_critic_forward.10} parent=0 // pred_check
    _
  $region3: #{actor_critic_forward.10} parent=0 // pred_check_branch
    %11 = sbr.rel (0) target = $region5
  $region4: #{actor_critic_forward.10} parent=0 // pred_region
    _
  $region5: #{actor_critic_forward.10} parent=0 // pred_fallthru
    _
  // Predicated region
  $region6: #{actor_critic_forward.10} parent=0 // pred_check
    _
  $region7: #{actor_critic_forward.10} parent=0 // pred_check_branch
    %13 = sbr.rel (0) target = $region9
  $region8: #{actor_critic_forward.10} parent=0 // pred_region
    _
  $region9: #{actor_critic_forward.10} parent=0 // pred_fallthru
    _
  // Predicated region
  $region10: #{actor_critic_forward.10} parent=0 // pred_check
    _
  $region11: #{actor_critic_forward.10} parent=0 // pred_check_branch
    %15 = sbr.rel (0) target = $region13
  $region12: #{actor_critic_forward.10} parent=0 // pred_region
    _
  $region13: #{actor_critic_forward.10} parent=0 // pred_fallthru
    _
  // Predicated region
  $region14: #{actor_critic_forward.10} parent=0 // pred_check
    _
  $region15: #{actor_critic_forward.10} parent=0 // pred_check_branch
    %17 = sbr.rel (0) target = $region17
  $region16: #{actor_critic_forward.10} parent=0 // pred_region
    _
  $region17: #{actor_critic_forward.10} parent=0 // pred_fallthru
    _
  // Predicated region
  $region18: #{actor_critic_forward.10} parent=0 // pred_check
    _
  $region19: #{actor_critic_forward.10} parent=0 // pred_check_branch
    %19 = sbr.rel (0) target = $region21
  $region20: #{actor_critic_forward.10} parent=0 // pred_region
    _
  $region21: #{actor_critic_forward.10} parent=0 // pred_fallthru
    _
  %v20 = vld [vmem:[%s0] sm:$0xf]
  %v21 = vld [vmem:[%s0 + $0x4] sm:$0xf]
  %v22 = vld [vmem:[%s1] sm:$0xff]
  %v23 = vld [vmem:[%s1 + $0x8] sm:$0xff]
  %v24 = vld [vmem:[%s1 + $0x10] sm:$0xff]
  %v25 = vld [vmem:[%s1 + $0x18] sm:$0xff]
  %v26 = vld [vmem:[%s1 + $0x20] sm:$0xff]
  %v27 = vld [vmem:[%s1 + $0x28] sm:$0xff]
  %v28 = vld [vmem:[%s1 + $0x30] sm:$0xff]
  %v29 = vld [vmem:[%s1 + $0x38] sm:$0xff]
  %v30 = vld [vmem:[%s1 + $0x40] sm:$0xff]
  %v31 = vld [vmem:[%s1 + $0x48] sm:$0xff]
  %v32 = vld [vmem:[%s1 + $0x50] sm:$0xff]
  %v33 = vld [vmem:[%s1 + $0x58] sm:$0xff]
  %v34 = vld [vmem:[%s1 + $0x60] sm:$0xff]
  %v35 = vld [vmem:[%s1 + $0x68] sm:$0xff]
  %v36 = vld [vmem:[%s1 + $0x70] sm:$0xff]
  %v37 = vld [vmem:[%s1 + $0x78] sm:$0xff]
  %v38 = vld [vmem:[%s1 + $0x80] sm:$0xff]
  %v39 = vld [vmem:[%s1 + $0x88] sm:$0xff]
  %v40 = vld [vmem:[%s1 + $0x90] sm:$0xff]
  %v41 = vld [vmem:[%s1 + $0x98] sm:$0xff]
  %v42 = vld [vmem:[%s1 + $0xa0] sm:$0xff]
  %v43 = vld [vmem:[%s1 + $0xa8] sm:$0xff]
  %v44 = vld [vmem:[%s1 + $0xb0] sm:$0xff]
  %v45 = vld [vmem:[%s1 + $0xb8] sm:$0xff]
  %v46 = vld [vmem:[%s1 + $0xc0] sm:$0xff]
  %v47 = vld [vmem:[%s1 + $0xc8] sm:$0xff]
  %v48 = vld [vmem:[%s1 + $0xd0] sm:$0xff]
  %v49 = vld [vmem:[%s1 + $0xd8] sm:$0xff]
  %v50 = vld [vmem:[%s1 + $0xe0] sm:$0xff]
  %v51 = vld [vmem:[%s1 + $0xe8] sm:$0xff]
  %v52 = vld [vmem:[%s1 + $0xf0] sm:$0xff]
  %v53 = vld [vmem:[%s1 + $0xf8] sm:$0xff]
  %v54 = vld [vmem:[%s2] sm:$0xf]
  %v56 = vperm.slane %v54, 0
  %v57 = vperm.slane %v54, 1
  %v58 = vperm.slane %v54, 2
  %v59 = vperm.slane %v54, 3
  %v66 = vunpack.c.l.b16 %v20
  %v67 = vunpack.c.l.b16 %v21
  %v68 = vpack.c.b16 %v67, %v66
  %v102 = vunpack.c.l.b16 %v22
  %v103 = vunpack.c.h.b16 %v22
  %v104 = vunpack.c.l.b16 %v23
  %v105 = vunpack.c.h.b16 %v23
  %v106 = vunpack.c.l.b16 %v24
  %v107 = vunpack.c.h.b16 %v24
  %v108 = vunpack.c.l.b16 %v25
  %v109 = vunpack.c.h.b16 %v25
  %v110 = vunpack.c.l.b16 %v26
  %v111 = vunpack.c.h.b16 %v26
  %v112 = vunpack.c.l.b16 %v27
  %v113 = vunpack.c.h.b16 %v27
  %v114 = vunpack.c.l.b16 %v28
  %v115 = vunpack.c.h.b16 %v28
  %v116 = vunpack.c.l.b16 %v29
  %v117 = vunpack.c.h.b16 %v29
  %v118 = vunpack.c.l.b16 %v30
  %v119 = vunpack.c.h.b16 %v30
  %v120 = vunpack.c.l.b16 %v31
  %v121 = vunpack.c.h.b16 %v31
  %v122 = vunpack.c.l.b16 %v32
  %v123 = vunpack.c.h.b16 %v32
  %v124 = vunpack.c.l.b16 %v33
  %v125 = vunpack.c.h.b16 %v33
  %v126 = vunpack.c.l.b16 %v34
  %v127 = vunpack.c.h.b16 %v34
  %v128 = vunpack.c.l.b16 %v35
  %v129 = vunpack.c.h.b16 %v35
  %v130 = vunpack.c.l.b16 %v36
  %v131 = vunpack.c.h.b16 %v36
  %v132 = vunpack.c.l.b16 %v37
  %v133 = vunpack.c.h.b16 %v37
  %v134 = vunpack.c.l.b16 %v38
  %v135 = vunpack.c.h.b16 %v38
  %v136 = vunpack.c.l.b16 %v39
  %v137 = vunpack.c.h.b16 %v39
  %v138 = vunpack.c.l.b16 %v40
  %v139 = vunpack.c.h.b16 %v40
  %v140 = vunpack.c.l.b16 %v41
  %v141 = vunpack.c.h.b16 %v41
  %v142 = vunpack.c.l.b16 %v42
  %v143 = vunpack.c.h.b16 %v42
  %v144 = vunpack.c.l.b16 %v43
  %v145 = vunpack.c.h.b16 %v43
  %v146 = vunpack.c.l.b16 %v44
  %v147 = vunpack.c.h.b16 %v44
  %v148 = vunpack.c.l.b16 %v45
  %v149 = vunpack.c.h.b16 %v45
  %v150 = vunpack.c.l.b16 %v46
  %v151 = vunpack.c.h.b16 %v46
  %v152 = vunpack.c.l.b16 %v47
  %v153 = vunpack.c.h.b16 %v47
  %v154 = vunpack.c.l.b16 %v48
  %v155 = vunpack.c.h.b16 %v48
  %v156 = vunpack.c.l.b16 %v49
  %v157 = vunpack.c.h.b16 %v49
  %v158 = vunpack.c.l.b16 %v50
  %v159 = vunpack.c.h.b16 %v50
  %v160 = vunpack.c.l.b16 %v51
  %v161 = vunpack.c.h.b16 %v51
  %v162 = vunpack.c.l.b16 %v52
  %v163 = vunpack.c.h.b16 %v52
  %v164 = vunpack.c.l.b16 %v53
  %v165 = vunpack.c.h.b16 %v53
  %v166 = vpack.c.b16 %v106, %v102
  %v167 = vpack.c.b16 %v107, %v103
  %v168 = vpack.c.b16 %v108, %v104
  %v169 = vpack.c.b16 %v109, %v105
  %v170 = vpack.c.b16 %v114, %v110
  %v171 = vpack.c.b16 %v115, %v111
  %v172 = vpack.c.b16 %v116, %v112
  %v173 = vpack.c.b16 %v117, %v113
  %v174 = vpack.c.b16 %v122, %v118
  %v175 = vpack.c.b16 %v123, %v119
  %v176 = vpack.c.b16 %v124, %v120
  %v177 = vpack.c.b16 %v125, %v121
  %v178 = vpack.c.b16 %v130, %v126
  %v179 = vpack.c.b16 %v131, %v127
  %v180 = vpack.c.b16 %v132, %v128
  %v181 = vpack.c.b16 %v133, %v129
  %v182 = vpack.c.b16 %v138, %v134
  %v183 = vpack.c.b16 %v139, %v135
  %v184 = vpack.c.b16 %v140, %v136
  %v185 = vpack.c.b16 %v141, %v137
  %v186 = vpack.c.b16 %v146, %v142
  %v187 = vpack.c.b16 %v147, %v143
  %v188 = vpack.c.b16 %v148, %v144
  %v189 = vpack.c.b16 %v149, %v145
  %v190 = vpack.c.b16 %v154, %v150
  %v191 = vpack.c.b16 %v155, %v151
  %v192 = vpack.c.b16 %v156, %v152
  %v193 = vpack.c.b16 %v157, %v153
  %v194 = vpack.c.b16 %v162, %v158
  %v195 = vpack.c.b16 %v163, %v159
  %v196 = vpack.c.b16 %v164, %v160
  %v197 = vpack.c.b16 %v165, %v161
  %230 = vmatpush.bf16.msra.mxu0 %v194
  %231 = vmatpush.bf16.msra.mxu0 %v190
  %232 = vmatpush.bf16.msra.mxu0 %v186
  %233 = vmatpush.bf16.msra.mxu0 %v182
  %234 = vmatpush.bf16.msra.mxu0 %v178
  %235 = vmatpush.bf16.msra.mxu0 %v174
  %236 = vmatpush.bf16.msra.mxu0 %v170
  %237 = vmatpush.bf16.msra.mxu0 %v166
  %238 = vmatmul.bf16.gmra.mxu0 %v68
  %v239 = vpop.f32.mrf.mxu0
  %v240 = vadd.f32 %v56, %v239
  %v241 = vpop.f32.mrf.mxu0
  %v242 = vadd.f32 %v56, %v241
  %243 = vdwg.mxu0
  %244 = vmatpush.bf16.msra.mxu0 %v195
  %245 = vmatpush.bf16.msra.mxu0 %v191
  %246 = vmatpush.bf16.msra.mxu0 %v187
  %247 = vmatpush.bf16.msra.mxu0 %v183
  %248 = vmatpush.bf16.msra.mxu0 %v179
  %249 = vmatpush.bf16.msra.mxu0 %v175
  %250 = vmatpush.bf16.msra.mxu0 %v171
  %251 = vmatpush.bf16.msra.mxu0 %v167
  %252 = vmatmul.bf16.gmra.mxu0 %v68
  %v253 = vpop.f32.mrf.mxu0
  %v254 = vadd.f32 %v57, %v253
  %v255 = vpop.f32.mrf.mxu0
  %v256 = vadd.f32 %v57, %v255
  %257 = vdwg.mxu0
  %258 = vmatpush.bf16.msra.mxu0 %v196
  %259 = vmatpush.bf16.msra.mxu0 %v192
  %260 = vmatpush.bf16.msra.mxu0 %v188
  %261 = vmatpush.bf16.msra.mxu0 %v184
  %262 = vmatpush.bf16.msra.mxu0 %v180
  %263 = vmatpush.bf16.msra.mxu0 %v176
  %264 = vmatpush.bf16.msra.mxu0 %v172
  %265 = vmatpush.bf16.msra.mxu0 %v168
  %266 = vmatmul.bf16.gmra.mxu0 %v68
  %v267 = vpop.f32.mrf.mxu0
  %v268 = vadd.f32 %v58, %v267
  %v269 = vpop.f32.mrf.mxu0
  %v270 = vadd.f32 %v58, %v269
  %271 = vdwg.mxu0
  %272 = vmatpush.bf16.msra.mxu0 %v197
  %273 = vmatpush.bf16.msra.mxu0 %v193
  %274 = vmatpush.bf16.msra.mxu0 %v189
  %275 = vmatpush.bf16.msra.mxu0 %v185
  %276 = vmatpush.bf16.msra.mxu0 %v181
  %277 = vmatpush.bf16.msra.mxu0 %v177
  %278 = vmatpush.bf16.msra.mxu0 %v173
  %279 = vmatpush.bf16.msra.mxu0 %v169
  %280 = vmatmul.bf16.gmra.mxu0 %v68
  %v281 = vpop.f32.mrf.mxu0
  %v282 = vadd.f32 %v59, %v281
  %v283 = vpop.f32.mrf.mxu0
  %v284 = vadd.f32 %v59, %v283
  %285 = vdwg.mxu0
  %vm286 = vcmp.ge.f32.partialorder %v240, 0.0
  %vm287 = vcmp.ge.f32.partialorder %v254, 0.0
  %vm288 = vcmp.ge.f32.partialorder %v268, 0.0
  %vm289 = vcmp.ge.f32.partialorder %v282, 0.0
  %vm290 = vcmp.ge.f32.partialorder %v242, 0.0
  %vm291 = vcmp.ge.f32.partialorder %v256, 0.0
  %vm292 = vcmp.ge.f32.partialorder %v270, 0.0
  %vm293 = vcmp.ge.f32.partialorder %v284, 0.0
  %v294 = vmul.f32 %v240, 0.01
  %v295 = vmul.f32 %v254, 0.01
  %v296 = vmul.f32 %v268, 0.01
  %v297 = vmul.f32 %v282, 0.01
  %v298 = vmul.f32 %v242, 0.01
  %v299 = vmul.f32 %v256, 0.01
  %v300 = vmul.f32 %v270, 0.01
  %v301 = vmul.f32 %v284, 0.01
  %v302 = vsel %vm286, %v240, %v294
  %v303 = vsel %vm287, %v254, %v295
  %v304 = vsel %vm288, %v268, %v296
  %v305 = vsel %vm289, %v282, %v297
  %v306 = vsel %vm290, %v242, %v298
  %v307 = vsel %vm291, %v256, %v299
  %v308 = vsel %vm292, %v270, %v300
  %v309 = vsel %vm293, %v284, %v301
  %v310 = vpack.c.bf16 %v306, %v302
  %v311 = vpack.c.bf16 %v307, %v303
  %v312 = vpack.c.bf16 %v308, %v304
  %v313 = vpack.c.bf16 %v309, %v305
  %v314 = vld [vmem:[%s3] sm:$0xf]
  %v315 = vld [vmem:[%s3 + $0x4] sm:$0xf]
  %v316 = vld [vmem:[%s3 + $0x8] sm:$0xf]
  %v317 = vld [vmem:[%s3 + $0xc] sm:$0xf]
  %v318 = vld [vmem:[%s3 + $0x10] sm:$0xf]
  %v319 = vld [vmem:[%s3 + $0x14] sm:$0xf]
  %v320 = vld [vmem:[%s3 + $0x18] sm:$0xf]
  %v321 = vld [vmem:[%s3 + $0x1c] sm:$0xf]
  %v322 = vld [vmem:[%s3 + $0x20] sm:$0xf]
  %v323 = vld [vmem:[%s3 + $0x24] sm:$0xf]
  %v324 = vld [vmem:[%s3 + $0x28] sm:$0xf]
  %v325 = vld [vmem:[%s3 + $0x2c] sm:$0xf]
  %v326 = vld [vmem:[%s3 + $0x30] sm:$0xf]
  %v327 = vld [vmem:[%s3 + $0x34] sm:$0xf]
  %v328 = vld [vmem:[%s3 + $0x38] sm:$0xf]
  %v329 = vld [vmem:[%s3 + $0x3c] sm:$0xf]
  %v330 = vld [vmem:[%s3 + $0x40] sm:$0xf]
  %v331 = vld [vmem:[%s3 + $0x44] sm:$0xf]
  %v332 = vld [vmem:[%s3 + $0x48] sm:$0xf]
  %v333 = vld [vmem:[%s3 + $0x4c] sm:$0xf]
  %v334 = vld [vmem:[%s3 + $0x50] sm:$0xf]
  %v335 = vld [vmem:[%s3 + $0x54] sm:$0xf]
  %v336 = vld [vmem:[%s3 + $0x58] sm:$0xf]
  %v337 = vld [vmem:[%s3 + $0x5c] sm:$0xf]
  %v338 = vld [vmem:[%s3 + $0x60] sm:$0xf]
  %v339 = vld [vmem:[%s3 + $0x64] sm:$0xf]
  %v340 = vld [vmem:[%s3 + $0x68] sm:$0xf]
  %v341 = vld [vmem:[%s3 + $0x6c] sm:$0xf]
  %v342 = vld [vmem:[%s3 + $0x70] sm:$0xf]
  %v343 = vld [vmem:[%s3 + $0x74] sm:$0xf]
  %v344 = vld [vmem:[%s3 + $0x78] sm:$0xf]
  %v345 = vld [vmem:[%s3 + $0x7c] sm:$0xf]
  %v346 = vld [vmem:[%s3 + $0x80] sm:$0xf]
  %v347 = vld [vmem:[%s3 + $0x84] sm:$0xf]
  %v348 = vld [vmem:[%s3 + $0x88] sm:$0xf]
  %v349 = vld [vmem:[%s3 + $0x8c] sm:$0xf]
  %v350 = vld [vmem:[%s3 + $0x90] sm:$0xf]
  %v351 = vld [vmem:[%s3 + $0x94] sm:$0xf]
  %v352 = vld [vmem:[%s3 + $0x98] sm:$0xf]
  %v353 = vld [vmem:[%s3 + $0x9c] sm:$0xf]
  %v354 = vld [vmem:[%s3 + $0xa0] sm:$0xf]
  %v355 = vld [vmem:[%s3 + $0xa4] sm:$0xf]
  %v356 = vld [vmem:[%s3 + $0xa8] sm:$0xf]
  %v357 = vld [vmem:[%s3 + $0xac] sm:$0xf]
  %v358 = vld [vmem:[%s3 + $0xb0] sm:$0xf]
  %v359 = vld [vmem:[%s3 + $0xb4] sm:$0xf]
  %v360 = vld [vmem:[%s3 + $0xb8] sm:$0xf]
  %v361 = vld [vmem:[%s3 + $0xbc] sm:$0xf]
  %v362 = vld [vmem:[%s3 + $0xc0] sm:$0xf]
  %v363 = vld [vmem:[%s3 + $0xc4] sm:$0xf]
  %v364 = vld [vmem:[%s3 + $0xc8] sm:$0xf]
  %v365 = vld [vmem:[%s3 + $0xcc] sm:$0xf]
  %v366 = vld [vmem:[%s3 + $0xd0] sm:$0xf]
  %v367 = vld [vmem:[%s3 + $0xd4] sm:$0xf]
  %v368 = vld [vmem:[%s3 + $0xd8] sm:$0xf]
  %v369 = vld [vmem:[%s3 + $0xdc] sm:$0xf]
  %v370 = vld [vmem:[%s3 + $0xe0] sm:$0xf]
  %v371 = vld [vmem:[%s3 + $0xe4] sm:$0xf]
  %v372 = vld [vmem:[%s3 + $0xe8] sm:$0xf]
  %v373 = vld [vmem:[%s3 + $0xec] sm:$0xf]
  %v374 = vld [vmem:[%s3 + $0xf0] sm:$0xf]
  %v375 = vld [vmem:[%s3 + $0xf4] sm:$0xf]
  %v376 = vld [vmem:[%s3 + $0xf8] sm:$0xf]
  %v377 = vld [vmem:[%s3 + $0xfc] sm:$0xf]
  %v378 = vld [vmem:[%s4] sm:$0x1]
  %v380 = vperm.slane %v378, 0
  %v446 = vunpack.c.l.b16 %v314
  %v447 = vunpack.c.l.b16 %v315
  %v448 = vunpack.c.l.b16 %v316
  %v449 = vunpack.c.l.b16 %v317
  %v450 = vunpack.c.l.b16 %v318
  %v451 = vunpack.c.l.b16 %v319
  %v452 = vunpack.c.l.b16 %v320
  %v453 = vunpack.c.l.b16 %v321
  %v454 = vunpack.c.l.b16 %v322
  %v455 = vunpack.c.l.b16 %v323
  %v456 = vunpack.c.l.b16 %v324
  %v457 = vunpack.c.l.b16 %v325
  %v458 = vunpack.c.l.b16 %v326
  %v459 = vunpack.c.l.b16 %v327
  %v460 = vunpack.c.l.b16 %v328
  %v461 = vunpack.c.l.b16 %v329
  %v462 = vunpack.c.l.b16 %v330
  %v463 = vunpack.c.l.b16 %v331
  %v464 = vunpack.c.l.b16 %v332
  %v465 = vunpack.c.l.b16 %v333
  %v466 = vunpack.c.l.b16 %v334
  %v467 = vunpack.c.l.b16 %v335
  %v468 = vunpack.c.l.b16 %v336
  %v469 = vunpack.c.l.b16 %v337
  %v470 = vunpack.c.l.b16 %v338
  %v471 = vunpack.c.l.b16 %v339
  %v472 = vunpack.c.l.b16 %v340
  %v473 = vunpack.c.l.b16 %v341
  %v474 = vunpack.c.l.b16 %v342
  %v475 = vunpack.c.l.b16 %v343
  %v476 = vunpack.c.l.b16 %v344
  %v477 = vunpack.c.l.b16 %v345
  %v478 = vunpack.c.l.b16 %v346
  %v479 = vunpack.c.l.b16 %v347
  %v480 = vunpack.c.l.b16 %v348
  %v481 = vunpack.c.l.b16 %v349
  %v482 = vunpack.c.l.b16 %v350
  %v483 = vunpack.c.l.b16 %v351
  %v484 = vunpack.c.l.b16 %v352
  %v485 = vunpack.c.l.b16 %v353
  %v486 = vunpack.c.l.b16 %v354
  %v487 = vunpack.c.l.b16 %v355
  %v488 = vunpack.c.l.b16 %v356
  %v489 = vunpack.c.l.b16 %v357
  %v490 = vunpack.c.l.b16 %v358
  %v491 = vunpack.c.l.b16 %v359
  %v492 = vunpack.c.l.b16 %v360
  %v493 = vunpack.c.l.b16 %v361
  %v494 = vunpack.c.l.b16 %v362
  %v495 = vunpack.c.l.b16 %v363
  %v496 = vunpack.c.l.b16 %v364
  %v497 = vunpack.c.l.b16 %v365
  %v498 = vunpack.c.l.b16 %v366
  %v499 = vunpack.c.l.b16 %v367
  %v500 = vunpack.c.l.b16 %v368
  %v501 = vunpack.c.l.b16 %v369
  %v502 = vunpack.c.l.b16 %v370
  %v503 = vunpack.c.l.b16 %v371
  %v504 = vunpack.c.l.b16 %v372
  %v505 = vunpack.c.l.b16 %v373
  %v506 = vunpack.c.l.b16 %v374
  %v507 = vunpack.c.l.b16 %v375
  %v508 = vunpack.c.l.b16 %v376
  %v509 = vunpack.c.l.b16 %v377
  %v510 = vpack.c.b16 %v447, %v446
  %v511 = vpack.c.b16 %v449, %v448
  %v512 = vpack.c.b16 %v451, %v450
  %v513 = vpack.c.b16 %v453, %v452
  %v514 = vpack.c.b16 %v455, %v454
  %v515 = vpack.c.b16 %v457, %v456
  %v516 = vpack.c.b16 %v459, %v458
  %v517 = vpack.c.b16 %v461, %v460
  %v518 = vpack.c.b16 %v463, %v462
  %v519 = vpack.c.b16 %v465, %v464
  %v520 = vpack.c.b16 %v467, %v466
  %v521 = vpack.c.b16 %v469, %v468
  %v522 = vpack.c.b16 %v471, %v470
  %v523 = vpack.c.b16 %v473, %v472
  %v524 = vpack.c.b16 %v475, %v474
  %v525 = vpack.c.b16 %v477, %v476
  %v526 = vpack.c.b16 %v479, %v478
  %v527 = vpack.c.b16 %v481, %v480
  %v528 = vpack.c.b16 %v483, %v482
  %v529 = vpack.c.b16 %v485, %v484
  %v530 = vpack.c.b16 %v487, %v486
  %v531 = vpack.c.b16 %v489, %v488
  %v532 = vpack.c.b16 %v491, %v490
  %v533 = vpack.c.b16 %v493, %v492
  %v534 = vpack.c.b16 %v495, %v494
  %v535 = vpack.c.b16 %v497, %v496
  %v536 = vpack.c.b16 %v499, %v498
  %v537 = vpack.c.b16 %v501, %v500
  %v538 = vpack.c.b16 %v503, %v502
  %v539 = vpack.c.b16 %v505, %v504
  %v540 = vpack.c.b16 %v507, %v506
  %v541 = vpack.c.b16 %v509, %v508
  %574 = vmatpush.bf16.msra.mxu0 %v517
  %575 = vmatpush.bf16.msra.mxu0 %v516
  %576 = vmatpush.bf16.msra.mxu0 %v515
  %577 = vmatpush.bf16.msra.mxu0 %v514
  %578 = vmatpush.bf16.msra.mxu0 %v513
  %579 = vmatpush.bf16.msra.mxu0 %v512
  %580 = vmatpush.bf16.msra.mxu0 %v511
  %581 = vmatpush.bf16.msra.mxu0 %v510
  %582 = vmatmul.bf16.gmra.mxu0 %v310
  %v583 = vpop.f32.mrf.mxu0
  %v584 = vadd.f32 %v380, %v583
  %v585 = vpop.f32.mrf.mxu0
  %v586 = vadd.f32 %v380, %v585
  %587 = vdwg.mxu0
  %588 = vmatpush.bf16.msra.mxu0 %v525
  %589 = vmatpush.bf16.msra.mxu0 %v524
  %590 = vmatpush.bf16.msra.mxu0 %v523
  %591 = vmatpush.bf16.msra.mxu0 %v522
  %592 = vmatpush.bf16.msra.mxu0 %v521
  %593 = vmatpush.bf16.msra.mxu0 %v520
  %594 = vmatpush.bf16.msra.mxu0 %v519
  %595 = vmatpush.bf16.msra.mxu0 %v518
  %596 = vmatmul.bf16.gmra.mxu0 %v311
  %v597 = vpop.f32.mrf.mxu0
  %v598 = vadd.f32 %v584, %v597
  %v599 = vpop.f32.mrf.mxu0
  %v600 = vadd.f32 %v586, %v599
  %601 = vdwg.mxu0
  %602 = vmatpush.bf16.msra.mxu0 %v533
  %603 = vmatpush.bf16.msra.mxu0 %v532
  %604 = vmatpush.bf16.msra.mxu0 %v531
  %605 = vmatpush.bf16.msra.mxu0 %v530
  %606 = vmatpush.bf16.msra.mxu0 %v529
  %607 = vmatpush.bf16.msra.mxu0 %v528
  %608 = vmatpush.bf16.msra.mxu0 %v527
  %609 = vmatpush.bf16.msra.mxu0 %v526
  %610 = vmatmul.bf16.gmra.mxu0 %v312
  %v611 = vpop.f32.mrf.mxu0
  %v612 = vadd.f32 %v598, %v611
  %v613 = vpop.f32.mrf.mxu0
  %v614 = vadd.f32 %v600, %v613
  %615 = vdwg.mxu0
  %616 = vmatpush.bf16.msra.mxu0 %v541
  %617 = vmatpush.bf16.msra.mxu0 %v540
  %618 = vmatpush.bf16.msra.mxu0 %v539
  %619 = vmatpush.bf16.msra.mxu0 %v538
  %620 = vmatpush.bf16.msra.mxu0 %v537
  %621 = vmatpush.bf16.msra.mxu0 %v536
  %622 = vmatpush.bf16.msra.mxu0 %v535
  %623 = vmatpush.bf16.msra.mxu0 %v534
  %624 = vmatmul.bf16.gmra.mxu0 %v313
  %v625 = vpop.f32.mrf.mxu0
  %v626 = vadd.f32 %v612, %v625
  %v627 = vpop.f32.mrf.mxu0
  %v628 = vadd.f32 %v614, %v627
  %629 = vdwg.mxu0
  %v630 = vlaneseq
  %v631 = vand.u32 %v630, 127
  %vm632 = vcmp.lt.s32.totalorder %v631, 6
  %v633 = vsel %vm632, %v626, -inf
  %v634 = vsel %vm632, %v628, -inf
  %635 = vmax.xlane.f32.xlu0 %v633
  %v636 = vpop.xlane.xlu0 %635
  %637 = vmax.xlane.f32.xlu0 %v634
  %v638 = vpop.xlane.xlu0 %637
  %v639 = vsub.f32 %v633, %v636
  %v640 = vsub.f32 %v634, %v638
  %v641 = vmul.f32 %v639, 1.442695
  %v642 = vpow.pop %v641
  %v643 = vmul.f32 %v640, 1.442695
  %v644 = vpow.pop %v643
  %v645 = vsel %vm632, %v642, 0.0
  %v646 = vsel %vm632, %v644, 0.0
  %647 = vadd.xlane.f32.xlu0 %v645
  %v648 = vpop.xlane.xlu0 %647
  %649 = vadd.xlane.f32.xlu0 %v646
  %v650 = vpop.xlane.xlu0 %649
  %v651 = vrcp.pop %v648
  %v652 = vmul.f32 %v648, %v651
  %v653 = vsub.f32 1.0, %v652
  %v654 = vmul.f32 %v651, %v653
  %v655 = vadd.f32 %v651, %v654
  %vm656 = vweird.f32 %v648
  %vm657 = vweird.f32 %v651
  %vm658 = vmor %vm656, %vm657
  %v659 = vsel %vm658, %v651, %v655
  %v660 = vand.u32 2147483647, %v648
  %vm661 = vcmp.eq.f32.partialorder %v660, 8.507059e+37
  %v662 = vand.u32 %v648, 2147483648
  %v663 = vor.u32 1.1754944e-38, %v662
  %v664 = vsel %vm661, %v663, %v659
  %v665 = vmul.f32 %v645, %v664
  %v666 = vrcp.pop %v650
  %v667 = vmul.f32 %v650, %v666
  %v668 = vsub.f32 1.0, %v667
  %v669 = vmul.f32 %v666, %v668
  %v670 = vadd.f32 %v666, %v669
  %vm671 = vweird.f32 %v650
  %vm672 = vweird.f32 %v666
  %vm673 = vmor %vm671, %vm672
  %v674 = vsel %vm673, %v666, %v670
  %v675 = vand.u32 2147483647, %v650
  %vm676 = vcmp.eq.f32.partialorder %v675, 8.507059e+37
  %v677 = vand.u32 %v650, 2147483648
  %v678 = vor.u32 1.1754944e-38, %v677
  %v679 = vsel %vm676, %v678, %v674
  %v680 = vmul.f32 %v646, %v679
  %681 = vst [vmem:[%s5] sm:$0xff] %v665
  %682 = vst [vmem:[%s5 + $0x8] sm:$0xff] %v680
  // Predicated region
  $region22: #{actor_critic_forward.10} parent=0 // pred_check
    _
  $region23: #{actor_critic_forward.10} parent=0 // pred_check_branch
    %684 = sbr.rel (0) target = $region25
  $region24: #{actor_critic_forward.10} parent=0 // pred_region
    _
  $region25: #{actor_critic_forward.10} parent=0 // pred_fallthru
    _
  // Predicated region
  $region26: #{actor_critic_forward.10} parent=0 // pred_check
    _
  $region27: #{actor_critic_forward.10} parent=0 // pred_check_branch
    %686 = sbr.rel (0) target = $region29
  $region28: #{actor_critic_forward.10} parent=0 // pred_region
    _
  $region29: #{actor_critic_forward.10} parent=0 // pred_fallthru
    _

</llo_original>
